<compile_context>
chip_gen: v7x
topology: tpu7x:2x2x1
jax: 0.10.0
libtpu: 0.0.40
codegen_flags: <defaults>
</compile_context>

<pallas_src>
from functools import partial

import jax
import jax.numpy as jnp
from jax.experimental import pallas as pl
from jax.experimental.pallas import tpu as pltpu

TAU = 2.0
V_THRESHOLD = 1.0          # lif_node_builder('lif', ...) ignores the per-node threshold arg
BN_EPS = 1e-5
ATTN_SCALE = 0.125


# ------------------------------- fused kernel -------------------------------


def _ssa_fused_kernel(x_ref, wqkv_ref, bqkv_ref, wp_ref, bp_ref, mask_ref, out_ref,
                      *, n_tok, use_bf16_attn):
    # x_ref:    (T, C, M)  with M = B * N   (batch packed into the lane axis)
    # wqkv_ref: (3C, C)    BN-scale-folded stacked q/k/v conv weights
    # bqkv_ref: (3C, 1)    BN shift
    # wp_ref:   (C, C)     BN-scale-folded proj conv weight (conv bias folded into bp)
    # bp_ref:   (C, 1)
    # mask_ref: (C, C)     block-diagonal head mask with ATTN_SCALE folded in
    # out_ref:  (T, C, M)  final proj_lif spikes (lane-dense)
    T = x_ref.shape[0]
    C = wp_ref.shape[0]
    M = x_ref.shape[2]
    N = n_tok
    B = M // N
    inv_tau = 1.0 / TAU
    attn_dt = jnp.bfloat16 if use_bf16_attn else jnp.float32

    def lif_step(x, v):
        # MultiStepLIFNode(tau=2, v_reset=0, hard reset), one time step.  f32 on VPU.
        h = v + (x - v) * inv_tau
        s = (h >= V_THRESHOLD).astype(jnp.float32)
        return s, h * (1.0 - s)

    wqkv = wqkv_ref[...]
    bqkv = bqkv_ref[...]
    wp = wp_ref[...]
    bp = bp_ref[...]
    mask = mask_ref[...]

    # LIF membranes: plain loop-carried values (whole kernel is one invocation).
    v_qkv = jnp.zeros((3 * C, M), jnp.float32)     # q/k/v membranes, stacked
    v_attn = jnp.zeros((C, M), jnp.float32)        # attn_lif membrane
    v_proj = jnp.zeros((C, N), jnp.float32)        # proj_lif membrane (shared over batch)

    # T is small & static: full unroll -> no per-step grid overhead, cross-step overlap.
    for t in range(T):
        x_t = x_ref[t]                                                  # (C, M)

        # --- q/k/v: fused 1x1 conv + BN (scale pre-folded) + shared LIF ----------
        y = jnp.dot(wqkv, x_t, preferred_element_type=jnp.float32) + bqkv
        s_qkv, v_qkv = lif_step(y, v_qkv)

        q_s = s_qkv[0 * C:1 * C, :].astype(attn_dt)   # spikes are 0/1 -> bf16 exact
        k_s = s_qkv[1 * C:2 * C, :].astype(attn_dt)
        v_s = s_qkv[2 * C:3 * C, :].astype(attn_dt)

        # --- spiking attention: per sample, full-C matmuls + block-diag head mask --
        #   kv_full = v_b @ k_b^T  (integer counts <= N, exact)
        #   attn_b  = (kv_full * mask) @ q_b   (ATTN_SCALE folded into mask)
        att_parts = []
        for b in range(B):
            cols = slice(b * N, (b + 1) * N)
            kv = jax.lax.dot_general(v_s[:, cols], k_s[:, cols],
                                     (((1,), (1,)), ((), ())),
                                     preferred_element_type=jnp.float32)   # (C, C)
            kv_m = (kv * mask).astype(attn_dt)        # counts*0.125 <= 8 -> exact in bf16
            att_parts.append(
                jnp.dot(kv_m, q_s[:, cols], preferred_element_type=jnp.float32))
        attn = att_parts[0] if B == 1 else jnp.concatenate(att_parts, axis=1)  # (C, M)

        # --- attn_lif (threshold 1.0: builder ignores the 0.5 arg for 'lif') -------
        a_s, v_attn = lif_step(attn, v_attn)

        # --- proj conv + BN (scale & conv bias pre-folded) -------------------------
        p = jnp.dot(wp, a_s, preferred_element_type=jnp.float32) + bp

        # --- proj_lif over the flattened T*B axis (t-major, b-minor, as in PyTorch) -
        out_parts = []
        for b in range(B):
            s_b, v_proj = lif_step(p[:, b * N:(b + 1) * N], v_proj)
            out_parts.append(s_b)
        # single lane-dense (C, M) store per time step
        out_ref[t] = out_parts[0] if B == 1 else jnp.concatenate(out_parts, axis=1)


# ------------------------------ module wrapper ------------------------------


def _fold_bn(w, gamma, beta, mean, var, conv_bias=None):
    s = gamma / jnp.sqrt(var + BN_EPS)
    w_f = w * s[:, None]                       # fold BN scale into the conv weight rows
    sh = beta - mean * s
    if conv_bias is not None:                  # fold the conv bias through the BN affine
        sh = sh + s * conv_bias
    return w_f, sh[:, None]


def spiking_self_attention_forward(x, params, num_heads):
    T, B, C, H, W = x.shape
    assert C % num_heads == 0
    N = H * W
    M = B * N
    d = C // num_heads

    # Pack the batch into the lane axis: (T,B,C,H,W) -> (T, C, B*N)  (layout plumbing)
    x_packed = jnp.transpose(x.reshape(T, B, C, N), (0, 2, 1, 3)).reshape(T, C, M)

    wq, bq = _fold_bn(params["q_conv_w"], params["q_bn_gamma"], params["q_bn_beta"],
                      params["q_bn_mean"], params["q_bn_var"])
    wk, bk = _fold_bn(params["k_conv_w"], params["k_bn_gamma"], params["k_bn_beta"],
                      params["k_bn_mean"], params["k_bn_var"])
    wv, bv = _fold_bn(params["v_conv_w"], params["v_bn_gamma"], params["v_bn_beta"],
                      params["v_bn_mean"], params["v_bn_var"])
    wp, bp = _fold_bn(params["proj_conv_w"], params["proj_bn_gamma"], params["proj_bn_beta"],
                      params["proj_bn_mean"], params["proj_bn_var"], params["proj_conv_b"])

    w_qkv = jnp.concatenate([wq, wk, wv], axis=0)        # (3C, C) -> one MXU matmul
    b_qkv = jnp.concatenate([bq, bk, bv], axis=0)        # (3C, 1)

    # Block-diagonal head mask with the attention scale folded in.
    head_ids = jnp.arange(C) // d
    head_mask = (head_ids[:, None] == head_ids[None, :]).astype(jnp.float32) * ATTN_SCALE

    kernel = partial(_ssa_fused_kernel, n_tok=N,
                     use_bf16_attn=(N <= 256))          # kv counts exact in bf16 iff N<=256

    vmem_spec = pl.BlockSpec(memory_space=pltpu.MemorySpace.VMEM)

    out = pl.pallas_call(
        kernel,
        out_shape=jax.ShapeDtypeStruct((T, C, M), jnp.float32),
        in_specs=[vmem_spec] * 6,
        out_specs=vmem_spec,
    )(x_packed, w_qkv, b_qkv, wp, bp, head_mask)

    # Unpack lanes -> (T,B,C,N), then the same raw reshape as the reference.
    out = jnp.transpose(out.reshape(T, C, B, N), (0, 2, 1, 3))
    return out.reshape(T, B, C, W, H)


# --------------------------- pure-JAX reference -----------------------------


def _lif_multistep(x_seq):
    def step(v, xx):
        h = v + (xx - v) / TAU
        s = (h >= V_THRESHOLD).astype(jnp.float32)
        return h * (1.0 - s), s
    _, s_seq = jax.lax.scan(step, jnp.zeros_like(x_seq[0]), x_seq)
    return s_seq


def reference_forward(x, params, num_heads):
    T, B, C, H, W = x.shape
    N = H * W
    d = C // num_heads
    hp = jax.lax.Precision.HIGHEST
    xf = x.reshape(T, B, C, N)

    def conv_bn(xin, w, prefix, conv_bias=None):
        y = jnp.einsum("oc,tbcn->tbon", w, xin, precision=hp)
        if conv_bias is not None:
            y = y + conv_bias[None, None, :, None]
        g, be = params[prefix + "_gamma"], params[prefix + "_beta"]
        mu, var = params[prefix + "_mean"], params[prefix + "_var"]
        sc = g / jnp.sqrt(var + BN_EPS)
        return y * sc[None, None, :, None] + (be - mu * sc)[None, None, :, None]

    def to_heads(s):   # (T,B,C,N) -> (T,B,heads,N,d)
        s = jnp.transpose(s, (0, 1, 3, 2)).reshape(T, B, N, num_heads, d)
        return jnp.transpose(s, (0, 1, 3, 2, 4))

    q = to_heads(_lif_multistep(conv_bn(xf, params["q_conv_w"], "q_bn")))
    k = to_heads(_lif_multistep(conv_bn(xf, params["k_conv_w"], "k_bn")))
    v = to_heads(_lif_multistep(conv_bn(xf, params["v_conv_w"], "v_bn")))

    kv = jnp.einsum("tbhnd,tbhne->tbhde", k, v, precision=hp)
    att = jnp.einsum("tbhnd,tbhde->tbhne", q, kv, precision=hp) * ATTN_SCALE
    att = jnp.transpose(att, (0, 1, 2, 4, 3)).reshape(T, B, C, N)
    att = _lif_multistep(att)

    p = conv_bn(att, params["proj_conv_w"], "proj_bn", params["proj_conv_b"])
    p = _lif_multistep(p.reshape(T * B, C, N))           # proj_lif steps over T*B
    return p.reshape(T, B, C, W, H)


# --------------------------------- params -----------------------------------


def init_params(key, dim):
    """Deterministic parameter init matching the module's __init__ shapes."""
    ks = jax.random.split(key, 21)
    bound = 1.0 / (dim ** 0.5)
    p = {}
    i = 0
    for nm in ("q", "k", "v", "proj"):
        p[nm + "_conv_w"] = jax.random.uniform(ks[i], (dim, dim), jnp.float32, -bound, bound); i += 1
        p[nm + "_bn_gamma"] = jax.random.uniform(ks[i], (dim,), jnp.float32, 0.5, 1.5); i += 1
        p[nm + "_bn_beta"] = jax.random.uniform(ks[i], (dim,), jnp.float32, -0.2, 0.2); i += 1
        p[nm + "_bn_mean"] = jax.random.normal(ks[i], (dim,), jnp.float32) * 0.1; i += 1
        p[nm + "_bn_var"] = jax.random.uniform(ks[i], (dim,), jnp.float32, 0.5, 1.5); i += 1
    p["proj_conv_b"] = jax.random.uniform(ks[i], (dim,), jnp.float32, -bound, bound)
    return p


if __name__ == "__main__":
    T, B, C, H, W = 4, 2, 32, 8, 8       # dim=32, N=H*W=64, B*N=128 (lane-dense)
    num_heads = 8                         # head_dim = 4

    key = jax.random.PRNGKey(0)
    kx, kp = jax.random.split(key)
    x = jax.random.normal(kx, (T, B, C, H, W), jnp.float32)
    params = init_params(kp, C)

    out = spiking_self_attention_forward(x, params, num_heads)
    out = jax.block_until_ready(out)
    assert out.shape == (T, B, C, W, H)
    assert out.dtype == jnp.float32
    assert bool(jnp.all((out == 0.0) | (out == 1.0)))    # output must be spikes

    # Pure-JAX reference check.  Tolerant: an f32-rounding-level difference landing
    # exactly on the LIF threshold can flip isolated spikes (and cascade a little);
    # a structural bug would decorrelate ~half the spikes.
    ref = reference_forward(x, params, num_heads)
    mismatch = float(jnp.mean((out != ref).astype(jnp.float32)))
    assert mismatch < 0.2, f"spike mismatch fraction {mismatch}"

    print("KERNEL_OK")
</pallas_src>

<mosaic_0001>
module attributes {stable_mosaic.version = 11 : i64} {
  func.func @_ssa_fused_kernel(%arg0: memref<4x32x128xf32, #tpu.memory_space<vmem>>, %arg1: memref<96x32xf32, #tpu.memory_space<vmem>>, %arg2: memref<96x1xf32, #tpu.memory_space<vmem>>, %arg3: memref<32x32xf32, #tpu.memory_space<vmem>>, %arg4: memref<32x1xf32, #tpu.memory_space<vmem>>, %arg5: memref<32x32xf32, #tpu.memory_space<vmem>>, %arg6: memref<4x32x128xf32, #tpu.memory_space<vmem>>) attributes {dimension_semantics = [], scalar_prefetch = 0 : i64, scratch_operands = 0 : i64, tpu.core_type = #tpu.core_type<tc>} {
    %c0 = arith.constant 0 : index
    %c0_0 = arith.constant 0 : index
    %0 = vector.load %arg1[%c0, %c0_0] : memref<96x32xf32, #tpu.memory_space<vmem>>, vector<96x32xf32>
    %c0_1 = arith.constant 0 : index
    %c0_2 = arith.constant 0 : index
    %1 = vector.load %arg2[%c0_1, %c0_2] : memref<96x1xf32, #tpu.memory_space<vmem>>, vector<96x1xf32>
    %c0_3 = arith.constant 0 : index
    %c0_4 = arith.constant 0 : index
    %2 = vector.load %arg3[%c0_3, %c0_4] : memref<32x32xf32, #tpu.memory_space<vmem>>, vector<32x32xf32>
    %c0_5 = arith.constant 0 : index
    %c0_6 = arith.constant 0 : index
    %3 = vector.load %arg4[%c0_5, %c0_6] : memref<32x1xf32, #tpu.memory_space<vmem>>, vector<32x1xf32>
    %c0_7 = arith.constant 0 : index
    %c0_8 = arith.constant 0 : index
    %4 = vector.load %arg5[%c0_7, %c0_8] : memref<32x32xf32, #tpu.memory_space<vmem>>, vector<32x32xf32>
    %cst = arith.constant 0.000000e+00 : f32
    %5 = vector.broadcast %cst : f32 to vector<96x128xf32>
    %cst_9 = arith.constant 0.000000e+00 : f32
    %6 = vector.broadcast %cst_9 : f32 to vector<32x128xf32>
    %cst_10 = arith.constant 0.000000e+00 : f32
    %7 = vector.broadcast %cst_10 : f32 to vector<32x64xf32>
    %c0_11 = arith.constant 0 : index
    %c0_12 = arith.constant 0 : index
    %c0_13 = arith.constant 0 : index
    %8 = vector.load %arg0[%c0_11, %c0_12, %c0_13] : memref<4x32x128xf32, #tpu.memory_space<vmem>>, vector<1x32x128xf32>
    %9 = vector.shape_cast %8 : vector<1x32x128xf32> to vector<32x128xf32>
    %cst_14 = arith.constant dense<0.000000e+00> : vector<96x128xf32>
    %10 = tpu.matmul %0, %9, %cst_14 {dimension_numbers = #tpu.dot_dimension_numbers<[1], [0], [0], [1], [0, 0, 1, 1], [], []>} : vector<96x32xf32>, vector<32x128xf32>, vector<96x128xf32> -> vector<96x128xf32>
    %11 = vector.broadcast %1 : vector<96x1xf32> to vector<96x128xf32>
    %12 = arith.addf %10, %11 : vector<96x128xf32>
    %13 = arith.subf %12, %5 : vector<96x128xf32>
    %cst_15 = arith.constant 5.000000e-01 : f32
    %14 = vector.broadcast %cst_15 : f32 to vector<96x128xf32>
    %15 = arith.mulf %13, %14 : vector<96x128xf32>
    %16 = arith.addf %5, %15 : vector<96x128xf32>
    %cst_16 = arith.constant 1.000000e+00 : f32
    %17 = vector.broadcast %cst_16 : f32 to vector<96x128xf32>
    %18 = arith.cmpf oge, %16, %17 : vector<96x128xf32>
    %19 = arith.extui %18 : vector<96x128xi1> to vector<96x128xi32>
    %20 = arith.sitofp %19 : vector<96x128xi32> to vector<96x128xf32>
    %cst_17 = arith.constant 1.000000e+00 : f32
    %21 = vector.broadcast %cst_17 : f32 to vector<96x128xf32>
    %22 = arith.subf %21, %20 : vector<96x128xf32>
    %23 = arith.mulf %16, %22 : vector<96x128xf32>
    %24 = vector.extract_strided_slice %20 {offsets = [0, 0], sizes = [32, 128], strides = [1, 1]} : vector<96x128xf32> to vector<32x128xf32>
    %25 = arith.truncf %24 : vector<32x128xf32> to vector<32x128xbf16>
    %26 = vector.extract_strided_slice %20 {offsets = [32, 0], sizes = [32, 128], strides = [1, 1]} : vector<96x128xf32> to vector<32x128xf32>
    %27 = arith.truncf %26 : vector<32x128xf32> to vector<32x128xbf16>
    %28 = vector.extract_strided_slice %20 {offsets = [64, 0], sizes = [32, 128], strides = [1, 1]} : vector<96x128xf32> to vector<32x128xf32>
    %29 = arith.truncf %28 : vector<32x128xf32> to vector<32x128xbf16>
    %30 = vector.extract_strided_slice %29 {offsets = [0, 0], sizes = [32, 64], strides = [1, 1]} : vector<32x128xbf16> to vector<32x64xbf16>
    %31 = vector.extract_strided_slice %27 {offsets = [0, 0], sizes = [32, 64], strides = [1, 1]} : vector<32x128xbf16> to vector<32x64xbf16>
    %cst_18 = arith.constant dense<0.000000e+00> : vector<32x32xf32>
    %32 = tpu.matmul %30, %31, %cst_18 {dimension_numbers = #tpu.dot_dimension_numbers<[1], [1], [0], [0], [0, 0, 1, 0], [], []>} : vector<32x64xbf16>, vector<32x64xbf16>, vector<32x32xf32> -> vector<32x32xf32>
    %33 = arith.mulf %32, %4 : vector<32x32xf32>
    %34 = arith.truncf %33 : vector<32x32xf32> to vector<32x32xbf16>
    %35 = vector.extract_strided_slice %25 {offsets = [0, 0], sizes = [32, 64], strides = [1, 1]} : vector<32x128xbf16> to vector<32x64xbf16>
    %cst_19 = arith.constant dense<0.000000e+00> : vector<32x64xf32>
    %36 = tpu.matmul %34, %35, %cst_19 {dimension_numbers = #tpu.dot_dimension_numbers<[1], [0], [0], [1], [0, 0, 1, 1], [], []>} : vector<32x32xbf16>, vector<32x64xbf16>, vector<32x64xf32> -> vector<32x64xf32>
    %37 = vector.extract_strided_slice %29 {offsets = [0, 64], sizes = [32, 64], strides = [1, 1]} : vector<32x128xbf16> to vector<32x64xbf16>
    %38 = vector.extract_strided_slice %27 {offsets = [0, 64], sizes = [32, 64], strides = [1, 1]} : vector<32x128xbf16> to vector<32x64xbf16>
    %cst_20 = arith.constant dense<0.000000e+00> : vector<32x32xf32>
    %39 = tpu.matmul %37, %38, %cst_20 {dimension_numbers = #tpu.dot_dimension_numbers<[1], [1], [0], [0], [0, 0, 1, 0], [], []>} : vector<32x64xbf16>, vector<32x64xbf16>, vector<32x32xf32> -> vector<32x32xf32>
    %40 = arith.mulf %39, %4 : vector<32x32xf32>
    %41 = arith.truncf %40 : vector<32x32xf32> to vector<32x32xbf16>
    %42 = vector.extract_strided_slice %25 {offsets = [0, 64], sizes = [32, 64], strides = [1, 1]} : vector<32x128xbf16> to vector<32x64xbf16>
    %cst_21 = arith.constant dense<0.000000e+00> : vector<32x64xf32>
    %43 = tpu.matmul %41, %42, %cst_21 {dimension_numbers = #tpu.dot_dimension_numbers<[1], [0], [0], [1], [0, 0, 1, 1], [], []>} : vector<32x32xbf16>, vector<32x64xbf16>, vector<32x64xf32> -> vector<32x64xf32>
    %44 = tpu.concatenate %36, %43 in 1 : vector<32x64xf32>, vector<32x64xf32> -> vector<32x128xf32>
    %45 = arith.subf %44, %6 : vector<32x128xf32>
    %cst_22 = arith.constant 5.000000e-01 : f32
    %46 = vector.broadcast %cst_22 : f32 to vector<32x128xf32>
    %47 = arith.mulf %45, %46 : vector<32x128xf32>
    %48 = arith.addf %6, %47 : vector<32x128xf32>
    %cst_23 = arith.constant 1.000000e+00 : f32
    %49 = vector.broadcast %cst_23 : f32 to vector<32x128xf32>
    %50 = arith.cmpf oge, %48, %49 : vector<32x128xf32>
    %51 = arith.extui %50 : vector<32x128xi1> to vector<32x128xi32>
    %52 = arith.sitofp %51 : vector<32x128xi32> to vector<32x128xf32>
    %cst_24 = arith.constant 1.000000e+00 : f32
    %53 = vector.broadcast %cst_24 : f32 to vector<32x128xf32>
    %54 = arith.subf %53, %52 : vector<32x128xf32>
    %55 = arith.mulf %48, %54 : vector<32x128xf32>
    %cst_25 = arith.constant dense<0.000000e+00> : vector<32x128xf32>
    %56 = tpu.matmul %2, %52, %cst_25 {dimension_numbers = #tpu.dot_dimension_numbers<[1], [0], [0], [1], [0, 0, 1, 1], [], []>} : vector<32x32xf32>, vector<32x128xf32>, vector<32x128xf32> -> vector<32x128xf32>
    %57 = vector.broadcast %3 : vector<32x1xf32> to vector<32x128xf32>
    %58 = arith.addf %56, %57 : vector<32x128xf32>
    %59 = vector.extract_strided_slice %58 {offsets = [0, 0], sizes = [32, 64], strides = [1, 1]} : vector<32x128xf32> to vector<32x64xf32>
    %60 = arith.subf %59, %7 : vector<32x64xf32>
    %cst_26 = arith.constant 5.000000e-01 : f32
    %61 = vector.broadcast %cst_26 : f32 to vector<32x64xf32>
    %62 = arith.mulf %60, %61 : vector<32x64xf32>
    %63 = arith.addf %7, %62 : vector<32x64xf32>
    %cst_27 = arith.constant 1.000000e+00 : f32
    %64 = vector.broadcast %cst_27 : f32 to vector<32x64xf32>
    %65 = arith.cmpf oge, %63, %64 : vector<32x64xf32>
    %66 = arith.extui %65 : vector<32x64xi1> to vector<32x64xi32>
    %67 = arith.sitofp %66 : vector<32x64xi32> to vector<32x64xf32>
    %cst_28 = arith.constant 1.000000e+00 : f32
    %68 = vector.broadcast %cst_28 : f32 to vector<32x64xf32>
    %69 = arith.subf %68, %67 : vector<32x64xf32>
    %70 = arith.mulf %63, %69 : vector<32x64xf32>
    %71 = vector.extract_strided_slice %58 {offsets = [0, 64], sizes = [32, 64], strides = [1, 1]} : vector<32x128xf32> to vector<32x64xf32>
    %72 = arith.subf %71, %70 : vector<32x64xf32>
    %cst_29 = arith.constant 5.000000e-01 : f32
    %73 = vector.broadcast %cst_29 : f32 to vector<32x64xf32>
    %74 = arith.mulf %72, %73 : vector<32x64xf32>
    %75 = arith.addf %70, %74 : vector<32x64xf32>
    %cst_30 = arith.constant 1.000000e+00 : f32
    %76 = vector.broadcast %cst_30 : f32 to vector<32x64xf32>
    %77 = arith.cmpf oge, %75, %76 : vector<32x64xf32>
    %78 = arith.extui %77 : vector<32x64xi1> to vector<32x64xi32>
    %79 = arith.sitofp %78 : vector<32x64xi32> to vector<32x64xf32>
    %cst_31 = arith.constant 1.000000e+00 : f32
    %80 = vector.broadcast %cst_31 : f32 to vector<32x64xf32>
    %81 = arith.subf %80, %79 : vector<32x64xf32>
    %82 = arith.mulf %75, %81 : vector<32x64xf32>
    %83 = tpu.concatenate %67, %79 in 1 : vector<32x64xf32>, vector<32x64xf32> -> vector<32x128xf32>
    %c0_32 = arith.constant 0 : index
    %c0_33 = arith.constant 0 : index
    %c0_34 = arith.constant 0 : index
    %84 = vector.load %arg6[%c0_32, %c0_33, %c0_34] : memref<4x32x128xf32, #tpu.memory_space<vmem>>, vector<1x32x128xf32>
    %85 = vector.shape_cast %84 : vector<1x32x128xf32> to vector<32x128xf32>
    %86 = vector.shape_cast %83 : vector<32x128xf32> to vector<1x32x128xf32>
    tpu.vector_store %arg6[%c0_32, %c0_33, %c0_34], %86 {strides = array<i32>} : memref<4x32x128xf32, #tpu.memory_space<vmem>>, vector<1x32x128xf32>,
    %c1 = arith.constant 1 : index
    %c0_35 = arith.constant 0 : index
    %c0_36 = arith.constant 0 : index
    %87 = vector.load %arg0[%c1, %c0_35, %c0_36] : memref<4x32x128xf32, #tpu.memory_space<vmem>>, vector<1x32x128xf32>
    %88 = vector.shape_cast %87 : vector<1x32x128xf32> to vector<32x128xf32>
    %cst_37 = arith.constant dense<0.000000e+00> : vector<96x128xf32>
    %89 = tpu.matmul %0, %88, %cst_37 {dimension_numbers = #tpu.dot_dimension_numbers<[1], [0], [0], [1], [0, 0, 1, 1], [], []>} : vector<96x32xf32>, vector<32x128xf32>, vector<96x128xf32> -> vector<96x128xf32>
    %90 = vector.broadcast %1 : vector<96x1xf32> to vector<96x128xf32>
    %91 = arith.addf %89, %90 : vector<96x128xf32>
    %92 = arith.subf %91, %23 : vector<96x128xf32>
    %cst_38 = arith.constant 5.000000e-01 : f32
    %93 = vector.broadcast %cst_38 : f32 to vector<96x128xf32>
    %94 = arith.mulf %92, %93 : vector<96x128xf32>
    %95 = arith.addf %23, %94 : vector<96x128xf32>
    %cst_39 = arith.constant 1.000000e+00 : f32
    %96 = vector.broadcast %cst_39 : f32 to vector<96x128xf32>
    %97 = arith.cmpf oge, %95, %96 : vector<96x128xf32>
    %98 = arith.extui %97 : vector<96x128xi1> to vector<96x128xi32>
    %99 = arith.sitofp %98 : vector<96x128xi32> to vector<96x128xf32>
    %cst_40 = arith.constant 1.000000e+00 : f32
    %100 = vector.broadcast %cst_40 : f32 to vector<96x128xf32>
    %101 = arith.subf %100, %99 : vector<96x128xf32>
    %102 = arith.mulf %95, %101 : vector<96x128xf32>
    %103 = vector.extract_strided_slice %99 {offsets = [0, 0], sizes = [32, 128], strides = [1, 1]} : vector<96x128xf32> to vector<32x128xf32>
    %104 = arith.truncf %103 : vector<32x128xf32> to vector<32x128xbf16>
    %105 = vector.extract_strided_slice %99 {offsets = [32, 0], sizes = [32, 128], strides = [1, 1]} : vector<96x128xf32> to vector<32x128xf32>
    %106 = arith.truncf %105 : vector<32x128xf32> to vector<32x128xbf16>
    %107 = vector.extract_strided_slice %99 {offsets = [64, 0], sizes = [32, 128], strides = [1, 1]} : vector<96x128xf32> to vector<32x128xf32>
    %108 = arith.truncf %107 : vector<32x128xf32> to vector<32x128xbf16>
    %109 = vector.extract_strided_slice %108 {offsets = [0, 0], sizes = [32, 64], strides = [1, 1]} : vector<32x128xbf16> to vector<32x64xbf16>
    %110 = vector.extract_strided_slice %106 {offsets = [0, 0], sizes = [32, 64], strides = [1, 1]} : vector<32x128xbf16> to vector<32x64xbf16>
    %cst_41 = arith.constant dense<0.000000e+00> : vector<32x32xf32>
    %111 = tpu.matmul %109, %110, %cst_41 {dimension_numbers = #tpu.dot_dimension_numbers<[1], [1], [0], [0], [0, 0, 1, 0], [], []>} : vector<32x64xbf16>, vector<32x64xbf16>, vector<32x32xf32> -> vector<32x32xf32>
    %112 = arith.mulf %111, %4 : vector<32x32xf32>
    %113 = arith.truncf %112 : vector<32x32xf32> to vector<32x32xbf16>
    %114 = vector.extract_strided_slice %104 {offsets = [0, 0], sizes = [32, 64], strides = [1, 1]} : vector<32x128xbf16> to vector<32x64xbf16>
    %cst_42 = arith.constant dense<0.000000e+00> : vector<32x64xf32>
    %115 = tpu.matmul %113, %114, %cst_42 {dimension_numbers = #tpu.dot_dimension_numbers<[1], [0], [0], [1], [0, 0, 1, 1], [], []>} : vector<32x32xbf16>, vector<32x64xbf16>, vector<32x64xf32> -> vector<32x64xf32>
    %116 = vector.extract_strided_slice %108 {offsets = [0, 64], sizes = [32, 64], strides = [1, 1]} : vector<32x128xbf16> to vector<32x64xbf16>
    %117 = vector.extract_strided_slice %106 {offsets = [0, 64], sizes = [32, 64], strides = [1, 1]} : vector<32x128xbf16> to vector<32x64xbf16>
    %cst_43 = arith.constant dense<0.000000e+00> : vector<32x32xf32>
    %118 = tpu.matmul %116, %117, %cst_43 {dimension_numbers = #tpu.dot_dimension_numbers<[1], [1], [0], [0], [0, 0, 1, 0], [], []>} : vector<32x64xbf16>, vector<32x64xbf16>, vector<32x32xf32> -> vector<32x32xf32>
    %119 = arith.mulf %118, %4 : vector<32x32xf32>
    %120 = arith.truncf %119 : vector<32x32xf32> to vector<32x32xbf16>
    %121 = vector.extract_strided_slice %104 {offsets = [0, 64], sizes = [32, 64], strides = [1, 1]} : vector<32x128xbf16> to vector<32x64xbf16>
    %cst_44 = arith.constant dense<0.000000e+00> : vector<32x64xf32>
    %122 = tpu.matmul %120, %121, %cst_44 {dimension_numbers = #tpu.dot_dimension_numbers<[1], [0], [0], [1], [0, 0, 1, 1], [], []>} : vector<32x32xbf16>, vector<32x64xbf16>, vector<32x64xf32> -> vector<32x64xf32>
    %123 = tpu.concatenate %115, %122 in 1 : vector<32x64xf32>, vector<32x64xf32> -> vector<32x128xf32>
    %124 = arith.subf %123, %55 : vector<32x128xf32>
    %cst_45 = arith.constant 5.000000e-01 : f32
    %125 = vector.broadcast %cst_45 : f32 to vector<32x128xf32>
    %126 = arith.mulf %124, %125 : vector<32x128xf32>
    %127 = arith.addf %55, %126 : vector<32x128xf32>
    %cst_46 = arith.constant 1.000000e+00 : f32
    %128 = vector.broadcast %cst_46 : f32 to vector<32x128xf32>
    %129 = arith.cmpf oge, %127, %128 : vector<32x128xf32>
    %130 = arith.extui %129 : vector<32x128xi1> to vector<32x128xi32>
    %131 = arith.sitofp %130 : vector<32x128xi32> to vector<32x128xf32>
    %cst_47 = arith.constant 1.000000e+00 : f32
    %132 = vector.broadcast %cst_47 : f32 to vector<32x128xf32>
    %133 = arith.subf %132, %131 : vector<32x128xf32>
    %134 = arith.mulf %127, %133 : vector<32x128xf32>
    %cst_48 = arith.constant dense<0.000000e+00> : vector<32x128xf32>
    %135 = tpu.matmul %2, %131, %cst_48 {dimension_numbers = #tpu.dot_dimension_numbers<[1], [0], [0], [1], [0, 0, 1, 1], [], []>} : vector<32x32xf32>, vector<32x128xf32>, vector<32x128xf32> -> vector<32x128xf32>
    %136 = vector.broadcast %3 : vector<32x1xf32> to vector<32x128xf32>
    %137 = arith.addf %135, %136 : vector<32x128xf32>
    %138 = vector.extract_strided_slice %137 {offsets = [0, 0], sizes = [32, 64], strides = [1, 1]} : vector<32x128xf32> to vector<32x64xf32>
    %139 = arith.subf %138, %82 : vector<32x64xf32>
    %cst_49 = arith.constant 5.000000e-01 : f32
    %140 = vector.broadcast %cst_49 : f32 to vector<32x64xf32>
    %141 = arith.mulf %139, %140 : vector<32x64xf32>
    %142 = arith.addf %82, %141 : vector<32x64xf32>
    %cst_50 = arith.constant 1.000000e+00 : f32
    %143 = vector.broadcast %cst_50 : f32 to vector<32x64xf32>
    %144 = arith.cmpf oge, %142, %143 : vector<32x64xf32>
    %145 = arith.extui %144 : vector<32x64xi1> to vector<32x64xi32>
    %146 = arith.sitofp %145 : vector<32x64xi32> to vector<32x64xf32>
    %cst_51 = arith.constant 1.000000e+00 : f32
    %147 = vector.broadcast %cst_51 : f32 to vector<32x64xf32>
    %148 = arith.subf %147, %146 : vector<32x64xf32>
    %149 = arith.mulf %142, %148 : vector<32x64xf32>
    %150 = vector.extract_strided_slice %137 {offsets = [0, 64], sizes = [32, 64], strides = [1, 1]} : vector<32x128xf32> to vector<32x64xf32>
    %151 = arith.subf %150, %149 : vector<32x64xf32>
    %cst_52 = arith.constant 5.000000e-01 : f32
    %152 = vector.broadcast %cst_52 : f32 to vector<32x64xf32>
    %153 = arith.mulf %151, %152 : vector<32x64xf32>
    %154 = arith.addf %149, %153 : vector<32x64xf32>
    %cst_53 = arith.constant 1.000000e+00 : f32
    %155 = vector.broadcast %cst_53 : f32 to vector<32x64xf32>
    %156 = arith.cmpf oge, %154, %155 : vector<32x64xf32>
    %157 = arith.extui %156 : vector<32x64xi1> to vector<32x64xi32>
    %158 = arith.sitofp %157 : vector<32x64xi32> to vector<32x64xf32>
    %cst_54 = arith.constant 1.000000e+00 : f32
    %159 = vector.broadcast %cst_54 : f32 to vector<32x64xf32>
    %160 = arith.subf %159, %158 : vector<32x64xf32>
    %161 = arith.mulf %154, %160 : vector<32x64xf32>
    %162 = tpu.concatenate %146, %158 in 1 : vector<32x64xf32>, vector<32x64xf32> -> vector<32x128xf32>
    %c1_55 = arith.constant 1 : index
    %c0_56 = arith.constant 0 : index
    %c0_57 = arith.constant 0 : index
    %163 = vector.load %arg6[%c1_55, %c0_56, %c0_57] : memref<4x32x128xf32, #tpu.memory_space<vmem>>, vector<1x32x128xf32>
    %164 = vector.shape_cast %163 : vector<1x32x128xf32> to vector<32x128xf32>
    %165 = vector.shape_cast %162 : vector<32x128xf32> to vector<1x32x128xf32>
    tpu.vector_store %arg6[%c1_55, %c0_56, %c0_57], %165 {strides = array<i32>} : memref<4x32x128xf32, #tpu.memory_space<vmem>>, vector<1x32x128xf32>,
    %c2 = arith.constant 2 : index
    %c0_58 = arith.constant 0 : index
    %c0_59 = arith.constant 0 : index
    %166 = vector.load %arg0[%c2, %c0_58, %c0_59] : memref<4x32x128xf32, #tpu.memory_space<vmem>>, vector<1x32x128xf32>
    %167 = vector.shape_cast %166 : vector<1x32x128xf32> to vector<32x128xf32>
    %cst_60 = arith.constant dense<0.000000e+00> : vector<96x128xf32>
    %168 = tpu.matmul %0, %167, %cst_60 {dimension_numbers = #tpu.dot_dimension_numbers<[1], [0], [0], [1], [0, 0, 1, 1], [], []>} : vector<96x32xf32>, vector<32x128xf32>, vector<96x128xf32> -> vector<96x128xf32>
    %169 = vector.broadcast %1 : vector<96x1xf32> to vector<96x128xf32>
    %170 = arith.addf %168, %169 : vector<96x128xf32>
    %171 = arith.subf %170, %102 : vector<96x128xf32>
    %cst_61 = arith.constant 5.000000e-01 : f32
    %172 = vector.broadcast %cst_61 : f32 to vector<96x128xf32>
    %173 = arith.mulf %171, %172 : vector<96x128xf32>
    %174 = arith.addf %102, %173 : vector<96x128xf32>
    %cst_62 = arith.constant 1.000000e+00 : f32
    %175 = vector.broadcast %cst_62 : f32 to vector<96x128xf32>
    %176 = arith.cmpf oge, %174, %175 : vector<96x128xf32>
    %177 = arith.extui %176 : vector<96x128xi1> to vector<96x128xi32>
    %178 = arith.sitofp %177 : vector<96x128xi32> to vector<96x128xf32>
    %cst_63 = arith.constant 1.000000e+00 : f32
    %179 = vector.broadcast %cst_63 : f32 to vector<96x128xf32>
    %180 = arith.subf %179, %178 : vector<96x128xf32>
    %181 = arith.mulf %174, %180 : vector<96x128xf32>
    %182 = vector.extract_strided_slice %178 {offsets = [0, 0], sizes = [32, 128], strides = [1, 1]} : vector<96x128xf32> to vector<32x128xf32>
    %183 = arith.truncf %182 : vector<32x128xf32> to vector<32x128xbf16>
    %184 = vector.extract_strided_slice %178 {offsets = [32, 0], sizes = [32, 128], strides = [1, 1]} : vector<96x128xf32> to vector<32x128xf32>
    %185 = arith.truncf %184 : vector<32x128xf32> to vector<32x128xbf16>
    %186 = vector.extract_strided_slice %178 {offsets = [64, 0], sizes = [32, 128], strides = [1, 1]} : vector<96x128xf32> to vector<32x128xf32>
    %187 = arith.truncf %186 : vector<32x128xf32> to vector<32x128xbf16>
    %188 = vector.extract_strided_slice %187 {offsets = [0, 0], sizes = [32, 64], strides = [1, 1]} : vector<32x128xbf16> to vector<32x64xbf16>
    %189 = vector.extract_strided_slice %185 {offsets = [0, 0], sizes = [32, 64], strides = [1, 1]} : vector<32x128xbf16> to vector<32x64xbf16>
    %cst_64 = arith.constant dense<0.000000e+00> : vector<32x32xf32>
    %190 = tpu.matmul %188, %189, %cst_64 {dimension_numbers = #tpu.dot_dimension_numbers<[1], [1], [0], [0], [0, 0, 1, 0], [], []>} : vector<32x64xbf16>, vector<32x64xbf16>, vector<32x32xf32> -> vector<32x32xf32>
    %191 = arith.mulf %190, %4 : vector<32x32xf32>
    %192 = arith.truncf %191 : vector<32x32xf32> to vector<32x32xbf16>
    %193 = vector.extract_strided_slice %183 {offsets = [0, 0], sizes = [32, 64], strides = [1, 1]} : vector<32x128xbf16> to vector<32x64xbf16>
    %cst_65 = arith.constant dense<0.000000e+00> : vector<32x64xf32>
    %194 = tpu.matmul %192, %193, %cst_65 {dimension_numbers = #tpu.dot_dimension_numbers<[1], [0], [0], [1], [0, 0, 1, 1], [], []>} : vector<32x32xbf16>, vector<32x64xbf16>, vector<32x64xf32> -> vector<32x64xf32>
    %195 = vector.extract_strided_slice %187 {offsets = [0, 64], sizes = [32, 64], strides = [1, 1]} : vector<32x128xbf16> to vector<32x64xbf16>
    %196 = vector.extract_strided_slice %185 {offsets = [0, 64], sizes = [32, 64], strides = [1, 1]} : vector<32x128xbf16> to vector<32x64xbf16>
    %cst_66 = arith.constant dense<0.000000e+00> : vector<32x32xf32>
    %197 = tpu.matmul %195, %196, %cst_66 {dimension_numbers = #tpu.dot_dimension_numbers<[1], [1], [0], [0], [0, 0, 1, 0], [], []>} : vector<32x64xbf16>, vector<32x64xbf16>, vector<32x32xf32> -> vector<32x32xf32>
    %198 = arith.mulf %197, %4 : vector<32x32xf32>
    %199 = arith.truncf %198 : vector<32x32xf32> to vector<32x32xbf16>
    %200 = vector.extract_strided_slice %183 {offsets = [0, 64], sizes = [32, 64], strides = [1, 1]} : vector<32x128xbf16> to vector<32x64xbf16>
    %cst_67 = arith.constant dense<0.000000e+00> : vector<32x64xf32>
    %201 = tpu.matmul %199, %200, %cst_67 {dimension_numbers = #tpu.dot_dimension_numbers<[1], [0], [0], [1], [0, 0, 1, 1], [], []>} : vector<32x32xbf16>, vector<32x64xbf16>, vector<32x64xf32> -> vector<32x64xf32>
    %202 = tpu.concatenate %194, %201 in 1 : vector<32x64xf32>, vector<32x64xf32> -> vector<32x128xf32>
    %203 = arith.subf %202, %134 : vector<32x128xf32>
    %cst_68 = arith.constant 5.000000e-01 : f32
    %204 = vector.broadcast %cst_68 : f32 to vector<32x128xf32>
    %205 = arith.mulf %203, %204 : vector<32x128xf32>
    %206 = arith.addf %134, %205 : vector<32x128xf32>
    %cst_69 = arith.constant 1.000000e+00 : f32
    %207 = vector.broadcast %cst_69 : f32 to vector<32x128xf32>
    %208 = arith.cmpf oge, %206, %207 : vector<32x128xf32>
    %209 = arith.extui %208 : vector<32x128xi1> to vector<32x128xi32>
    %210 = arith.sitofp %209 : vector<32x128xi32> to vector<32x128xf32>
    %cst_70 = arith.constant 1.000000e+00 : f32
    %211 = vector.broadcast %cst_70 : f32 to vector<32x128xf32>
    %212 = arith.subf %211, %210 : vector<32x128xf32>
    %213 = arith.mulf %206, %212 : vector<32x128xf32>
    %cst_71 = arith.constant dense<0.000000e+00> : vector<32x128xf32>
    %214 = tpu.matmul %2, %210, %cst_71 {dimension_numbers = #tpu.dot_dimension_numbers<[1], [0], [0], [1], [0, 0, 1, 1], [], []>} : vector<32x32xf32>, vector<32x128xf32>, vector<32x128xf32> -> vector<32x128xf32>
    %215 = vector.broadcast %3 : vector<32x1xf32> to vector<32x128xf32>
    %216 = arith.addf %214, %215 : vector<32x128xf32>
    %217 = vector.extract_strided_slice %216 {offsets = [0, 0], sizes = [32, 64], strides = [1, 1]} : vector<32x128xf32> to vector<32x64xf32>
    %218 = arith.subf %217, %161 : vector<32x64xf32>
    %cst_72 = arith.constant 5.000000e-01 : f32
    %219 = vector.broadcast %cst_72 : f32 to vector<32x64xf32>
    %220 = arith.mulf %218, %219 : vector<32x64xf32>
    %221 = arith.addf %161, %220 : vector<32x64xf32>
    %cst_73 = arith.constant 1.000000e+00 : f32
    %222 = vector.broadcast %cst_73 : f32 to vector<32x64xf32>
    %223 = arith.cmpf oge, %221, %222 : vector<32x64xf32>
    %224 = arith.extui %223 : vector<32x64xi1> to vector<32x64xi32>
    %225 = arith.sitofp %224 : vector<32x64xi32> to vector<32x64xf32>
    %cst_74 = arith.constant 1.000000e+00 : f32
    %226 = vector.broadcast %cst_74 : f32 to vector<32x64xf32>
    %227 = arith.subf %226, %225 : vector<32x64xf32>
    %228 = arith.mulf %221, %227 : vector<32x64xf32>
    %229 = vector.extract_strided_slice %216 {offsets = [0, 64], sizes = [32, 64], strides = [1, 1]} : vector<32x128xf32> to vector<32x64xf32>
    %230 = arith.subf %229, %228 : vector<32x64xf32>
    %cst_75 = arith.constant 5.000000e-01 : f32
    %231 = vector.broadcast %cst_75 : f32 to vector<32x64xf32>
    %232 = arith.mulf %230, %231 : vector<32x64xf32>
    %233 = arith.addf %228, %232 : vector<32x64xf32>
    %cst_76 = arith.constant 1.000000e+00 : f32
    %234 = vector.broadcast %cst_76 : f32 to vector<32x64xf32>
    %235 = arith.cmpf oge, %233, %234 : vector<32x64xf32>
    %236 = arith.extui %235 : vector<32x64xi1> to vector<32x64xi32>
    %237 = arith.sitofp %236 : vector<32x64xi32> to vector<32x64xf32>
    %cst_77 = arith.constant 1.000000e+00 : f32
    %238 = vector.broadcast %cst_77 : f32 to vector<32x64xf32>
    %239 = arith.subf %238, %237 : vector<32x64xf32>
    %240 = arith.mulf %233, %239 : vector<32x64xf32>
    %241 = tpu.concatenate %225, %237 in 1 : vector<32x64xf32>, vector<32x64xf32> -> vector<32x128xf32>
    %c2_78 = arith.constant 2 : index
    %c0_79 = arith.constant 0 : index
    %c0_80 = arith.constant 0 : index
    %242 = vector.load %arg6[%c2_78, %c0_79, %c0_80] : memref<4x32x128xf32, #tpu.memory_space<vmem>>, vector<1x32x128xf32>
    %243 = vector.shape_cast %242 : vector<1x32x128xf32> to vector<32x128xf32>
    %244 = vector.shape_cast %241 : vector<32x128xf32> to vector<1x32x128xf32>
    tpu.vector_store %arg6[%c2_78, %c0_79, %c0_80], %244 {strides = array<i32>} : memref<4x32x128xf32, #tpu.memory_space<vmem>>, vector<1x32x128xf32>,
    %c3 = arith.constant 3 : index
    %c0_81 = arith.constant 0 : index
    %c0_82 = arith.constant 0 : index
    %245 = vector.load %arg0[%c3, %c0_81, %c0_82] : memref<4x32x128xf32, #tpu.memory_space<vmem>>, vector<1x32x128xf32>
    %246 = vector.shape_cast %245 : vector<1x32x128xf32> to vector<32x128xf32>
    %cst_83 = arith.constant dense<0.000000e+00> : vector<96x128xf32>
    %247 = tpu.matmul %0, %246, %cst_83 {dimension_numbers = #tpu.dot_dimension_numbers<[1], [0], [0], [1], [0, 0, 1, 1], [], []>} : vector<96x32xf32>, vector<32x128xf32>, vector<96x128xf32> -> vector<96x128xf32>
    %248 = vector.broadcast %1 : vector<96x1xf32> to vector<96x128xf32>
    %249 = arith.addf %247, %248 : vector<96x128xf32>
    %250 = arith.subf %249, %181 : vector<96x128xf32>
    %cst_84 = arith.constant 5.000000e-01 : f32
    %251 = vector.broadcast %cst_84 : f32 to vector<96x128xf32>
    %252 = arith.mulf %250, %251 : vector<96x128xf32>
    %253 = arith.addf %181, %252 : vector<96x128xf32>
    %cst_85 = arith.constant 1.000000e+00 : f32
    %254 = vector.broadcast %cst_85 : f32 to vector<96x128xf32>
    %255 = arith.cmpf oge, %253, %254 : vector<96x128xf32>
    %256 = arith.extui %255 : vector<96x128xi1> to vector<96x128xi32>
    %257 = arith.sitofp %256 : vector<96x128xi32> to vector<96x128xf32>
    %258 = vector.extract_strided_slice %257 {offsets = [0, 0], sizes = [32, 128], strides = [1, 1]} : vector<96x128xf32> to vector<32x128xf32>
    %259 = arith.truncf %258 : vector<32x128xf32> to vector<32x128xbf16>
    %260 = vector.extract_strided_slice %257 {offsets = [32, 0], sizes = [32, 128], strides = [1, 1]} : vector<96x128xf32> to vector<32x128xf32>
    %261 = arith.truncf %260 : vector<32x128xf32> to vector<32x128xbf16>
    %262 = vector.extract_strided_slice %257 {offsets = [64, 0], sizes = [32, 128], strides = [1, 1]} : vector<96x128xf32> to vector<32x128xf32>
    %263 = arith.truncf %262 : vector<32x128xf32> to vector<32x128xbf16>
    %264 = vector.extract_strided_slice %263 {offsets = [0, 0], sizes = [32, 64], strides = [1, 1]} : vector<32x128xbf16> to vector<32x64xbf16>
    %265 = vector.extract_strided_slice %261 {offsets = [0, 0], sizes = [32, 64], strides = [1, 1]} : vector<32x128xbf16> to vector<32x64xbf16>
    %cst_86 = arith.constant dense<0.000000e+00> : vector<32x32xf32>
    %266 = tpu.matmul %264, %265, %cst_86 {dimension_numbers = #tpu.dot_dimension_numbers<[1], [1], [0], [0], [0, 0, 1, 0], [], []>} : vector<32x64xbf16>, vector<32x64xbf16>, vector<32x32xf32> -> vector<32x32xf32>
    %267 = arith.mulf %266, %4 : vector<32x32xf32>
    %268 = arith.truncf %267 : vector<32x32xf32> to vector<32x32xbf16>
    %269 = vector.extract_strided_slice %259 {offsets = [0, 0], sizes = [32, 64], strides = [1, 1]} : vector<32x128xbf16> to vector<32x64xbf16>
    %cst_87 = arith.constant dense<0.000000e+00> : vector<32x64xf32>
    %270 = tpu.matmul %268, %269, %cst_87 {dimension_numbers = #tpu.dot_dimension_numbers<[1], [0], [0], [1], [0, 0, 1, 1], [], []>} : vector<32x32xbf16>, vector<32x64xbf16>, vector<32x64xf32> -> vector<32x64xf32>
    %271 = vector.extract_strided_slice %263 {offsets = [0, 64], sizes = [32, 64], strides = [1, 1]} : vector<32x128xbf16> to vector<32x64xbf16>
    %272 = vector.extract_strided_slice %261 {offsets = [0, 64], sizes = [32, 64], strides = [1, 1]} : vector<32x128xbf16> to vector<32x64xbf16>
    %cst_88 = arith.constant dense<0.000000e+00> : vector<32x32xf32>
    %273 = tpu.matmul %271, %272, %cst_88 {dimension_numbers = #tpu.dot_dimension_numbers<[1], [1], [0], [0], [0, 0, 1, 0], [], []>} : vector<32x64xbf16>, vector<32x64xbf16>, vector<32x32xf32> -> vector<32x32xf32>
    %274 = arith.mulf %273, %4 : vector<32x32xf32>
    %275 = arith.truncf %274 : vector<32x32xf32> to vector<32x32xbf16>
    %276 = vector.extract_strided_slice %259 {offsets = [0, 64], sizes = [32, 64], strides = [1, 1]} : vector<32x128xbf16> to vector<32x64xbf16>
    %cst_89 = arith.constant dense<0.000000e+00> : vector<32x64xf32>
    %277 = tpu.matmul %275, %276, %cst_89 {dimension_numbers = #tpu.dot_dimension_numbers<[1], [0], [0], [1], [0, 0, 1, 1], [], []>} : vector<32x32xbf16>, vector<32x64xbf16>, vector<32x64xf32> -> vector<32x64xf32>
    %278 = tpu.concatenate %270, %277 in 1 : vector<32x64xf32>, vector<32x64xf32> -> vector<32x128xf32>
    %279 = arith.subf %278, %213 : vector<32x128xf32>
    %cst_90 = arith.constant 5.000000e-01 : f32
    %280 = vector.broadcast %cst_90 : f32 to vector<32x128xf32>
    %281 = arith.mulf %279, %280 : vector<32x128xf32>
    %282 = arith.addf %213, %281 : vector<32x128xf32>
    %cst_91 = arith.constant 1.000000e+00 : f32
    %283 = vector.broadcast %cst_91 : f32 to vector<32x128xf32>
    %284 = arith.cmpf oge, %282, %283 : vector<32x128xf32>
    %285 = arith.extui %284 : vector<32x128xi1> to vector<32x128xi32>
    %286 = arith.sitofp %285 : vector<32x128xi32> to vector<32x128xf32>
    %cst_92 = arith.constant dense<0.000000e+00> : vector<32x128xf32>
    %287 = tpu.matmul %2, %286, %cst_92 {dimension_numbers = #tpu.dot_dimension_numbers<[1], [0], [0], [1], [0, 0, 1, 1], [], []>} : vector<32x32xf32>, vector<32x128xf32>, vector<32x128xf32> -> vector<32x128xf32>
    %288 = vector.broadcast %3 : vector<32x1xf32> to vector<32x128xf32>
    %289 = arith.addf %287, %288 : vector<32x128xf32>
    %290 = vector.extract_strided_slice %289 {offsets = [0, 0], sizes = [32, 64], strides = [1, 1]} : vector<32x128xf32> to vector<32x64xf32>
    %291 = arith.subf %290, %240 : vector<32x64xf32>
    %cst_93 = arith.constant 5.000000e-01 : f32
    %292 = vector.broadcast %cst_93 : f32 to vector<32x64xf32>
    %293 = arith.mulf %291, %292 : vector<32x64xf32>
    %294 = arith.addf %240, %293 : vector<32x64xf32>
    %cst_94 = arith.constant 1.000000e+00 : f32
    %295 = vector.broadcast %cst_94 : f32 to vector<32x64xf32>
    %296 = arith.cmpf oge, %294, %295 : vector<32x64xf32>
    %297 = arith.extui %296 : vector<32x64xi1> to vector<32x64xi32>
    %298 = arith.sitofp %297 : vector<32x64xi32> to vector<32x64xf32>
    %cst_95 = arith.constant 1.000000e+00 : f32
    %299 = vector.broadcast %cst_95 : f32 to vector<32x64xf32>
    %300 = arith.subf %299, %298 : vector<32x64xf32>
    %301 = arith.mulf %294, %300 : vector<32x64xf32>
    %302 = vector.extract_strided_slice %289 {offsets = [0, 64], sizes = [32, 64], strides = [1, 1]} : vector<32x128xf32> to vector<32x64xf32>
    %303 = arith.subf %302, %301 : vector<32x64xf32>
    %cst_96 = arith.constant 5.000000e-01 : f32
    %304 = vector.broadcast %cst_96 : f32 to vector<32x64xf32>
    %305 = arith.mulf %303, %304 : vector<32x64xf32>
    %306 = arith.addf %301, %305 : vector<32x64xf32>
    %cst_97 = arith.constant 1.000000e+00 : f32
    %307 = vector.broadcast %cst_97 : f32 to vector<32x64xf32>
    %308 = arith.cmpf oge, %306, %307 : vector<32x64xf32>
    %309 = arith.extui %308 : vector<32x64xi1> to vector<32x64xi32>
    %310 = arith.sitofp %309 : vector<32x64xi32> to vector<32x64xf32>
    %311 = tpu.concatenate %298, %310 in 1 : vector<32x64xf32>, vector<32x64xf32> -> vector<32x128xf32>
    %c3_98 = arith.constant 3 : index
    %c0_99 = arith.constant 0 : index
    %c0_100 = arith.constant 0 : index
    %312 = vector.load %arg6[%c3_98, %c0_99, %c0_100] : memref<4x32x128xf32, #tpu.memory_space<vmem>>, vector<1x32x128xf32>
    %313 = vector.shape_cast %312 : vector<1x32x128xf32> to vector<32x128xf32>
    %314 = vector.shape_cast %311 : vector<32x128xf32> to vector<1x32x128xf32>
    tpu.vector_store %arg6[%c3_98, %c0_99, %c0_100], %314 {strides = array<i32>} : memref<4x32x128xf32, #tpu.memory_space<vmem>>, vector<1x32x128xf32>,
    return
  }
}

</mosaic_0001>

<llo_original>
// kernel: tpu_custom_call.1
$region0: #{tpu_custom_call.1}
  #allocation0 [shape = 'u32[]', space=smem, size = 0x4, offset = 0x4, fixed_abs, tag = 'smem constant byte address 0x4 - core index']
  #allocation1 [shape = 'u32[144,128]{1,0:T(1,128)}', space=vmem, size = 0x12000, scoped, tag = 'internal scratch']
  %s0 = inlined_call_operand.vmem [shape: f32[4,32,128], index: 0, kind: input, shape index: {}]
  %s1 = inlined_call_operand.vmem [shape: f32[96,32], index: 1, kind: input, shape index: {}]
  %s2 = inlined_call_operand.vmem [shape: f32[96,1], index: 2, kind: input, shape index: {}]
  %s3 = inlined_call_operand.vmem [shape: f32[32,32], index: 3, kind: input, shape index: {}]
  %s4 = inlined_call_operand.vmem [shape: f32[32,1], index: 4, kind: input, shape index: {}]
  %s5 = inlined_call_operand.vmem [shape: f32[32,32], index: 5, kind: input, shape index: {}]
  %s6 = inlined_call_operand.hbm [shape: f32[4,32,128], index: 6, kind: output, shape index: {}]
  %s7 = sld [smem:[#allocation0]]
  $region34: #{tpu_custom_call.1} parent=0
    _
  %s9 = ssub.s32 1, %s7
  %s10 = scalar_select 0, %s9, %s7
  $region1: #{tpu_custom_call.1} parent=0
    #allocation2 [shape = 'u8[65536]{0}', space=vmem, size = 0x10000, scoped, tag = 'output window, operand 0, single buffered']
    #allocation3 [shape = 's32[1]{0}', space=sflag, size = 0x4, scoped, tag = 'scoped memory for tpu_custom_call.1']
    %11 = vsyncpa [#allocation3], 0
    // Predicated region
    $region2: #{tpu_custom_call.1} parent=1 // pred_check
      _
    $region3: #{tpu_custom_call.1} parent=1 // pred_check_branch
      %13 = sbr.rel (0) target = $region5
    $region4: #{tpu_custom_call.1} parent=1 // pred_region
      _
    $region5: #{tpu_custom_call.1} parent=1 // pred_fallthru
      _
    // Predicated region
    $region6: #{tpu_custom_call.1} parent=1 // pred_check
      _
    $region7: #{tpu_custom_call.1} parent=1 // pred_check_branch
      %15 = sbr.rel (0) target = $region9
    $region8: #{tpu_custom_call.1} parent=1 // pred_region
      _
    $region9: #{tpu_custom_call.1} parent=1 // pred_fallthru
      _
    // Predicated region
    $region10: #{tpu_custom_call.1} parent=1 // pred_check
      _
    $region11: #{tpu_custom_call.1} parent=1 // pred_check_branch
      %17 = sbr.rel (0) target = $region13
    $region12: #{tpu_custom_call.1} parent=1 // pred_region
      _
    $region13: #{tpu_custom_call.1} parent=1 // pred_fallthru
      _
    // Predicated region
    $region14: #{tpu_custom_call.1} parent=1 // pred_check
      _
    $region15: #{tpu_custom_call.1} parent=1 // pred_check_branch
      %19 = sbr.rel (0) target = $region17
    $region16: #{tpu_custom_call.1} parent=1 // pred_region
      _
    $region17: #{tpu_custom_call.1} parent=1 // pred_fallthru
      _
    // Predicated region
    $region18: #{tpu_custom_call.1} parent=1 // pred_check
      _
    $region19: #{tpu_custom_call.1} parent=1 // pred_check_branch
      %21 = sbr.rel (0) target = $region21
    $region20: #{tpu_custom_call.1} parent=1 // pred_region
      _
    $region21: #{tpu_custom_call.1} parent=1 // pred_fallthru
      _
    // Predicated region
    $region22: #{tpu_custom_call.1} parent=1 // pred_check
      _
    $region23: #{tpu_custom_call.1} parent=1 // pred_check_branch
      %23 = sbr.rel (0) target = $region25
    $region24: #{tpu_custom_call.1} parent=1 // pred_region
      _
    $region25: #{tpu_custom_call.1} parent=1 // pred_fallthru
      _
    %v25 = vld [vmem:[%s1] sm:$0xff]
    %v26 = vld [vmem:[%s1 + $0x8] sm:$0xff]
    %v27 = vld [vmem:[%s1 + $0x10] sm:$0xff]
    %v28 = vld [vmem:[%s1 + $0x18] sm:$0xff]
    %v29 = vld [vmem:[%s1 + $0x20] sm:$0xff]
    %v30 = vld [vmem:[%s1 + $0x28] sm:$0xff]
    %v31 = vld [vmem:[%s1 + $0x30] sm:$0xff]
    %v32 = vld [vmem:[%s1 + $0x38] sm:$0xff]
    %v33 = vld [vmem:[%s1 + $0x40] sm:$0xff]
    %v34 = vld [vmem:[%s1 + $0x48] sm:$0xff]
    %v35 = vld [vmem:[%s1 + $0x50] sm:$0xff]
    %v36 = vld [vmem:[%s1 + $0x58] sm:$0xff]
    %v37 = vld [vmem:[%s2] sm:$0xff]
    %v38 = vld [vmem:[%s2 + $0x8] sm:$0xff]
    %v39 = vld [vmem:[%s2 + $0x10] sm:$0xff]
    %v40 = vld [vmem:[%s2 + $0x18] sm:$0xff]
    %v41 = vld [vmem:[%s2 + $0x20] sm:$0xff]
    %v42 = vld [vmem:[%s2 + $0x28] sm:$0xff]
    %v43 = vld [vmem:[%s2 + $0x30] sm:$0xff]
    %v44 = vld [vmem:[%s2 + $0x38] sm:$0xff]
    %v45 = vld [vmem:[%s2 + $0x40] sm:$0xff]
    %v46 = vld [vmem:[%s2 + $0x48] sm:$0xff]
    %v47 = vld [vmem:[%s2 + $0x50] sm:$0xff]
    %v48 = vld [vmem:[%s2 + $0x58] sm:$0xff]
    %v49 = vld [vmem:[%s3] sm:$0xff]
    %v50 = vld [vmem:[%s3 + $0x8] sm:$0xff]
    %v51 = vld [vmem:[%s3 + $0x10] sm:$0xff]
    %v52 = vld [vmem:[%s3 + $0x18] sm:$0xff]
    %v53 = vld [vmem:[%s4] sm:$0xff]
    %v54 = vld [vmem:[%s4 + $0x8] sm:$0xff]
    %v55 = vld [vmem:[%s4 + $0x10] sm:$0xff]
    %v56 = vld [vmem:[%s4 + $0x18] sm:$0xff]
    %v57 = vld [vmem:[%s5] sm:$0xff]
    %v58 = vld [vmem:[%s5 + $0x8] sm:$0xff]
    %v59 = vld [vmem:[%s5 + $0x10] sm:$0xff]
    %v60 = vld [vmem:[%s5 + $0x18] sm:$0xff]
    %v61 = vld [vmem:[%s0] sm:$0xff]
    %v62 = vld [vmem:[%s0 + $0x8] sm:$0xff]
    %v63 = vld [vmem:[%s0 + $0x10] sm:$0xff]
    %v64 = vld [vmem:[%s0 + $0x18] sm:$0xff]
    %66 = vset.pattern.permute.xlu0 0
    %67 = vperm.xlu0 %66, %v37
    %v68 = vpop.permute.xlu0 %67
    %71 = vset.pattern.permute.xlu0 0
    %72 = vperm.xlu0 %71, %v38
    %v73 = vpop.permute.xlu0 %72
    %76 = vset.pattern.permute.xlu0 0
    %77 = vperm.xlu0 %76, %v39
    %v78 = vpop.permute.xlu0 %77
    %81 = vset.pattern.permute.xlu0 0
    %82 = vperm.xlu0 %81, %v40
    %v83 = vpop.permute.xlu0 %82
    %86 = vset.pattern.permute.xlu0 0
    %87 = vperm.xlu0 %86, %v41
    %v88 = vpop.permute.xlu0 %87
    %91 = vset.pattern.permute.xlu0 0
    %92 = vperm.xlu0 %91, %v42
    %v93 = vpop.permute.xlu0 %92
    %96 = vset.pattern.permute.xlu0 0
    %97 = vperm.xlu0 %96, %v43
    %v98 = vpop.permute.xlu0 %97
    %101 = vset.pattern.permute.xlu0 0
    %102 = vperm.xlu0 %101, %v44
    %v103 = vpop.permute.xlu0 %102
    %106 = vset.pattern.permute.xlu0 0
    %107 = vperm.xlu0 %106, %v45
    %v108 = vpop.permute.xlu0 %107
    %111 = vset.pattern.permute.xlu0 0
    %112 = vperm.xlu0 %111, %v46
    %v113 = vpop.permute.xlu0 %112
    %116 = vset.pattern.permute.xlu0 0
    %117 = vperm.xlu0 %116, %v47
    %v118 = vpop.permute.xlu0 %117
    %121 = vset.pattern.permute.xlu0 0
    %122 = vperm.xlu0 %121, %v48
    %v123 = vpop.permute.xlu0 %122
    %vm125 = vcmask 261120
    %v127 = vsel %vm125, %v25, 0
    %v130 = vsel %vm125, %v26, 0
    %v133 = vsel %vm125, %v27, 0
    %v136 = vsel %vm125, %v28, 0
    %v139 = vsel %vm125, %v29, 0
    %v142 = vsel %vm125, %v30, 0
    %v145 = vsel %vm125, %v31, 0
    %v148 = vsel %vm125, %v32, 0
    %v151 = vsel %vm125, %v33, 0
    %v154 = vsel %vm125, %v34, 0
    %v157 = vsel %vm125, %v35, 0
    %v160 = vsel %vm125, %v36, 0
    %162 = vmatprep.subr.mxu0 0.0
    %163 = vmatpush1.msra.mxu0 %v61
    %164 = vmatprep.subr.mxu0 0.0
    %165 = vmatpush1.msra.mxu0 %v62
    %166 = vmatprep.subr.mxu0 0.0
    %167 = vmatpush1.msra.mxu0 %v63
    %168 = vmatprep.subr.mxu0 0.0
    %169 = vmatpush1.msra.mxu0 %v64
    %170 = vmatprep.subr.mxu0 0.0
    %171 = vmatpush1.msra.mxu0 0.0
    %172 = vmatprep.subr.mxu0 0.0
    %173 = vmatpush1.msra.mxu0 0.0
    %174 = vmatprep.subr.mxu0 0.0
    %175 = vmatpush1.msra.mxu0 0.0
    %176 = vmatprep.subr.mxu0 0.0
    %177 = vmatpush1.msra.mxu0 0.0
    %178 = vmatprep.subr.mxu0 0.0
    %179 = vmatpush1.msra.mxu0 0.0
    %180 = vmatprep.subr.mxu0 0.0
    %181 = vmatpush1.msra.mxu0 0.0
    %182 = vmatprep.subr.mxu0 0.0
    %183 = vmatpush1.msra.mxu0 0.0
    %184 = vmatprep.subr.mxu0 0.0
    %185 = vmatpush1.msra.mxu0 0.0
    %186 = vmatprep.subr.mxu0 0.0
    %187 = vmatpush1.msra.mxu0 0.0
    %188 = vmatprep.subr.mxu0 0.0
    %189 = vmatpush1.msra.mxu0 0.0
    %190 = vmatprep.subr.mxu0 0.0
    %191 = vmatpush1.msra.mxu0 0.0
    %192 = vmatprep.subr.mxu0 0.0
    %193 = vmatpush1.msra.mxu0 0.0
    %194 = vmatprep.subr.mxu0 0.0
    %195 = vmatpush1.msra.mxu0 0.0
    %196 = vmatprep.subr.mxu0 0.0
    %197 = vmatpush1.msra.mxu0 0.0
    %198 = vmatprep.subr.mxu0 0.0
    %199 = vmatpush1.msra.mxu0 0.0
    %200 = vmatprep.subr.mxu0 0.0
    %201 = vmatpush1.msra.mxu0 0.0
    %202 = vmatprep.subr.mxu0 0.0
    %203 = vmatpush1.msra.mxu0 0.0
    %204 = vmatprep.subr.mxu0 0.0
    %205 = vmatpush1.msra.mxu0 0.0
    %206 = vmatprep.subr.mxu0 0.0
    %207 = vmatpush1.msra.mxu0 0.0
    %208 = vmatprep.subr.mxu0 0.0
    %209 = vmatpush1.msra.mxu0 0.0
    %210 = vmatprep.subr.mxu0 0.0
    %211 = vmatpush1.msra.mxu0 0.0
    %212 = vmatprep.subr.mxu0 0.0
    %213 = vmatpush1.msra.mxu0 0.0
    %214 = vmatprep.subr.mxu0 0.0
    %215 = vmatpush1.msra.mxu0 0.0
    %216 = vmatprep.subr.mxu0 0.0
    %217 = vmatpush1.msra.mxu0 0.0
    %218 = vmatprep.subr.mxu0 0.0
    %219 = vmatpush1.msra.mxu0 0.0
    %220 = vmatprep.subr.mxu0 0.0
    %221 = vmatpush1.msra.mxu0 0.0
    %222 = vmatprep.subr.mxu0 0.0
    %223 = vmatpush1.msra.mxu0 0.0
    %224 = vmatprep.subr.mxu0 0.0
    %225 = vmatpush1.msra.mxu0 0.0
    %226 = vmatprep.mubr.f32.mxu0 0.0
    %227 = vmatmul.mubr.f32.gmra.mrb[0].mxu0 %v127
    %v228 = vpop.f32.mrb[0].mxu0
    %v229 = vadd.f32 %v68, %v228
    %v230 = vpop.f32.mrb[0].mxu0
    %231 = vmatprep.mubr.f32.mxu0 0.0
    %232 = vmatmul.mubr.f32.gmra.mrb[0].mxu0 %v130
    %v233 = vpop.f32.mrb[0].mxu0
    %v234 = vadd.f32 %v73, %v233
    %v235 = vpop.f32.mrb[0].mxu0
    %236 = vmatprep.mubr.f32.mxu0 0.0
    %237 = vmatmul.mubr.f32.gmra.mrb[0].mxu0 %v133
    %v238 = vpop.f32.mrb[0].mxu0
    %v239 = vadd.f32 %v78, %v238
    %v240 = vpop.f32.mrb[0].mxu0
    %241 = vmatprep.mubr.f32.mxu0 0.0
    %242 = vmatmul.mubr.f32.gmra.mrb[0].mxu0 %v136
    %v243 = vpop.f32.mrb[0].mxu0
    %v244 = vadd.f32 %v83, %v243
    %v245 = vpop.f32.mrb[0].mxu0
    %246 = vmatprep.mubr.f32.mxu0 0.0
    %247 = vmatmul.mubr.f32.gmra.mrb[0].mxu0 %v139
    %v248 = vpop.f32.mrb[0].mxu0
    %v249 = vadd.f32 %v88, %v248
    %v250 = vpop.f32.mrb[0].mxu0
    %251 = vmatprep.mubr.f32.mxu0 0.0
    %252 = vmatmul.mubr.f32.gmra.mrb[0].mxu0 %v142
    %v253 = vpop.f32.mrb[0].mxu0
    %v254 = vadd.f32 %v93, %v253
    %v255 = vpop.f32.mrb[0].mxu0
    %256 = vmatprep.mubr.f32.mxu0 0.0
    %257 = vmatmul.mubr.f32.gmra.mrb[0].mxu0 %v145
    %v258 = vpop.f32.mrb[0].mxu0
    %v259 = vadd.f32 %v98, %v258
    %v260 = vpop.f32.mrb[0].mxu0
    %261 = vmatprep.mubr.f32.mxu0 0.0
    %262 = vmatmul.mubr.f32.gmra.mrb[0].mxu0 %v148
    %v263 = vpop.f32.mrb[0].mxu0
    %v264 = vadd.f32 %v103, %v263
    %v265 = vpop.f32.mrb[0].mxu0
    %266 = vmatprep.mubr.f32.mxu0 0.0
    %267 = vmatmul.mubr.f32.gmra.mrb[0].mxu0 %v151
    %v268 = vpop.f32.mrb[0].mxu0
    %v269 = vadd.f32 %v108, %v268
    %v270 = vpop.f32.mrb[0].mxu0
    %271 = vmatprep.mubr.f32.mxu0 0.0
    %272 = vmatmul.mubr.f32.gmra.mrb[0].mxu0 %v154
    %v273 = vpop.f32.mrb[0].mxu0
    %v274 = vadd.f32 %v113, %v273
    %v275 = vpop.f32.mrb[0].mxu0
    %276 = vmatprep.mubr.f32.mxu0 0.0
    %277 = vmatmul.mubr.f32.gmra.mrb[0].mxu0 %v157
    %v278 = vpop.f32.mrb[0].mxu0
    %v279 = vadd.f32 %v118, %v278
    %v280 = vpop.f32.mrb[0].mxu0
    %281 = vmatprep.mubr.f32.mxu0 0.0
    %282 = vmatmul.mubr.f32.gmra.mrb[0].mxu0 %v160
    %v283 = vpop.f32.mrb[0].mxu0
    %v284 = vadd.f32 %v123, %v283
    %v285 = vpop.f32.mrb[0].mxu0
    %286 = vdwg.mxu0
    %v287 = vmul.f32 %v229, 0.5
    %v288 = vmul.f32 %v234, 0.5
    %v289 = vmul.f32 %v239, 0.5
    %v290 = vmul.f32 %v244, 0.5
    %v291 = vmul.f32 %v249, 0.5
    %v292 = vmul.f32 %v254, 0.5
    %v293 = vmul.f32 %v259, 0.5
    %v294 = vmul.f32 %v264, 0.5
    %v295 = vmul.f32 %v269, 0.5
    %v296 = vmul.f32 %v274, 0.5
    %v297 = vmul.f32 %v279, 0.5
    %v298 = vmul.f32 %v284, 0.5
    %v299 = vadd.f32 %v287, 0.0
    %v300 = vadd.f32 %v288, 0.0
    %v301 = vadd.f32 %v289, 0.0
    %v302 = vadd.f32 %v290, 0.0
    %v303 = vadd.f32 %v291, 0.0
    %v304 = vadd.f32 %v292, 0.0
    %v305 = vadd.f32 %v293, 0.0
    %v306 = vadd.f32 %v294, 0.0
    %v307 = vadd.f32 %v295, 0.0
    %v308 = vadd.f32 %v296, 0.0
    %v309 = vadd.f32 %v297, 0.0
    %v310 = vadd.f32 %v298, 0.0
    %vm311 = vcmp.ge.f32.partialorder %v299, 1.0
    %vm312 = vcmp.ge.f32.partialorder %v300, 1.0
    %vm313 = vcmp.ge.f32.partialorder %v301, 1.0
    %vm314 = vcmp.ge.f32.partialorder %v302, 1.0
    %vm315 = vcmp.ge.f32.partialorder %v303, 1.0
    %vm316 = vcmp.ge.f32.partialorder %v304, 1.0
    %vm317 = vcmp.ge.f32.partialorder %v305, 1.0
    %vm318 = vcmp.ge.f32.partialorder %v306, 1.0
    %vm319 = vcmp.ge.f32.partialorder %v307, 1.0
    %vm320 = vcmp.ge.f32.partialorder %v308, 1.0
    %vm321 = vcmp.ge.f32.partialorder %v309, 1.0
    %vm322 = vcmp.ge.f32.partialorder %v310, 1.0
    %v323 = vsel %vm311, 1, 0
    %v324 = vsel %vm312, 1, 0
    %v325 = vsel %vm313, 1, 0
    %v326 = vsel %vm314, 1, 0
    %v327 = vsel %vm315, 1, 0
    %v328 = vsel %vm316, 1, 0
    %v329 = vsel %vm317, 1, 0
    %v330 = vsel %vm318, 1, 0
    %v331 = vsel %vm319, 1, 0
    %v332 = vsel %vm320, 1, 0
    %v333 = vsel %vm321, 1, 0
    %v334 = vsel %vm322, 1, 0
    %v335 = vcvt.s32.f32 %v323
    %v336 = vcvt.s32.f32 %v324
    %v337 = vcvt.s32.f32 %v325
    %v338 = vcvt.s32.f32 %v326
    %v339 = vcvt.s32.f32 %v327
    %v340 = vcvt.s32.f32 %v328
    %v341 = vcvt.s32.f32 %v329
    %v342 = vcvt.s32.f32 %v330
    %v343 = vcvt.s32.f32 %v331
    %v344 = vcvt.s32.f32 %v332
    %v345 = vcvt.s32.f32 %v333
    %v346 = vcvt.s32.f32 %v334
    %v347 = vsub.f32 1.0, %v335
    %v348 = vsub.f32 1.0, %v336
    %v349 = vsub.f32 1.0, %v337
    %v350 = vsub.f32 1.0, %v338
    %v351 = vsub.f32 1.0, %v339
    %v352 = vsub.f32 1.0, %v340
    %v353 = vsub.f32 1.0, %v341
    %v354 = vsub.f32 1.0, %v342
    %v355 = vsub.f32 1.0, %v343
    %v356 = vsub.f32 1.0, %v344
    %v357 = vsub.f32 1.0, %v345
    %v358 = vsub.f32 1.0, %v346
    %v359 = vmul.f32 %v299, %v347
    %v360 = vmul.f32 %v300, %v348
    %v361 = vmul.f32 %v301, %v349
    %v362 = vmul.f32 %v302, %v350
    %v363 = vmul.f32 %v303, %v351
    %v364 = vmul.f32 %v304, %v352
    %v365 = vmul.f32 %v305, %v353
    %v366 = vmul.f32 %v306, %v354
    %v367 = vmul.f32 %v307, %v355
    %v368 = vmul.f32 %v308, %v356
    %v369 = vmul.f32 %v309, %v357
    %v370 = vmul.f32 %v310, %v358
    %v371 = vpack.c.bf16 %v336, %v335
    %v372 = vpack.c.bf16 %v338, %v337
    %v373 = vpack.c.bf16 %v340, %v339
    %v374 = vpack.c.bf16 %v342, %v341
    %v375 = vpack.c.bf16 %v344, %v343
    %v376 = vpack.c.bf16 %v346, %v345
    %vm377 = vcmask 523264
    %v379 = vsel %vm377, %v375, 0
    %v382 = vsel %vm377, %v376, 0
    %v385 = vsel %vm377, %v373, 0
    %v388 = vsel %vm377, %v374, 0
    %390 = vmatprep.subr.bf16.mxu0 0
    %391 = vmatpush1.bf16.xpose.msra.mxu0 %v385
    %392 = vmatprep.subr.bf16.mxu0 0
    %393 = vmatpush1.bf16.xpose.msra.mxu0 %v388
    %394 = vmatprep.subr.bf16.mxu0 0
    %395 = vmatpush1.bf16.xpose.msra.mxu0 0
    %396 = vmatprep.subr.bf16.mxu0 0
    %397 = vmatpush1.bf16.xpose.msra.mxu0 0
    %398 = vmatprep.subr.bf16.mxu0 0
    %399 = vmatpush1.bf16.xpose.msra.mxu0 0
    %400 = vmatprep.subr.bf16.mxu0 0
    %401 = vmatpush1.bf16.xpose.msra.mxu0 0
    %402 = vmatprep.subr.bf16.mxu0 0
    %403 = vmatpush1.bf16.xpose.msra.mxu0 0
    %404 = vmatprep.subr.bf16.mxu0 0
    %405 = vmatpush1.bf16.xpose.msra.mxu0 0
    %406 = vmatprep.subr.bf16.mxu0 0
    %407 = vmatpush1.bf16.xpose.msra.mxu0 0
    %408 = vmatprep.subr.bf16.mxu0 0
    %409 = vmatpush1.bf16.xpose.msra.mxu0 0
    %410 = vmatprep.subr.bf16.mxu0 0
    %411 = vmatpush1.bf16.xpose.msra.mxu0 0
    %412 = vmatprep.subr.bf16.mxu0 0
    %413 = vmatpush1.bf16.xpose.msra.mxu0 0
    %414 = vmatprep.subr.bf16.mxu0 0
    %415 = vmatpush1.bf16.xpose.msra.mxu0 0
    %416 = vmatprep.subr.bf16.mxu0 0
    %417 = vmatpush1.bf16.xpose.msra.mxu0 0
    %418 = vmatprep.subr.bf16.mxu0 0
    %419 = vmatpush1.bf16.xpose.msra.mxu0 0
    %420 = vmatprep.subr.bf16.mxu0 0
    %421 = vmatpush1.bf16.xpose.msra.mxu0 0
    %422 = vmatprep.mubr.bf16.mxu0 0
    %423 = vmatmul.mubr.bf16.gmra.mrb[0].mxu0 %v379
    %v424 = vpop.f32.mrb[0].mxu0
    %v425 = vadd.f32 0.0, %v424
    %v426 = vpop.f32.mrb[0].mxu0
    %v427 = vpop.f32.mrb[0].mxu0
    %v428 = vadd.f32 0.0, %v427
    %v429 = vpop.f32.mrb[0].mxu0
    %430 = vmatprep.mubr.bf16.mxu0 0
    %431 = vmatmul.mubr.bf16.gmra.mrb[0].mxu0 %v382
    %v432 = vpop.f32.mrb[0].mxu0
    %v433 = vadd.f32 0.0, %v432
    %v434 = vpop.f32.mrb[0].mxu0
    %v435 = vpop.f32.mrb[0].mxu0
    %v436 = vadd.f32 0.0, %v435
    %v437 = vpop.f32.mrb[0].mxu0
    %438 = vdwg.mxu0
    %v439 = vmul.f32 %v425, %v57
    %v440 = vmul.f32 %v428, %v58
    %v441 = vmul.f32 %v433, %v59
    %v442 = vmul.f32 %v436, %v60
    %v443 = vpack.c.bf16 %v440, %v439
    %v444 = vpack.c.bf16 %v442, %v441
    %v446 = vsel %vm125, %v443, 0
    %v449 = vsel %vm125, %v444, 0
    %451 = vmatprep.subr.bf16.mxu0 0
    %452 = vmatpush1.bf16.msra.mxu0 %v371
    %453 = vmatprep.subr.bf16.mxu0 0
    %454 = vmatpush1.bf16.msra.mxu0 %v372
    %455 = vmatprep.subr.bf16.mxu0 0
    %456 = vmatpush1.bf16.msra.mxu0 0
    %457 = vmatprep.subr.bf16.mxu0 0
    %458 = vmatpush1.bf16.msra.mxu0 0
    %459 = vmatprep.subr.bf16.mxu0 0
    %460 = vmatpush1.bf16.msra.mxu0 0
    %461 = vmatprep.subr.bf16.mxu0 0
    %462 = vmatpush1.bf16.msra.mxu0 0
    %463 = vmatprep.subr.bf16.mxu0 0
    %464 = vmatpush1.bf16.msra.mxu0 0
    %465 = vmatprep.subr.bf16.mxu0 0
    %466 = vmatpush1.bf16.msra.mxu0 0
    %467 = vmatprep.subr.bf16.mxu0 0
    %468 = vmatpush1.bf16.msra.mxu0 0
    %469 = vmatprep.subr.bf16.mxu0 0
    %470 = vmatpush1.bf16.msra.mxu0 0
    %471 = vmatprep.subr.bf16.mxu0 0
    %472 = vmatpush1.bf16.msra.mxu0 0
    %473 = vmatprep.subr.bf16.mxu0 0
    %474 = vmatpush1.bf16.msra.mxu0 0
    %475 = vmatprep.subr.bf16.mxu0 0
    %476 = vmatpush1.bf16.msra.mxu0 0
    %477 = vmatprep.subr.bf16.mxu0 0
    %478 = vmatpush1.bf16.msra.mxu0 0
    %479 = vmatprep.subr.bf16.mxu0 0
    %480 = vmatpush1.bf16.msra.mxu0 0
    %481 = vmatprep.subr.bf16.mxu0 0
    %482 = vmatpush1.bf16.msra.mxu0 0
    %483 = vmatprep.mubr.bf16.mxu0 0
    %484 = vmatmul.mubr.bf16.gmra.mrb[0].mxu0 %v446
    %v485 = vpop.f32.mrb[0].mxu0
    %v486 = vadd.f32 0.0, %v485
    %v487 = vpop.f32.mrb[0].mxu0
    %v488 = vpop.f32.mrb[0].mxu0
    %v489 = vadd.f32 0.0, %v488
    %v490 = vpop.f32.mrb[0].mxu0
    %491 = vmatprep.mubr.bf16.mxu0 0
    %492 = vmatmul.mubr.bf16.gmra.mrb[0].mxu0 %v449
    %v493 = vpop.f32.mrb[0].mxu0
    %v494 = vadd.f32 0.0, %v493
    %v495 = vpop.f32.mrb[0].mxu0
    %v496 = vpop.f32.mrb[0].mxu0
    %v497 = vadd.f32 0.0, %v496
    %v498 = vpop.f32.mrb[0].mxu0
    %499 = vdwg.mxu0
    %502 = vrot.lane.b32.xlu0 %v375, 64
    %v503 = vpop.permute.xlu0 %502
    %504 = vrot.lane.b32.xlu0 %v376, 64
    %v505 = vpop.permute.xlu0 %504
    %508 = vrot.lane.b32.xlu0 %v373, 64
    %v509 = vpop.permute.xlu0 %508
    %510 = vrot.lane.b32.xlu0 %v374, 64
    %v511 = vpop.permute.xlu0 %510
    %v513 = vsel %vm377, %v503, 0
    %v516 = vsel %vm377, %v505, 0
    %v519 = vsel %vm377, %v509, 0
    %v522 = vsel %vm377, %v511, 0
    %524 = vmatprep.subr.bf16.mxu0 0
    %525 = vmatpush1.bf16.xpose.msra.mxu0 %v519
    %526 = vmatprep.subr.bf16.mxu0 0
    %527 = vmatpush1.bf16.xpose.msra.mxu0 %v522
    %528 = vmatprep.subr.bf16.mxu0 0
    %529 = vmatpush1.bf16.xpose.msra.mxu0 0
    %530 = vmatprep.subr.bf16.mxu0 0
    %531 = vmatpush1.bf16.xpose.msra.mxu0 0
    %532 = vmatprep.subr.bf16.mxu0 0
    %533 = vmatpush1.bf16.xpose.msra.mxu0 0
    %534 = vmatprep.subr.bf16.mxu0 0
    %535 = vmatpush1.bf16.xpose.msra.mxu0 0
    %536 = vmatprep.subr.bf16.mxu0 0
    %537 = vmatpush1.bf16.xpose.msra.mxu0 0
    %538 = vmatprep.subr.bf16.mxu0 0
    %539 = vmatpush1.bf16.xpose.msra.mxu0 0
    %540 = vmatprep.subr.bf16.mxu0 0
    %541 = vmatpush1.bf16.xpose.msra.mxu0 0
    %542 = vmatprep.subr.bf16.mxu0 0
    %543 = vmatpush1.bf16.xpose.msra.mxu0 0
    %544 = vmatprep.subr.bf16.mxu0 0
    %545 = vmatpush1.bf16.xpose.msra.mxu0 0
    %546 = vmatprep.subr.bf16.mxu0 0
    %547 = vmatpush1.bf16.xpose.msra.mxu0 0
    %548 = vmatprep.subr.bf16.mxu0 0
    %549 = vmatpush1.bf16.xpose.msra.mxu0 0
    %550 = vmatprep.subr.bf16.mxu0 0
    %551 = vmatpush1.bf16.xpose.msra.mxu0 0
    %552 = vmatprep.subr.bf16.mxu0 0
    %553 = vmatpush1.bf16.xpose.msra.mxu0 0
    %554 = vmatprep.subr.bf16.mxu0 0
    %555 = vmatpush1.bf16.xpose.msra.mxu0 0
    %556 = vmatprep.mubr.bf16.mxu0 0
    %557 = vmatmul.mubr.bf16.gmra.mrb[0].mxu0 %v513
    %v558 = vpop.f32.mrb[0].mxu0
    %v559 = vadd.f32 0.0, %v558
    %v560 = vpop.f32.mrb[0].mxu0
    %v561 = vpop.f32.mrb[0].mxu0
    %v562 = vadd.f32 0.0, %v561
    %v563 = vpop.f32.mrb[0].mxu0
    %564 = vmatprep.mubr.bf16.mxu0 0
    %565 = vmatmul.mubr.bf16.gmra.mrb[0].mxu0 %v516
    %v566 = vpop.f32.mrb[0].mxu0
    %v567 = vadd.f32 0.0, %v566
    %v568 = vpop.f32.mrb[0].mxu0
    %v569 = vpop.f32.mrb[0].mxu0
    %v570 = vadd.f32 0.0, %v569
    %v571 = vpop.f32.mrb[0].mxu0
    %572 = vdwg.mxu0
    %v573 = vmul.f32 %v559, %v57
    %v574 = vmul.f32 %v562, %v58
    %v575 = vmul.f32 %v567, %v59
    %v576 = vmul.f32 %v570, %v60
    %v577 = vpack.c.bf16 %v574, %v573
    %v578 = vpack.c.bf16 %v576, %v575
    %581 = vrot.lane.b32.xlu0 %v371, 64
    %v582 = vpop.permute.xlu0 %581
    %583 = vrot.lane.b32.xlu0 %v372, 64
    %v584 = vpop.permute.xlu0 %583
    %v588 = vsel %vm125, %v577, 0
    %v591 = vsel %vm125, %v578, 0
    %593 = vmatprep.subr.bf16.mxu0 0
    %594 = vmatpush1.bf16.msra.mxu0 %v582
    %595 = vmatprep.subr.bf16.mxu0 0
    %596 = vmatpush1.bf16.msra.mxu0 %v584
    %597 = vmatprep.subr.bf16.mxu0 0
    %598 = vmatpush1.bf16.msra.mxu0 0
    %599 = vmatprep.subr.bf16.mxu0 0
    %600 = vmatpush1.bf16.msra.mxu0 0
    %601 = vmatprep.subr.bf16.mxu0 0
    %602 = vmatpush1.bf16.msra.mxu0 0
    %603 = vmatprep.subr.bf16.mxu0 0
    %604 = vmatpush1.bf16.msra.mxu0 0
    %605 = vmatprep.subr.bf16.mxu0 0
    %606 = vmatpush1.bf16.msra.mxu0 0
    %607 = vmatprep.subr.bf16.mxu0 0
    %608 = vmatpush1.bf16.msra.mxu0 0
    %609 = vmatprep.subr.bf16.mxu0 0
    %610 = vmatpush1.bf16.msra.mxu0 0
    %611 = vmatprep.subr.bf16.mxu0 0
    %612 = vmatpush1.bf16.msra.mxu0 0
    %613 = vmatprep.subr.bf16.mxu0 0
    %614 = vmatpush1.bf16.msra.mxu0 0
    %615 = vmatprep.subr.bf16.mxu0 0
    %616 = vmatpush1.bf16.msra.mxu0 0
    %617 = vmatprep.subr.bf16.mxu0 0
    %618 = vmatpush1.bf16.msra.mxu0 0
    %619 = vmatprep.subr.bf16.mxu0 0
    %620 = vmatpush1.bf16.msra.mxu0 0
    %621 = vmatprep.subr.bf16.mxu0 0
    %622 = vmatpush1.bf16.msra.mxu0 0
    %623 = vmatprep.subr.bf16.mxu0 0
    %624 = vmatpush1.bf16.msra.mxu0 0
    %625 = vmatprep.mubr.bf16.mxu0 0
    %626 = vmatmul.mubr.bf16.gmra.mrb[0].mxu0 %v588
    %v627 = vpop.f32.mrb[0].mxu0
    %v628 = vadd.f32 0.0, %v627
    %v629 = vpop.f32.mrb[0].mxu0
    %v630 = vpop.f32.mrb[0].mxu0
    %v631 = vadd.f32 0.0, %v630
    %v632 = vpop.f32.mrb[0].mxu0
    %633 = vmatprep.mubr.bf16.mxu0 0
    %634 = vmatmul.mubr.bf16.gmra.mrb[0].mxu0 %v591
    %v635 = vpop.f32.mrb[0].mxu0
    %v636 = vadd.f32 0.0, %v635
    %v637 = vpop.f32.mrb[0].mxu0
    %v638 = vpop.f32.mrb[0].mxu0
    %v639 = vadd.f32 0.0, %v638
    %v640 = vpop.f32.mrb[0].mxu0
    %641 = vdwg.mxu0
    %646 = vrot.lane.b32.xlu0 %v628, 64
    %v647 = vpop.permute.xlu0 %646
    %648 = vrot.lane.b32.xlu0 %v631, 64
    %v649 = vpop.permute.xlu0 %648
    %650 = vrot.lane.b32.xlu0 %v636, 64
    %v651 = vpop.permute.xlu0 %650
    %652 = vrot.lane.b32.xlu0 %v639, 64
    %v653 = vpop.permute.xlu0 %652
    %v658 = vsel %vm377, %v486, %v647
    %v659 = vsel %vm377, %v489, %v649
    %v660 = vsel %vm377, %v494, %v651
    %v661 = vsel %vm377, %v497, %v653
    %v662 = vmul.f32 %v658, 0.5
    %v663 = vmul.f32 %v659, 0.5
    %v664 = vmul.f32 %v660, 0.5
    %v665 = vmul.f32 %v661, 0.5
    %v666 = vadd.f32 %v662, 0.0
    %v667 = vadd.f32 %v663, 0.0
    %v668 = vadd.f32 %v664, 0.0
    %v669 = vadd.f32 %v665, 0.0
    %vm670 = vcmp.ge.f32.partialorder %v666, 1.0
    %vm671 = vcmp.ge.f32.partialorder %v667, 1.0
    %vm672 = vcmp.ge.f32.partialorder %v668, 1.0
    %vm673 = vcmp.ge.f32.partialorder %v669, 1.0
    %v674 = vsel %vm670, 1, 0
    %v675 = vsel %vm671, 1, 0
    %v676 = vsel %vm672, 1, 0
    %v677 = vsel %vm673, 1, 0
    %v678 = vcvt.s32.f32 %v674
    %v679 = vcvt.s32.f32 %v675
    %v680 = vcvt.s32.f32 %v676
    %v681 = vcvt.s32.f32 %v677
    %v682 = vsub.f32 1.0, %v678
    %v683 = vsub.f32 1.0, %v679
    %v684 = vsub.f32 1.0, %v680
    %v685 = vsub.f32 1.0, %v681
    %v686 = vmul.f32 %v666, %v682
    %v687 = vmul.f32 %v667, %v683
    %v688 = vmul.f32 %v668, %v684
    %v689 = vmul.f32 %v669, %v685
    %691 = vset.pattern.permute.xlu0 0
    %692 = vperm.xlu0 %691, %v53
    %v693 = vpop.permute.xlu0 %692
    %696 = vset.pattern.permute.xlu0 0
    %697 = vperm.xlu0 %696, %v54
    %v698 = vpop.permute.xlu0 %697
    %701 = vset.pattern.permute.xlu0 0
    %702 = vperm.xlu0 %701, %v55
    %v703 = vpop.permute.xlu0 %702
    %706 = vset.pattern.permute.xlu0 0
    %707 = vperm.xlu0 %706, %v56
    %v708 = vpop.permute.xlu0 %707
    %v711 = vsel %vm125, %v49, 0
    %v714 = vsel %vm125, %v50, 0
    %v717 = vsel %vm125, %v51, 0
    %v720 = vsel %vm125, %v52, 0
    %722 = vmatprep.subr.mxu0 0.0
    %723 = vmatpush1.msra.mxu0 %v678
    %724 = vmatprep.subr.mxu0 0.0
    %725 = vmatpush1.msra.mxu0 %v679
    %726 = vmatprep.subr.mxu0 0.0
    %727 = vmatpush1.msra.mxu0 %v680
    %728 = vmatprep.subr.mxu0 0.0
    %729 = vmatpush1.msra.mxu0 %v681
    %730 = vmatprep.subr.mxu0 0.0
    %731 = vmatpush1.msra.mxu0 0.0
    %732 = vmatprep.subr.mxu0 0.0
    %733 = vmatpush1.msra.mxu0 0.0
    %734 = vmatprep.subr.mxu0 0.0
    %735 = vmatpush1.msra.mxu0 0.0
    %736 = vmatprep.subr.mxu0 0.0
    %737 = vmatpush1.msra.mxu0 0.0
    %738 = vmatprep.subr.mxu0 0.0
    %739 = vmatpush1.msra.mxu0 0.0
    %740 = vmatprep.subr.mxu0 0.0
    %741 = vmatpush1.msra.mxu0 0.0
    %742 = vmatprep.subr.mxu0 0.0
    %743 = vmatpush1.msra.mxu0 0.0
    %744 = vmatprep.subr.mxu0 0.0
    %745 = vmatpush1.msra.mxu0 0.0
    %746 = vmatprep.subr.mxu0 0.0
    %747 = vmatpush1.msra.mxu0 0.0
    %748 = vmatprep.subr.mxu0 0.0
    %749 = vmatpush1.msra.mxu0 0.0
    %750 = vmatprep.subr.mxu0 0.0
    %751 = vmatpush1.msra.mxu0 0.0
    %752 = vmatprep.subr.mxu0 0.0
    %753 = vmatpush1.msra.mxu0 0.0
    %754 = vmatprep.subr.mxu0 0.0
    %755 = vmatpush1.msra.mxu0 0.0
    %756 = vmatprep.subr.mxu0 0.0
    %757 = vmatpush1.msra.mxu0 0.0
    %758 = vmatprep.subr.mxu0 0.0
    %759 = vmatpush1.msra.mxu0 0.0
    %760 = vmatprep.subr.mxu0 0.0
    %761 = vmatpush1.msra.mxu0 0.0
    %762 = vmatprep.subr.mxu0 0.0
    %763 = vmatpush1.msra.mxu0 0.0
    %764 = vmatprep.subr.mxu0 0.0
    %765 = vmatpush1.msra.mxu0 0.0
    %766 = vmatprep.subr.mxu0 0.0
    %767 = vmatpush1.msra.mxu0 0.0
    %768 = vmatprep.subr.mxu0 0.0
    %769 = vmatpush1.msra.mxu0 0.0
    %770 = vmatprep.subr.mxu0 0.0
    %771 = vmatpush1.msra.mxu0 0.0
    %772 = vmatprep.subr.mxu0 0.0
    %773 = vmatpush1.msra.mxu0 0.0
    %774 = vmatprep.subr.mxu0 0.0
    %775 = vmatpush1.msra.mxu0 0.0
    %776 = vmatprep.subr.mxu0 0.0
    %777 = vmatpush1.msra.mxu0 0.0
    %778 = vmatprep.subr.mxu0 0.0
    %779 = vmatpush1.msra.mxu0 0.0
    %780 = vmatprep.subr.mxu0 0.0
    %781 = vmatpush1.msra.mxu0 0.0
    %782 = vmatprep.subr.mxu0 0.0
    %783 = vmatpush1.msra.mxu0 0.0
    %784 = vmatprep.subr.mxu0 0.0
    %785 = vmatpush1.msra.mxu0 0.0
    %786 = vmatprep.mubr.f32.mxu0 0.0
    %787 = vmatmul.mubr.f32.gmra.mrb[0].mxu0 %v711
    %v788 = vpop.f32.mrb[0].mxu0
    %v789 = vadd.f32 %v693, %v788
    %v790 = vpop.f32.mrb[0].mxu0
    %791 = vmatprep.mubr.f32.mxu0 0.0
    %792 = vmatmul.mubr.f32.gmra.mrb[0].mxu0 %v714
    %v793 = vpop.f32.mrb[0].mxu0
    %v794 = vadd.f32 %v698, %v793
    %v795 = vpop.f32.mrb[0].mxu0
    %796 = vmatprep.mubr.f32.mxu0 0.0
    %797 = vmatmul.mubr.f32.gmra.mrb[0].mxu0 %v717
    %v798 = vpop.f32.mrb[0].mxu0
    %v799 = vadd.f32 %v703, %v798
    %v800 = vpop.f32.mrb[0].mxu0
    %801 = vmatprep.mubr.f32.mxu0 0.0
    %802 = vmatmul.mubr.f32.gmra.mrb[0].mxu0 %v720
    %v803 = vpop.f32.mrb[0].mxu0
    %v804 = vadd.f32 %v708, %v803
    %v805 = vpop.f32.mrb[0].mxu0
    %806 = vdwg.mxu0
    %v807 = vmul.f32 %v789, 0.5
    %v808 = vmul.f32 %v794, 0.5
    %v809 = vmul.f32 %v799, 0.5
    %v810 = vmul.f32 %v804, 0.5
    %v811 = vadd.f32 %v807, 0.0
    %v812 = vadd.f32 %v808, 0.0
    %v813 = vadd.f32 %v809, 0.0
    %v814 = vadd.f32 %v810, 0.0
    %vm815 = vcmp.ge.f32.partialorder %v811, 1.0
    %vm816 = vcmp.ge.f32.partialorder %v812, 1.0
    %vm817 = vcmp.ge.f32.partialorder %v813, 1.0
    %vm818 = vcmp.ge.f32.partialorder %v814, 1.0
    %v819 = vsel %vm815, 1, 0
    %v820 = vsel %vm816, 1, 0
    %v821 = vsel %vm817, 1, 0
    %v822 = vsel %vm818, 1, 0
    %v823 = vcvt.s32.f32 %v819
    %v824 = vcvt.s32.f32 %v820
    %v825 = vcvt.s32.f32 %v821
    %v826 = vcvt.s32.f32 %v822
    %v827 = vsub.f32 1.0, %v823
    %v828 = vsub.f32 1.0, %v824
    %v829 = vsub.f32 1.0, %v825
    %v830 = vsub.f32 1.0, %v826
    %v831 = vmul.f32 %v811, %v827
    %v832 = vmul.f32 %v812, %v828
    %v833 = vmul.f32 %v813, %v829
    %v834 = vmul.f32 %v814, %v830
    %839 = vrot.lane.b32.xlu0 %v831, 64
    %v840 = vpop.permute.xlu0 %839
    %841 = vrot.lane.b32.xlu0 %v832, 64
    %v842 = vpop.permute.xlu0 %841
    %843 = vrot.lane.b32.xlu0 %v833, 64
    %v844 = vpop.permute.xlu0 %843
    %845 = vrot.lane.b32.xlu0 %v834, 64
    %v846 = vpop.permute.xlu0 %845
    %v851 = vsub.f32 %v789, %v840
    %v852 = vsub.f32 %v794, %v842
    %v853 = vsub.f32 %v799, %v844
    %v854 = vsub.f32 %v804, %v846
    %v855 = vmul.f32 %v851, 0.5
    %v856 = vmul.f32 %v852, 0.5
    %v857 = vmul.f32 %v853, 0.5
    %v858 = vmul.f32 %v854, 0.5
    %863 = vrot.lane.b32.xlu0 %v855, 64
    %v864 = vpop.permute.xlu0 %863
    %865 = vrot.lane.b32.xlu0 %v856, 64
    %v866 = vpop.permute.xlu0 %865
    %867 = vrot.lane.b32.xlu0 %v857, 64
    %v868 = vpop.permute.xlu0 %867
    %869 = vrot.lane.b32.xlu0 %v858, 64
    %v870 = vpop.permute.xlu0 %869
    %v875 = vadd.f32 %v831, %v864
    %v876 = vadd.f32 %v832, %v866
    %v877 = vadd.f32 %v833, %v868
    %v878 = vadd.f32 %v834, %v870
    %vm879 = vcmp.ge.f32.partialorder %v875, 1.0
    %vm880 = vcmp.ge.f32.partialorder %v876, 1.0
    %vm881 = vcmp.ge.f32.partialorder %v877, 1.0
    %vm882 = vcmp.ge.f32.partialorder %v878, 1.0
    %v883 = vsel %vm879, 1, 0
    %v884 = vsel %vm880, 1, 0
    %v885 = vsel %vm881, 1, 0
    %v886 = vsel %vm882, 1, 0
    %v887 = vcvt.s32.f32 %v883
    %v888 = vcvt.s32.f32 %v884
    %v889 = vcvt.s32.f32 %v885
    %v890 = vcvt.s32.f32 %v886
    %v891 = vsub.f32 1.0, %v887
    %v892 = vsub.f32 1.0, %v888
    %v893 = vsub.f32 1.0, %v889
    %v894 = vsub.f32 1.0, %v890
    %v895 = vmul.f32 %v875, %v891
    %v896 = vmul.f32 %v876, %v892
    %v897 = vmul.f32 %v877, %v893
    %v898 = vmul.f32 %v878, %v894
    %903 = vrot.lane.b32.xlu0 %v887, 64
    %v904 = vpop.permute.xlu0 %903
    %905 = vrot.lane.b32.xlu0 %v888, 64
    %v906 = vpop.permute.xlu0 %905
    %907 = vrot.lane.b32.xlu0 %v889, 64
    %v908 = vpop.permute.xlu0 %907
    %909 = vrot.lane.b32.xlu0 %v890, 64
    %v910 = vpop.permute.xlu0 %909
    %v915 = vsel %vm377, %v823, %v904
    %v916 = vsel %vm377, %v824, %v906
    %v917 = vsel %vm377, %v825, %v908
    %v918 = vsel %vm377, %v826, %v910
    %919 = vst [vmem:[#allocation2] sm:$0xff] %v915
    %920 = vst [vmem:[#allocation2 + $0x8] sm:$0xff] %v916
    %921 = vst [vmem:[#allocation2 + $0x10] sm:$0xff] %v917
    %922 = vst [vmem:[#allocation2 + $0x18] sm:$0xff] %v918
    %s923 = scalar_lea.vmem %s0, 32
    %v924 = vld [vmem:[%s923] sm:$0xff]
    %v925 = vld [vmem:[%s923 + $0x8] sm:$0xff]
    %v926 = vld [vmem:[%s923 + $0x10] sm:$0xff]
    %v927 = vld [vmem:[%s923 + $0x18] sm:$0xff]
    %928 = vmatprep.subr.mxu0 0.0
    %929 = vmatpush1.msra.mxu0 %v924
    %930 = vmatprep.subr.mxu0 0.0
    %931 = vmatpush1.msra.mxu0 %v925
    %932 = vmatprep.subr.mxu0 0.0
    %933 = vmatpush1.msra.mxu0 %v926
    %934 = vmatprep.subr.mxu0 0.0
    %935 = vmatpush1.msra.mxu0 %v927
    %936 = vmatprep.subr.mxu0 0.0
    %937 = vmatpush1.msra.mxu0 0.0
    %938 = vmatprep.subr.mxu0 0.0
    %939 = vmatpush1.msra.mxu0 0.0
    %940 = vmatprep.subr.mxu0 0.0
    %941 = vmatpush1.msra.mxu0 0.0
    %942 = vmatprep.subr.mxu0 0.0
    %943 = vmatpush1.msra.mxu0 0.0
    %944 = vmatprep.subr.mxu0 0.0
    %945 = vmatpush1.msra.mxu0 0.0
    %946 = vmatprep.subr.mxu0 0.0
    %947 = vmatpush1.msra.mxu0 0.0
    %948 = vmatprep.subr.mxu0 0.0
    %949 = vmatpush1.msra.mxu0 0.0
    %950 = vmatprep.subr.mxu0 0.0
    %951 = vmatpush1.msra.mxu0 0.0
    %952 = vmatprep.subr.mxu0 0.0
    %953 = vmatpush1.msra.mxu0 0.0
    %954 = vmatprep.subr.mxu0 0.0
    %955 = vmatpush1.msra.mxu0 0.0
    %956 = vmatprep.subr.mxu0 0.0
    %957 = vmatpush1.msra.mxu0 0.0
    %958 = vmatprep.subr.mxu0 0.0
    %959 = vmatpush1.msra.mxu0 0.0
    %960 = vmatprep.subr.mxu0 0.0
    %961 = vmatpush1.msra.mxu0 0.0
    %962 = vmatprep.subr.mxu0 0.0
    %963 = vmatpush1.msra.mxu0 0.0
    %964 = vmatprep.subr.mxu0 0.0
    %965 = vmatpush1.msra.mxu0 0.0
    %966 = vmatprep.subr.mxu0 0.0
    %967 = vmatpush1.msra.mxu0 0.0
    %968 = vmatprep.subr.mxu0 0.0
    %969 = vmatpush1.msra.mxu0 0.0
    %970 = vmatprep.subr.mxu0 0.0
    %971 = vmatpush1.msra.mxu0 0.0
    %972 = vmatprep.subr.mxu0 0.0
    %973 = vmatpush1.msra.mxu0 0.0
    %974 = vmatprep.subr.mxu0 0.0
    %975 = vmatpush1.msra.mxu0 0.0
    %976 = vmatprep.subr.mxu0 0.0
    %977 = vmatpush1.msra.mxu0 0.0
    %978 = vmatprep.subr.mxu0 0.0
    %979 = vmatpush1.msra.mxu0 0.0
    %980 = vmatprep.subr.mxu0 0.0
    %981 = vmatpush1.msra.mxu0 0.0
    %982 = vmatprep.subr.mxu0 0.0
    %983 = vmatpush1.msra.mxu0 0.0
    %984 = vmatprep.subr.mxu0 0.0
    %985 = vmatpush1.msra.mxu0 0.0
    %986 = vmatprep.subr.mxu0 0.0
    %987 = vmatpush1.msra.mxu0 0.0
    %988 = vmatprep.subr.mxu0 0.0
    %989 = vmatpush1.msra.mxu0 0.0
    %990 = vmatprep.subr.mxu0 0.0
    %991 = vmatpush1.msra.mxu0 0.0
    %992 = vmatprep.mubr.f32.mxu0 0.0
    %993 = vmatmul.mubr.f32.gmra.mrb[0].mxu0 %v127
    %v994 = vpop.f32.mrb[0].mxu0
    %v995 = vadd.f32 %v68, %v994
    %v996 = vpop.f32.mrb[0].mxu0
    %997 = vmatprep.mubr.f32.mxu0 0.0
    %998 = vmatmul.mubr.f32.gmra.mrb[0].mxu0 %v130
    %v999 = vpop.f32.mrb[0].mxu0
    %v1000 = vadd.f32 %v73, %v999
    %v1001 = vpop.f32.mrb[0].mxu0
    %1002 = vmatprep.mubr.f32.mxu0 0.0
    %1003 = vmatmul.mubr.f32.gmra.mrb[0].mxu0 %v133
    %v1004 = vpop.f32.mrb[0].mxu0
    %v1005 = vadd.f32 %v78, %v1004
    %v1006 = vpop.f32.mrb[0].mxu0
    %1007 = vmatprep.mubr.f32.mxu0 0.0
    %1008 = vmatmul.mubr.f32.gmra.mrb[0].mxu0 %v136
    %v1009 = vpop.f32.mrb[0].mxu0
    %v1010 = vadd.f32 %v83, %v1009
    %v1011 = vpop.f32.mrb[0].mxu0
    %1012 = vmatprep.mubr.f32.mxu0 0.0
    %1013 = vmatmul.mubr.f32.gmra.mrb[0].mxu0 %v139
    %v1014 = vpop.f32.mrb[0].mxu0
    %v1015 = vadd.f32 %v88, %v1014
    %v1016 = vpop.f32.mrb[0].mxu0
    %1017 = vmatprep.mubr.f32.mxu0 0.0
    %1018 = vmatmul.mubr.f32.gmra.mrb[0].mxu0 %v142
    %v1019 = vpop.f32.mrb[0].mxu0
    %v1020 = vadd.f32 %v93, %v1019
    %v1021 = vpop.f32.mrb[0].mxu0
    %1022 = vmatprep.mubr.f32.mxu0 0.0
    %1023 = vmatmul.mubr.f32.gmra.mrb[0].mxu0 %v145
    %v1024 = vpop.f32.mrb[0].mxu0
    %v1025 = vadd.f32 %v98, %v1024
    %v1026 = vpop.f32.mrb[0].mxu0
    %1027 = vmatprep.mubr.f32.mxu0 0.0
    %1028 = vmatmul.mubr.f32.gmra.mrb[0].mxu0 %v148
    %v1029 = vpop.f32.mrb[0].mxu0
    %v1030 = vadd.f32 %v103, %v1029
    %v1031 = vpop.f32.mrb[0].mxu0
    %1032 = vmatprep.mubr.f32.mxu0 0.0
    %1033 = vmatmul.mubr.f32.gmra.mrb[0].mxu0 %v151
    %v1034 = vpop.f32.mrb[0].mxu0
    %v1035 = vadd.f32 %v108, %v1034
    %v1036 = vpop.f32.mrb[0].mxu0
    %1037 = vmatprep.mubr.f32.mxu0 0.0
    %1038 = vmatmul.mubr.f32.gmra.mrb[0].mxu0 %v154
    %v1039 = vpop.f32.mrb[0].mxu0
    %v1040 = vadd.f32 %v113, %v1039
    %v1041 = vpop.f32.mrb[0].mxu0
    %1042 = vmatprep.mubr.f32.mxu0 0.0
    %1043 = vmatmul.mubr.f32.gmra.mrb[0].mxu0 %v157
    %v1044 = vpop.f32.mrb[0].mxu0
    %v1045 = vadd.f32 %v118, %v1044
    %v1046 = vpop.f32.mrb[0].mxu0
    %1047 = vmatprep.mubr.f32.mxu0 0.0
    %1048 = vmatmul.mubr.f32.gmra.mrb[0].mxu0 %v160
    %v1049 = vpop.f32.mrb[0].mxu0
    %v1050 = vadd.f32 %v123, %v1049
    %v1051 = vpop.f32.mrb[0].mxu0
    %1052 = vdwg.mxu0
    %v1053 = vsub.f32 %v995, %v359
    %v1054 = vsub.f32 %v1000, %v360
    %v1055 = vsub.f32 %v1005, %v361
    %v1056 = vsub.f32 %v1010, %v362
    %v1057 = vsub.f32 %v1015, %v363
    %v1058 = vsub.f32 %v1020, %v364
    %v1059 = vsub.f32 %v1025, %v365
    %v1060 = vsub.f32 %v1030, %v366
    %v1061 = vsub.f32 %v1035, %v367
    %v1062 = vsub.f32 %v1040, %v368
    %v1063 = vsub.f32 %v1045, %v369
    %v1064 = vsub.f32 %v1050, %v370
    %v1065 = vmul.f32 %v1053, 0.5
    %v1066 = vmul.f32 %v1054, 0.5
    %v1067 = vmul.f32 %v1055, 0.5
    %v1068 = vmul.f32 %v1056, 0.5
    %v1069 = vmul.f32 %v1057, 0.5
    %v1070 = vmul.f32 %v1058, 0.5
    %v1071 = vmul.f32 %v1059, 0.5
    %v1072 = vmul.f32 %v1060, 0.5
    %v1073 = vmul.f32 %v1061, 0.5
    %v1074 = vmul.f32 %v1062, 0.5
    %v1075 = vmul.f32 %v1063, 0.5
    %v1076 = vmul.f32 %v1064, 0.5
    %v1077 = vadd.f32 %v359, %v1065
    %v1078 = vadd.f32 %v360, %v1066
    %v1079 = vadd.f32 %v361, %v1067
    %v1080 = vadd.f32 %v362, %v1068
    %v1081 = vadd.f32 %v363, %v1069
    %v1082 = vadd.f32 %v364, %v1070
    %v1083 = vadd.f32 %v365, %v1071
    %v1084 = vadd.f32 %v366, %v1072
    %v1085 = vadd.f32 %v367, %v1073
    %v1086 = vadd.f32 %v368, %v1074
    %v1087 = vadd.f32 %v369, %v1075
    %v1088 = vadd.f32 %v370, %v1076
    %vm1089 = vcmp.ge.f32.partialorder %v1077, 1.0
    %vm1090 = vcmp.ge.f32.partialorder %v1078, 1.0
    %vm1091 = vcmp.ge.f32.partialorder %v1079, 1.0
    %vm1092 = vcmp.ge.f32.partialorder %v1080, 1.0
    %vm1093 = vcmp.ge.f32.partialorder %v1081, 1.0
    %vm1094 = vcmp.ge.f32.partialorder %v1082, 1.0
    %vm1095 = vcmp.ge.f32.partialorder %v1083, 1.0
    %vm1096 = vcmp.ge.f32.partialorder %v1084, 1.0
    %vm1097 = vcmp.ge.f32.partialorder %v1085, 1.0
    %vm1098 = vcmp.ge.f32.partialorder %v1086, 1.0
    %vm1099 = vcmp.ge.f32.partialorder %v1087, 1.0
    %vm1100 = vcmp.ge.f32.partialorder %v1088, 1.0
    %v1101 = vsel %vm1089, 1, 0
    %v1102 = vsel %vm1090, 1, 0
    %v1103 = vsel %vm1091, 1, 0
    %v1104 = vsel %vm1092, 1, 0
    %v1105 = vsel %vm1093, 1, 0
    %v1106 = vsel %vm1094, 1, 0
    %v1107 = vsel %vm1095, 1, 0
    %v1108 = vsel %vm1096, 1, 0
    %v1109 = vsel %vm1097, 1, 0
    %v1110 = vsel %vm1098, 1, 0
    %v1111 = vsel %vm1099, 1, 0
    %v1112 = vsel %vm1100, 1, 0
    %v1113 = vcvt.s32.f32 %v1101
    %v1114 = vcvt.s32.f32 %v1102
    %v1115 = vcvt.s32.f32 %v1103
    %v1116 = vcvt.s32.f32 %v1104
    %v1117 = vcvt.s32.f32 %v1105
    %v1118 = vcvt.s32.f32 %v1106
    %v1119 = vcvt.s32.f32 %v1107
    %v1120 = vcvt.s32.f32 %v1108
    %v1121 = vcvt.s32.f32 %v1109
    %v1122 = vcvt.s32.f32 %v1110
    %v1123 = vcvt.s32.f32 %v1111
    %v1124 = vcvt.s32.f32 %v1112
    %v1125 = vsub.f32 1.0, %v1113
    %v1126 = vsub.f32 1.0, %v1114
    %v1127 = vsub.f32 1.0, %v1115
    %v1128 = vsub.f32 1.0, %v1116
    %v1129 = vsub.f32 1.0, %v1117
    %v1130 = vsub.f32 1.0, %v1118
    %v1131 = vsub.f32 1.0, %v1119
    %v1132 = vsub.f32 1.0, %v1120
    %v1133 = vsub.f32 1.0, %v1121
    %v1134 = vsub.f32 1.0, %v1122
    %v1135 = vsub.f32 1.0, %v1123
    %v1136 = vsub.f32 1.0, %v1124
    %v1137 = vmul.f32 %v1077, %v1125
    %v1138 = vmul.f32 %v1078, %v1126
    %v1139 = vmul.f32 %v1079, %v1127
    %v1140 = vmul.f32 %v1080, %v1128
    %v1141 = vmul.f32 %v1081, %v1129
    %v1142 = vmul.f32 %v1082, %v1130
    %v1143 = vmul.f32 %v1083, %v1131
    %v1144 = vmul.f32 %v1084, %v1132
    %v1145 = vmul.f32 %v1085, %v1133
    %v1146 = vmul.f32 %v1086, %v1134
    %v1147 = vmul.f32 %v1087, %v1135
    %v1148 = vmul.f32 %v1088, %v1136
    %v1149 = vpack.c.bf16 %v1114, %v1113
    %v1150 = vpack.c.bf16 %v1116, %v1115
    %v1151 = vpack.c.bf16 %v1118, %v1117
    %v1152 = vpack.c.bf16 %v1120, %v1119
    %v1153 = vpack.c.bf16 %v1122, %v1121
    %v1154 = vpack.c.bf16 %v1124, %v1123
    %v1156 = vsel %vm377, %v1153, 0
    %v1159 = vsel %vm377, %v1154, 0
    %v1162 = vsel %vm377, %v1151, 0
    %v1165 = vsel %vm377, %v1152, 0
    %1167 = vmatprep.subr.bf16.mxu0 0
    %1168 = vmatpush1.bf16.xpose.msra.mxu0 %v1162
    %1169 = vmatprep.subr.bf16.mxu0 0
    %1170 = vmatpush1.bf16.xpose.msra.mxu0 %v1165
    %1171 = vmatprep.subr.bf16.mxu0 0
    %1172 = vmatpush1.bf16.xpose.msra.mxu0 0
    %1173 = vmatprep.subr.bf16.mxu0 0
    %1174 = vmatpush1.bf16.xpose.msra.mxu0 0
    %1175 = vmatprep.subr.bf16.mxu0 0
    %1176 = vmatpush1.bf16.xpose.msra.mxu0 0
    %1177 = vmatprep.subr.bf16.mxu0 0
    %1178 = vmatpush1.bf16.xpose.msra.mxu0 0
    %1179 = vmatprep.subr.bf16.mxu0 0
    %1180 = vmatpush1.bf16.xpose.msra.mxu0 0
    %1181 = vmatprep.subr.bf16.mxu0 0
    %1182 = vmatpush1.bf16.xpose.msra.mxu0 0
    %1183 = vmatprep.subr.bf16.mxu0 0
    %1184 = vmatpush1.bf16.xpose.msra.mxu0 0
    %1185 = vmatprep.subr.bf16.mxu0 0
    %1186 = vmatpush1.bf16.xpose.msra.mxu0 0
    %1187 = vmatprep.subr.bf16.mxu0 0
    %1188 = vmatpush1.bf16.xpose.msra.mxu0 0
    %1189 = vmatprep.subr.bf16.mxu0 0
    %1190 = vmatpush1.bf16.xpose.msra.mxu0 0
    %1191 = vmatprep.subr.bf16.mxu0 0
    %1192 = vmatpush1.bf16.xpose.msra.mxu0 0
    %1193 = vmatprep.subr.bf16.mxu0 0
    %1194 = vmatpush1.bf16.xpose.msra.mxu0 0
    %1195 = vmatprep.subr.bf16.mxu0 0
    %1196 = vmatpush1.bf16.xpose.msra.mxu0 0
    %1197 = vmatprep.subr.bf16.mxu0 0
    %1198 = vmatpush1.bf16.xpose.msra.mxu0 0
    %1199 = vmatprep.mubr.bf16.mxu0 0
    %1200 = vmatmul.mubr.bf16.gmra.mrb[0].mxu0 %v1156
    %v1201 = vpop.f32.mrb[0].mxu0
    %v1202 = vadd.f32 0.0, %v1201
    %v1203 = vpop.f32.mrb[0].mxu0
    %v1204 = vpop.f32.mrb[0].mxu0
    %v1205 = vadd.f32 0.0, %v1204
    %v1206 = vpop.f32.mrb[0].mxu0
    %1207 = vmatprep.mubr.bf16.mxu0 0
    %1208 = vmatmul.mubr.bf16.gmra.mrb[0].mxu0 %v1159
    %v1209 = vpop.f32.mrb[0].mxu0
    %v1210 = vadd.f32 0.0, %v1209
    %v1211 = vpop.f32.mrb[0].mxu0
    %v1212 = vpop.f32.mrb[0].mxu0
    %v1213 = vadd.f32 0.0, %v1212
    %v1214 = vpop.f32.mrb[0].mxu0
    %1215 = vdwg.mxu0
    %v1216 = vmul.f32 %v1202, %v57
    %v1217 = vmul.f32 %v1205, %v58
    %v1218 = vmul.f32 %v1210, %v59
    %v1219 = vmul.f32 %v1213, %v60
    %v1220 = vpack.c.bf16 %v1217, %v1216
    %v1221 = vpack.c.bf16 %v1219, %v1218
    %v1223 = vsel %vm125, %v1220, 0
    %v1226 = vsel %vm125, %v1221, 0
    %1228 = vmatprep.subr.bf16.mxu0 0
    %1229 = vmatpush1.bf16.msra.mxu0 %v1149
    %1230 = vmatprep.subr.bf16.mxu0 0
    %1231 = vmatpush1.bf16.msra.mxu0 %v1150
    %1232 = vmatprep.subr.bf16.mxu0 0
    %1233 = vmatpush1.bf16.msra.mxu0 0
    %1234 = vmatprep.subr.bf16.mxu0 0
    %1235 = vmatpush1.bf16.msra.mxu0 0
    %1236 = vmatprep.subr.bf16.mxu0 0
    %1237 = vmatpush1.bf16.msra.mxu0 0
    %1238 = vmatprep.subr.bf16.mxu0 0
    %1239 = vmatpush1.bf16.msra.mxu0 0
    %1240 = vmatprep.subr.bf16.mxu0 0
    %1241 = vmatpush1.bf16.msra.mxu0 0
    %1242 = vmatprep.subr.bf16.mxu0 0
    %1243 = vmatpush1.bf16.msra.mxu0 0
    %1244 = vmatprep.subr.bf16.mxu0 0
    %1245 = vmatpush1.bf16.msra.mxu0 0
    %1246 = vmatprep.subr.bf16.mxu0 0
    %1247 = vmatpush1.bf16.msra.mxu0 0
    %1248 = vmatprep.subr.bf16.mxu0 0
    %1249 = vmatpush1.bf16.msra.mxu0 0
    %1250 = vmatprep.subr.bf16.mxu0 0
    %1251 = vmatpush1.bf16.msra.mxu0 0
    %1252 = vmatprep.subr.bf16.mxu0 0
    %1253 = vmatpush1.bf16.msra.mxu0 0
    %1254 = vmatprep.subr.bf16.mxu0 0
    %1255 = vmatpush1.bf16.msra.mxu0 0
    %1256 = vmatprep.subr.bf16.mxu0 0
    %1257 = vmatpush1.bf16.msra.mxu0 0
    %1258 = vmatprep.subr.bf16.mxu0 0
    %1259 = vmatpush1.bf16.msra.mxu0 0
    %1260 = vmatprep.mubr.bf16.mxu0 0
    %1261 = vmatmul.mubr.bf16.gmra.mrb[0].mxu0 %v1223
    %v1262 = vpop.f32.mrb[0].mxu0
    %v1263 = vadd.f32 0.0, %v1262
    %v1264 = vpop.f32.mrb[0].mxu0
    %v1265 = vpop.f32.mrb[0].mxu0
    %v1266 = vadd.f32 0.0, %v1265
    %v1267 = vpop.f32.mrb[0].mxu0
    %1268 = vmatprep.mubr.bf16.mxu0 0
    %1269 = vmatmul.mubr.bf16.gmra.mrb[0].mxu0 %v1226
    %v1270 = vpop.f32.mrb[0].mxu0
    %v1271 = vadd.f32 0.0, %v1270
    %v1272 = vpop.f32.mrb[0].mxu0
    %v1273 = vpop.f32.mrb[0].mxu0
    %v1274 = vadd.f32 0.0, %v1273
    %v1275 = vpop.f32.mrb[0].mxu0
    %1276 = vdwg.mxu0
    %1279 = vrot.lane.b32.xlu0 %v1153, 64
    %v1280 = vpop.permute.xlu0 %1279
    %1281 = vrot.lane.b32.xlu0 %v1154, 64
    %v1282 = vpop.permute.xlu0 %1281
    %1285 = vrot.lane.b32.xlu0 %v1151, 64
    %v1286 = vpop.permute.xlu0 %1285
    %1287 = vrot.lane.b32.xlu0 %v1152, 64
    %v1288 = vpop.permute.xlu0 %1287
    %v1290 = vsel %vm377, %v1280, 0
    %v1293 = vsel %vm377, %v1282, 0
    %v1296 = vsel %vm377, %v1286, 0
    %v1299 = vsel %vm377, %v1288, 0
    %1301 = vmatprep.subr.bf16.mxu0 0
    %1302 = vmatpush1.bf16.xpose.msra.mxu0 %v1296
    %1303 = vmatprep.subr.bf16.mxu0 0
    %1304 = vmatpush1.bf16.xpose.msra.mxu0 %v1299
    %1305 = vmatprep.subr.bf16.mxu0 0
    %1306 = vmatpush1.bf16.xpose.msra.mxu0 0
    %1307 = vmatprep.subr.bf16.mxu0 0
    %1308 = vmatpush1.bf16.xpose.msra.mxu0 0
    %1309 = vmatprep.subr.bf16.mxu0 0
    %1310 = vmatpush1.bf16.xpose.msra.mxu0 0
    %1311 = vmatprep.subr.bf16.mxu0 0
    %1312 = vmatpush1.bf16.xpose.msra.mxu0 0
    %1313 = vmatprep.subr.bf16.mxu0 0
    %1314 = vmatpush1.bf16.xpose.msra.mxu0 0
    %1315 = vmatprep.subr.bf16.mxu0 0
    %1316 = vmatpush1.bf16.xpose.msra.mxu0 0
    %1317 = vmatprep.subr.bf16.mxu0 0
    %1318 = vmatpush1.bf16.xpose.msra.mxu0 0
    %1319 = vmatprep.subr.bf16.mxu0 0
    %1320 = vmatpush1.bf16.xpose.msra.mxu0 0
    %1321 = vmatprep.subr.bf16.mxu0 0
    %1322 = vmatpush1.bf16.xpose.msra.mxu0 0
    %1323 = vmatprep.subr.bf16.mxu0 0
    %1324 = vmatpush1.bf16.xpose.msra.mxu0 0
    %1325 = vmatprep.subr.bf16.mxu0 0
    %1326 = vmatpush1.bf16.xpose.msra.mxu0 0
    %1327 = vmatprep.subr.bf16.mxu0 0
    %1328 = vmatpush1.bf16.xpose.msra.mxu0 0
    %1329 = vmatprep.subr.bf16.mxu0 0
    %1330 = vmatpush1.bf16.xpose.msra.mxu0 0
    %1331 = vmatprep.subr.bf16.mxu0 0
    %1332 = vmatpush1.bf16.xpose.msra.mxu0 0
    %1333 = vmatprep.mubr.bf16.mxu0 0
    %1334 = vmatmul.mubr.bf16.gmra.mrb[0].mxu0 %v1290
    %v1335 = vpop.f32.mrb[0].mxu0
    %v1336 = vadd.f32 0.0, %v1335
    %v1337 = vpop.f32.mrb[0].mxu0
    %v1338 = vpop.f32.mrb[0].mxu0
    %v1339 = vadd.f32 0.0, %v1338
    %v1340 = vpop.f32.mrb[0].mxu0
    %1341 = vmatprep.mubr.bf16.mxu0 0
    %1342 = vmatmul.mubr.bf16.gmra.mrb[0].mxu0 %v1293
    %v1343 = vpop.f32.mrb[0].mxu0
    %v1344 = vadd.f32 0.0, %v1343
    %v1345 = vpop.f32.mrb[0].mxu0
    %v1346 = vpop.f32.mrb[0].mxu0
    %v1347 = vadd.f32 0.0, %v1346
    %v1348 = vpop.f32.mrb[0].mxu0
    %1349 = vdwg.mxu0
    %v1350 = vmul.f32 %v1336, %v57
    %v1351 = vmul.f32 %v1339, %v58
    %v1352 = vmul.f32 %v1344, %v59
    %v1353 = vmul.f32 %v1347, %v60
    %v1354 = vpack.c.bf16 %v1351, %v1350
    %v1355 = vpack.c.bf16 %v1353, %v1352
    %1358 = vrot.lane.b32.xlu0 %v1149, 64
    %v1359 = vpop.permute.xlu0 %1358
    %1360 = vrot.lane.b32.xlu0 %v1150, 64
    %v1361 = vpop.permute.xlu0 %1360
    %v1365 = vsel %vm125, %v1354, 0
    %v1368 = vsel %vm125, %v1355, 0
    %1370 = vmatprep.subr.bf16.mxu0 0
    %1371 = vmatpush1.bf16.msra.mxu0 %v1359
    %1372 = vmatprep.subr.bf16.mxu0 0
    %1373 = vmatpush1.bf16.msra.mxu0 %v1361
    %1374 = vmatprep.subr.bf16.mxu0 0
    %1375 = vmatpush1.bf16.msra.mxu0 0
    %1376 = vmatprep.subr.bf16.mxu0 0
    %1377 = vmatpush1.bf16.msra.mxu0 0
    %1378 = vmatprep.subr.bf16.mxu0 0
    %1379 = vmatpush1.bf16.msra.mxu0 0
    %1380 = vmatprep.subr.bf16.mxu0 0
    %1381 = vmatpush1.bf16.msra.mxu0 0
    %1382 = vmatprep.subr.bf16.mxu0 0
    %1383 = vmatpush1.bf16.msra.mxu0 0
    %1384 = vmatprep.subr.bf16.mxu0 0
    %1385 = vmatpush1.bf16.msra.mxu0 0
    %1386 = vmatprep.subr.bf16.mxu0 0
    %1387 = vmatpush1.bf16.msra.mxu0 0
    %1388 = vmatprep.subr.bf16.mxu0 0
    %1389 = vmatpush1.bf16.msra.mxu0 0
    %1390 = vmatprep.subr.bf16.mxu0 0
    %1391 = vmatpush1.bf16.msra.mxu0 0
    %1392 = vmatprep.subr.bf16.mxu0 0
    %1393 = vmatpush1.bf16.msra.mxu0 0
    %1394 = vmatprep.subr.bf16.mxu0 0
    %1395 = vmatpush1.bf16.msra.mxu0 0
    %1396 = vmatprep.subr.bf16.mxu0 0
    %1397 = vmatpush1.bf16.msra.mxu0 0
    %1398 = vmatprep.subr.bf16.mxu0 0
    %1399 = vmatpush1.bf16.msra.mxu0 0
    %1400 = vmatprep.subr.bf16.mxu0 0
    %1401 = vmatpush1.bf16.msra.mxu0 0
    %1402 = vmatprep.mubr.bf16.mxu0 0
    %1403 = vmatmul.mubr.bf16.gmra.mrb[0].mxu0 %v1365
    %v1404 = vpop.f32.mrb[0].mxu0
    %v1405 = vadd.f32 0.0, %v1404
    %v1406 = vpop.f32.mrb[0].mxu0
    %v1407 = vpop.f32.mrb[0].mxu0
    %v1408 = vadd.f32 0.0, %v1407
    %v1409 = vpop.f32.mrb[0].mxu0
    %1410 = vmatprep.mubr.bf16.mxu0 0
    %1411 = vmatmul.mubr.bf16.gmra.mrb[0].mxu0 %v1368
    %v1412 = vpop.f32.mrb[0].mxu0
    %v1413 = vadd.f32 0.0, %v1412
    %v1414 = vpop.f32.mrb[0].mxu0
    %v1415 = vpop.f32.mrb[0].mxu0
    %v1416 = vadd.f32 0.0, %v1415
    %v1417 = vpop.f32.mrb[0].mxu0
    %1418 = vdwg.mxu0
    %1423 = vrot.lane.b32.xlu0 %v1405, 64
    %v1424 = vpop.permute.xlu0 %1423
    %1425 = vrot.lane.b32.xlu0 %v1408, 64
    %v1426 = vpop.permute.xlu0 %1425
    %1427 = vrot.lane.b32.xlu0 %v1413, 64
    %v1428 = vpop.permute.xlu0 %1427
    %1429 = vrot.lane.b32.xlu0 %v1416, 64
    %v1430 = vpop.permute.xlu0 %1429
    %v1435 = vsel %vm377, %v1263, %v1424
    %v1436 = vsel %vm377, %v1266, %v1426
    %v1437 = vsel %vm377, %v1271, %v1428
    %v1438 = vsel %vm377, %v1274, %v1430
    %v1439 = vsub.f32 %v1435, %v686
    %v1440 = vsub.f32 %v1436, %v687
    %v1441 = vsub.f32 %v1437, %v688
    %v1442 = vsub.f32 %v1438, %v689
    %v1443 = vmul.f32 %v1439, 0.5
    %v1444 = vmul.f32 %v1440, 0.5
    %v1445 = vmul.f32 %v1441, 0.5
    %v1446 = vmul.f32 %v1442, 0.5
    %v1447 = vadd.f32 %v686, %v1443
    %v1448 = vadd.f32 %v687, %v1444
    %v1449 = vadd.f32 %v688, %v1445
    %v1450 = vadd.f32 %v689, %v1446
    %vm1451 = vcmp.ge.f32.partialorder %v1447, 1.0
    %vm1452 = vcmp.ge.f32.partialorder %v1448, 1.0
    %vm1453 = vcmp.ge.f32.partialorder %v1449, 1.0
    %vm1454 = vcmp.ge.f32.partialorder %v1450, 1.0
    %v1455 = vsel %vm1451, 1, 0
    %v1456 = vsel %vm1452, 1, 0
    %v1457 = vsel %vm1453, 1, 0
    %v1458 = vsel %vm1454, 1, 0
    %v1459 = vcvt.s32.f32 %v1455
    %v1460 = vcvt.s32.f32 %v1456
    %v1461 = vcvt.s32.f32 %v1457
    %v1462 = vcvt.s32.f32 %v1458
    %v1463 = vsub.f32 1.0, %v1459
    %v1464 = vsub.f32 1.0, %v1460
    %v1465 = vsub.f32 1.0, %v1461
    %v1466 = vsub.f32 1.0, %v1462
    %v1467 = vmul.f32 %v1447, %v1463
    %v1468 = vmul.f32 %v1448, %v1464
    %v1469 = vmul.f32 %v1449, %v1465
    %v1470 = vmul.f32 %v1450, %v1466
    %1471 = vmatprep.subr.mxu0 0.0
    %1472 = vmatpush1.msra.mxu0 %v1459
    %1473 = vmatprep.subr.mxu0 0.0
    %1474 = vmatpush1.msra.mxu0 %v1460
    %1475 = vmatprep.subr.mxu0 0.0
    %1476 = vmatpush1.msra.mxu0 %v1461
    %1477 = vmatprep.subr.mxu0 0.0
    %1478 = vmatpush1.msra.mxu0 %v1462
    %1479 = vmatprep.subr.mxu0 0.0
    %1480 = vmatpush1.msra.mxu0 0.0
    %1481 = vmatprep.subr.mxu0 0.0
    %1482 = vmatpush1.msra.mxu0 0.0
    %1483 = vmatprep.subr.mxu0 0.0
    %1484 = vmatpush1.msra.mxu0 0.0
    %1485 = vmatprep.subr.mxu0 0.0
    %1486 = vmatpush1.msra.mxu0 0.0
    %1487 = vmatprep.subr.mxu0 0.0
    %1488 = vmatpush1.msra.mxu0 0.0
    %1489 = vmatprep.subr.mxu0 0.0
    %1490 = vmatpush1.msra.mxu0 0.0
    %1491 = vmatprep.subr.mxu0 0.0
    %1492 = vmatpush1.msra.mxu0 0.0
    %1493 = vmatprep.subr.mxu0 0.0
    %1494 = vmatpush1.msra.mxu0 0.0
    %1495 = vmatprep.subr.mxu0 0.0
    %1496 = vmatpush1.msra.mxu0 0.0
    %1497 = vmatprep.subr.mxu0 0.0
    %1498 = vmatpush1.msra.mxu0 0.0
    %1499 = vmatprep.subr.mxu0 0.0
    %1500 = vmatpush1.msra.mxu0 0.0
    %1501 = vmatprep.subr.mxu0 0.0
    %1502 = vmatpush1.msra.mxu0 0.0
    %1503 = vmatprep.subr.mxu0 0.0
    %1504 = vmatpush1.msra.mxu0 0.0
    %1505 = vmatprep.subr.mxu0 0.0
    %1506 = vmatpush1.msra.mxu0 0.0
    %1507 = vmatprep.subr.mxu0 0.0
    %1508 = vmatpush1.msra.mxu0 0.0
    %1509 = vmatprep.subr.mxu0 0.0
    %1510 = vmatpush1.msra.mxu0 0.0
    %1511 = vmatprep.subr.mxu0 0.0
    %1512 = vmatpush1.msra.mxu0 0.0
    %1513 = vmatprep.subr.mxu0 0.0
    %1514 = vmatpush1.msra.mxu0 0.0
    %1515 = vmatprep.subr.mxu0 0.0
    %1516 = vmatpush1.msra.mxu0 0.0
    %1517 = vmatprep.subr.mxu0 0.0
    %1518 = vmatpush1.msra.mxu0 0.0
    %1519 = vmatprep.subr.mxu0 0.0
    %1520 = vmatpush1.msra.mxu0 0.0
    %1521 = vmatprep.subr.mxu0 0.0
    %1522 = vmatpush1.msra.mxu0 0.0
    %1523 = vmatprep.subr.mxu0 0.0
    %1524 = vmatpush1.msra.mxu0 0.0
    %1525 = vmatprep.subr.mxu0 0.0
    %1526 = vmatpush1.msra.mxu0 0.0
    %1527 = vmatprep.subr.mxu0 0.0
    %1528 = vmatpush1.msra.mxu0 0.0
    %1529 = vmatprep.subr.mxu0 0.0
    %1530 = vmatpush1.msra.mxu0 0.0
    %1531 = vmatprep.subr.mxu0 0.0
    %1532 = vmatpush1.msra.mxu0 0.0
    %1533 = vmatprep.subr.mxu0 0.0
    %1534 = vmatpush1.msra.mxu0 0.0
    %1535 = vmatprep.mubr.f32.mxu0 0.0
    %1536 = vmatmul.mubr.f32.gmra.mrb[0].mxu0 %v711
    %v1537 = vpop.f32.mrb[0].mxu0
    %v1538 = vadd.f32 %v693, %v1537
    %v1539 = vpop.f32.mrb[0].mxu0
    %1540 = vmatprep.mubr.f32.mxu0 0.0
    %1541 = vmatmul.mubr.f32.gmra.mrb[0].mxu0 %v714
    %v1542 = vpop.f32.mrb[0].mxu0
    %v1543 = vadd.f32 %v698, %v1542
    %v1544 = vpop.f32.mrb[0].mxu0
    %1545 = vmatprep.mubr.f32.mxu0 0.0
    %1546 = vmatmul.mubr.f32.gmra.mrb[0].mxu0 %v717
    %v1547 = vpop.f32.mrb[0].mxu0
    %v1548 = vadd.f32 %v703, %v1547
    %v1549 = vpop.f32.mrb[0].mxu0
    %1550 = vmatprep.mubr.f32.mxu0 0.0
    %1551 = vmatmul.mubr.f32.gmra.mrb[0].mxu0 %v720
    %v1552 = vpop.f32.mrb[0].mxu0
    %v1553 = vadd.f32 %v708, %v1552
    %v1554 = vpop.f32.mrb[0].mxu0
    %1555 = vdwg.mxu0
    %v1556 = vsub.f32 %v1538, %v895
    %v1557 = vsub.f32 %v1543, %v896
    %v1558 = vsub.f32 %v1548, %v897
    %v1559 = vsub.f32 %v1553, %v898
    %v1560 = vmul.f32 %v1556, 0.5
    %v1561 = vmul.f32 %v1557, 0.5
    %v1562 = vmul.f32 %v1558, 0.5
    %v1563 = vmul.f32 %v1559, 0.5
    %v1564 = vadd.f32 %v895, %v1560
    %v1565 = vadd.f32 %v896, %v1561
    %v1566 = vadd.f32 %v897, %v1562
    %v1567 = vadd.f32 %v898, %v1563
    %vm1568 = vcmp.ge.f32.partialorder %v1564, 1.0
    %vm1569 = vcmp.ge.f32.partialorder %v1565, 1.0
    %vm1570 = vcmp.ge.f32.partialorder %v1566, 1.0
    %vm1571 = vcmp.ge.f32.partialorder %v1567, 1.0
    %v1572 = vsel %vm1568, 1, 0
    %v1573 = vsel %vm1569, 1, 0
    %v1574 = vsel %vm1570, 1, 0
    %v1575 = vsel %vm1571, 1, 0
    %v1576 = vcvt.s32.f32 %v1572
    %v1577 = vcvt.s32.f32 %v1573
    %v1578 = vcvt.s32.f32 %v1574
    %v1579 = vcvt.s32.f32 %v1575
    %v1580 = vsub.f32 1.0, %v1576
    %v1581 = vsub.f32 1.0, %v1577
    %v1582 = vsub.f32 1.0, %v1578
    %v1583 = vsub.f32 1.0, %v1579
    %v1584 = vmul.f32 %v1564, %v1580
    %v1585 = vmul.f32 %v1565, %v1581
    %v1586 = vmul.f32 %v1566, %v1582
    %v1587 = vmul.f32 %v1567, %v1583
    %1592 = vrot.lane.b32.xlu0 %v1584, 64
    %v1593 = vpop.permute.xlu0 %1592
    %1594 = vrot.lane.b32.xlu0 %v1585, 64
    %v1595 = vpop.permute.xlu0 %1594
    %1596 = vrot.lane.b32.xlu0 %v1586, 64
    %v1597 = vpop.permute.xlu0 %1596
    %1598 = vrot.lane.b32.xlu0 %v1587, 64
    %v1599 = vpop.permute.xlu0 %1598
    %v1604 = vsub.f32 %v1538, %v1593
    %v1605 = vsub.f32 %v1543, %v1595
    %v1606 = vsub.f32 %v1548, %v1597
    %v1607 = vsub.f32 %v1553, %v1599
    %v1608 = vmul.f32 %v1604, 0.5
    %v1609 = vmul.f32 %v1605, 0.5
    %v1610 = vmul.f32 %v1606, 0.5
    %v1611 = vmul.f32 %v1607, 0.5
    %1616 = vrot.lane.b32.xlu0 %v1608, 64
    %v1617 = vpop.permute.xlu0 %1616
    %1618 = vrot.lane.b32.xlu0 %v1609, 64
    %v1619 = vpop.permute.xlu0 %1618
    %1620 = vrot.lane.b32.xlu0 %v1610, 64
    %v1621 = vpop.permute.xlu0 %1620
    %1622 = vrot.lane.b32.xlu0 %v1611, 64
    %v1623 = vpop.permute.xlu0 %1622
    %v1628 = vadd.f32 %v1584, %v1617
    %v1629 = vadd.f32 %v1585, %v1619
    %v1630 = vadd.f32 %v1586, %v1621
    %v1631 = vadd.f32 %v1587, %v1623
    %vm1632 = vcmp.ge.f32.partialorder %v1628, 1.0
    %vm1633 = vcmp.ge.f32.partialorder %v1629, 1.0
    %vm1634 = vcmp.ge.f32.partialorder %v1630, 1.0
    %vm1635 = vcmp.ge.f32.partialorder %v1631, 1.0
    %v1636 = vsel %vm1632, 1, 0
    %v1637 = vsel %vm1633, 1, 0
    %v1638 = vsel %vm1634, 1, 0
    %v1639 = vsel %vm1635, 1, 0
    %v1640 = vcvt.s32.f32 %v1636
    %v1641 = vcvt.s32.f32 %v1637
    %v1642 = vcvt.s32.f32 %v1638
    %v1643 = vcvt.s32.f32 %v1639
    %v1644 = vsub.f32 1.0, %v1640
    %v1645 = vsub.f32 1.0, %v1641
    %v1646 = vsub.f32 1.0, %v1642
    %v1647 = vsub.f32 1.0, %v1643
    %v1648 = vmul.f32 %v1628, %v1644
    %v1649 = vmul.f32 %v1629, %v1645
    %v1650 = vmul.f32 %v1630, %v1646
    %v1651 = vmul.f32 %v1631, %v1647
    %1656 = vrot.lane.b32.xlu0 %v1640, 64
    %v1657 = vpop.permute.xlu0 %1656
    %1658 = vrot.lane.b32.xlu0 %v1641, 64
    %v1659 = vpop.permute.xlu0 %1658
    %1660 = vrot.lane.b32.xlu0 %v1642, 64
    %v1661 = vpop.permute.xlu0 %1660
    %1662 = vrot.lane.b32.xlu0 %v1643, 64
    %v1663 = vpop.permute.xlu0 %1662
    %v1668 = vsel %vm377, %v1576, %v1657
    %v1669 = vsel %vm377, %v1577, %v1659
    %v1670 = vsel %vm377, %v1578, %v1661
    %v1671 = vsel %vm377, %v1579, %v1663
    %s1672 = scalar_lea.vmem [#allocation2], 32
    %1673 = vst [vmem:[%s1672] sm:$0xff] %v1668
    %1674 = vst [vmem:[%s1672 + $0x8] sm:$0xff] %v1669
    %1675 = vst [vmem:[%s1672 + $0x10] sm:$0xff] %v1670
    %1676 = vst [vmem:[%s1672 + $0x18] sm:$0xff] %v1671
    %s1677 = scalar_lea.vmem %s0, 64
    %v1678 = vld [vmem:[%s1677] sm:$0xff]
    %v1679 = vld [vmem:[%s1677 + $0x8] sm:$0xff]
    %v1680 = vld [vmem:[%s1677 + $0x10] sm:$0xff]
    %v1681 = vld [vmem:[%s1677 + $0x18] sm:$0xff]
    %1682 = vmatprep.subr.mxu0 0.0
    %1683 = vmatpush1.msra.mxu0 %v1678
    %1684 = vmatprep.subr.mxu0 0.0
    %1685 = vmatpush1.msra.mxu0 %v1679
    %1686 = vmatprep.subr.mxu0 0.0
    %1687 = vmatpush1.msra.mxu0 %v1680
    %1688 = vmatprep.subr.mxu0 0.0
    %1689 = vmatpush1.msra.mxu0 %v1681
    %1690 = vmatprep.subr.mxu0 0.0
    %1691 = vmatpush1.msra.mxu0 0.0
    %1692 = vmatprep.subr.mxu0 0.0
    %1693 = vmatpush1.msra.mxu0 0.0
    %1694 = vmatprep.subr.mxu0 0.0
    %1695 = vmatpush1.msra.mxu0 0.0
    %1696 = vmatprep.subr.mxu0 0.0
    %1697 = vmatpush1.msra.mxu0 0.0
    %1698 = vmatprep.subr.mxu0 0.0
    %1699 = vmatpush1.msra.mxu0 0.0
    %1700 = vmatprep.subr.mxu0 0.0
    %1701 = vmatpush1.msra.mxu0 0.0
    %1702 = vmatprep.subr.mxu0 0.0
    %1703 = vmatpush1.msra.mxu0 0.0
    %1704 = vmatprep.subr.mxu0 0.0
    %1705 = vmatpush1.msra.mxu0 0.0
    %1706 = vmatprep.subr.mxu0 0.0
    %1707 = vmatpush1.msra.mxu0 0.0
    %1708 = vmatprep.subr.mxu0 0.0
    %1709 = vmatpush1.msra.mxu0 0.0
    %1710 = vmatprep.subr.mxu0 0.0
    %1711 = vmatpush1.msra.mxu0 0.0
    %1712 = vmatprep.subr.mxu0 0.0
    %1713 = vmatpush1.msra.mxu0 0.0
    %1714 = vmatprep.subr.mxu0 0.0
    %1715 = vmatpush1.msra.mxu0 0.0
    %1716 = vmatprep.subr.mxu0 0.0
    %1717 = vmatpush1.msra.mxu0 0.0
    %1718 = vmatprep.subr.mxu0 0.0
    %1719 = vmatpush1.msra.mxu0 0.0
    %1720 = vmatprep.subr.mxu0 0.0
    %1721 = vmatpush1.msra.mxu0 0.0
    %1722 = vmatprep.subr.mxu0 0.0
    %1723 = vmatpush1.msra.mxu0 0.0
    %1724 = vmatprep.subr.mxu0 0.0
    %1725 = vmatpush1.msra.mxu0 0.0
    %1726 = vmatprep.subr.mxu0 0.0
    %1727 = vmatpush1.msra.mxu0 0.0
    %1728 = vmatprep.subr.mxu0 0.0
    %1729 = vmatpush1.msra.mxu0 0.0
    %1730 = vmatprep.subr.mxu0 0.0
    %1731 = vmatpush1.msra.mxu0 0.0
    %1732 = vmatprep.subr.mxu0 0.0
    %1733 = vmatpush1.msra.mxu0 0.0
    %1734 = vmatprep.subr.mxu0 0.0
    %1735 = vmatpush1.msra.mxu0 0.0
    %1736 = vmatprep.subr.mxu0 0.0
    %1737 = vmatpush1.msra.mxu0 0.0
    %1738 = vmatprep.subr.mxu0 0.0
    %1739 = vmatpush1.msra.mxu0 0.0
    %1740 = vmatprep.subr.mxu0 0.0
    %1741 = vmatpush1.msra.mxu0 0.0
    %1742 = vmatprep.subr.mxu0 0.0
    %1743 = vmatpush1.msra.mxu0 0.0
    %1744 = vmatprep.subr.mxu0 0.0
    %1745 = vmatpush1.msra.mxu0 0.0
    %1746 = vmatprep.mubr.f32.mxu0 0.0
    %1747 = vmatmul.mubr.f32.gmra.mrb[0].mxu0 %v127
    %v1748 = vpop.f32.mrb[0].mxu0
    %v1749 = vadd.f32 %v68, %v1748
    %v1750 = vpop.f32.mrb[0].mxu0
    %1751 = vmatprep.mubr.f32.mxu0 0.0
    %1752 = vmatmul.mubr.f32.gmra.mrb[0].mxu0 %v130
    %v1753 = vpop.f32.mrb[0].mxu0
    %v1754 = vadd.f32 %v73, %v1753
    %v1755 = vpop.f32.mrb[0].mxu0
    %1756 = vmatprep.mubr.f32.mxu0 0.0
    %1757 = vmatmul.mubr.f32.gmra.mrb[0].mxu0 %v133
    %v1758 = vpop.f32.mrb[0].mxu0
    %v1759 = vadd.f32 %v78, %v1758
    %v1760 = vpop.f32.mrb[0].mxu0
    %1761 = vmatprep.mubr.f32.mxu0 0.0
    %1762 = vmatmul.mubr.f32.gmra.mrb[0].mxu0 %v136
    %v1763 = vpop.f32.mrb[0].mxu0
    %v1764 = vadd.f32 %v83, %v1763
    %v1765 = vpop.f32.mrb[0].mxu0
    %1766 = vmatprep.mubr.f32.mxu0 0.0
    %1767 = vmatmul.mubr.f32.gmra.mrb[0].mxu0 %v139
    %v1768 = vpop.f32.mrb[0].mxu0
    %v1769 = vadd.f32 %v88, %v1768
    %v1770 = vpop.f32.mrb[0].mxu0
    %1771 = vmatprep.mubr.f32.mxu0 0.0
    %1772 = vmatmul.mubr.f32.gmra.mrb[0].mxu0 %v142
    %v1773 = vpop.f32.mrb[0].mxu0
    %v1774 = vadd.f32 %v93, %v1773
    %v1775 = vpop.f32.mrb[0].mxu0
    %1776 = vmatprep.mubr.f32.mxu0 0.0
    %1777 = vmatmul.mubr.f32.gmra.mrb[0].mxu0 %v145
    %v1778 = vpop.f32.mrb[0].mxu0
    %v1779 = vadd.f32 %v98, %v1778
    %v1780 = vpop.f32.mrb[0].mxu0
    %1781 = vmatprep.mubr.f32.mxu0 0.0
    %1782 = vmatmul.mubr.f32.gmra.mrb[0].mxu0 %v148
    %v1783 = vpop.f32.mrb[0].mxu0
    %v1784 = vadd.f32 %v103, %v1783
    %v1785 = vpop.f32.mrb[0].mxu0
    %1786 = vmatprep.mubr.f32.mxu0 0.0
    %1787 = vmatmul.mubr.f32.gmra.mrb[0].mxu0 %v151
    %v1788 = vpop.f32.mrb[0].mxu0
    %v1789 = vadd.f32 %v108, %v1788
    %v1790 = vpop.f32.mrb[0].mxu0
    %1791 = vmatprep.mubr.f32.mxu0 0.0
    %1792 = vmatmul.mubr.f32.gmra.mrb[0].mxu0 %v154
    %v1793 = vpop.f32.mrb[0].mxu0
    %v1794 = vadd.f32 %v113, %v1793
    %v1795 = vpop.f32.mrb[0].mxu0
    %1796 = vmatprep.mubr.f32.mxu0 0.0
    %1797 = vmatmul.mubr.f32.gmra.mrb[0].mxu0 %v157
    %v1798 = vpop.f32.mrb[0].mxu0
    %v1799 = vadd.f32 %v118, %v1798
    %v1800 = vpop.f32.mrb[0].mxu0
    %1801 = vmatprep.mubr.f32.mxu0 0.0
    %1802 = vmatmul.mubr.f32.gmra.mrb[0].mxu0 %v160
    %v1803 = vpop.f32.mrb[0].mxu0
    %v1804 = vadd.f32 %v123, %v1803
    %v1805 = vpop.f32.mrb[0].mxu0
    %1806 = vdwg.mxu0
    %v1807 = vsub.f32 %v1749, %v1137
    %v1808 = vsub.f32 %v1754, %v1138
    %v1809 = vsub.f32 %v1759, %v1139
    %v1810 = vsub.f32 %v1764, %v1140
    %v1811 = vsub.f32 %v1769, %v1141
    %v1812 = vsub.f32 %v1774, %v1142
    %v1813 = vsub.f32 %v1779, %v1143
    %v1814 = vsub.f32 %v1784, %v1144
    %v1815 = vsub.f32 %v1789, %v1145
    %v1816 = vsub.f32 %v1794, %v1146
    %v1817 = vsub.f32 %v1799, %v1147
    %v1818 = vsub.f32 %v1804, %v1148
    %v1819 = vmul.f32 %v1807, 0.5
    %v1820 = vmul.f32 %v1808, 0.5
    %v1821 = vmul.f32 %v1809, 0.5
    %v1822 = vmul.f32 %v1810, 0.5
    %v1823 = vmul.f32 %v1811, 0.5
    %v1824 = vmul.f32 %v1812, 0.5
    %v1825 = vmul.f32 %v1813, 0.5
    %v1826 = vmul.f32 %v1814, 0.5
    %v1827 = vmul.f32 %v1815, 0.5
    %v1828 = vmul.f32 %v1816, 0.5
    %v1829 = vmul.f32 %v1817, 0.5
    %v1830 = vmul.f32 %v1818, 0.5
    %v1831 = vadd.f32 %v1137, %v1819
    %v1832 = vadd.f32 %v1138, %v1820
    %v1833 = vadd.f32 %v1139, %v1821
    %v1834 = vadd.f32 %v1140, %v1822
    %v1835 = vadd.f32 %v1141, %v1823
    %v1836 = vadd.f32 %v1142, %v1824
    %v1837 = vadd.f32 %v1143, %v1825
    %v1838 = vadd.f32 %v1144, %v1826
    %v1839 = vadd.f32 %v1145, %v1827
    %v1840 = vadd.f32 %v1146, %v1828
    %v1841 = vadd.f32 %v1147, %v1829
    %v1842 = vadd.f32 %v1148, %v1830
    %vm1843 = vcmp.ge.f32.partialorder %v1831, 1.0
    %vm1844 = vcmp.ge.f32.partialorder %v1832, 1.0
    %vm1845 = vcmp.ge.f32.partialorder %v1833, 1.0
    %vm1846 = vcmp.ge.f32.partialorder %v1834, 1.0
    %vm1847 = vcmp.ge.f32.partialorder %v1835, 1.0
    %vm1848 = vcmp.ge.f32.partialorder %v1836, 1.0
    %vm1849 = vcmp.ge.f32.partialorder %v1837, 1.0
    %vm1850 = vcmp.ge.f32.partialorder %v1838, 1.0
    %vm1851 = vcmp.ge.f32.partialorder %v1839, 1.0
    %vm1852 = vcmp.ge.f32.partialorder %v1840, 1.0
    %vm1853 = vcmp.ge.f32.partialorder %v1841, 1.0
    %vm1854 = vcmp.ge.f32.partialorder %v1842, 1.0
    %v1855 = vsel %vm1843, 1, 0
    %v1856 = vsel %vm1844, 1, 0
    %v1857 = vsel %vm1845, 1, 0
    %v1858 = vsel %vm1846, 1, 0
    %v1859 = vsel %vm1847, 1, 0
    %v1860 = vsel %vm1848, 1, 0
    %v1861 = vsel %vm1849, 1, 0
    %v1862 = vsel %vm1850, 1, 0
    %v1863 = vsel %vm1851, 1, 0
    %v1864 = vsel %vm1852, 1, 0
    %v1865 = vsel %vm1853, 1, 0
    %v1866 = vsel %vm1854, 1, 0
    %v1867 = vcvt.s32.f32 %v1855
    %v1868 = vcvt.s32.f32 %v1856
    %v1869 = vcvt.s32.f32 %v1857
    %v1870 = vcvt.s32.f32 %v1858
    %v1871 = vcvt.s32.f32 %v1859
    %v1872 = vcvt.s32.f32 %v1860
    %v1873 = vcvt.s32.f32 %v1861
    %v1874 = vcvt.s32.f32 %v1862
    %v1875 = vcvt.s32.f32 %v1863
    %v1876 = vcvt.s32.f32 %v1864
    %v1877 = vcvt.s32.f32 %v1865
    %v1878 = vcvt.s32.f32 %v1866
    %v1879 = vsub.f32 1.0, %v1867
    %v1880 = vsub.f32 1.0, %v1868
    %v1881 = vsub.f32 1.0, %v1869
    %v1882 = vsub.f32 1.0, %v1870
    %v1883 = vsub.f32 1.0, %v1871
    %v1884 = vsub.f32 1.0, %v1872
    %v1885 = vsub.f32 1.0, %v1873
    %v1886 = vsub.f32 1.0, %v1874
    %v1887 = vsub.f32 1.0, %v1875
    %v1888 = vsub.f32 1.0, %v1876
    %v1889 = vsub.f32 1.0, %v1877
    %v1890 = vsub.f32 1.0, %v1878
    %v1891 = vmul.f32 %v1831, %v1879
    %v1892 = vmul.f32 %v1832, %v1880
    %v1893 = vmul.f32 %v1833, %v1881
    %v1894 = vmul.f32 %v1834, %v1882
    %v1895 = vmul.f32 %v1835, %v1883
    %v1896 = vmul.f32 %v1836, %v1884
    %v1897 = vmul.f32 %v1837, %v1885
    %v1898 = vmul.f32 %v1838, %v1886
    %v1899 = vmul.f32 %v1839, %v1887
    %v1900 = vmul.f32 %v1840, %v1888
    %v1901 = vmul.f32 %v1841, %v1889
    %v1902 = vmul.f32 %v1842, %v1890
    %v1903 = vpack.c.bf16 %v1868, %v1867
    %v1904 = vpack.c.bf16 %v1870, %v1869
    %v1905 = vpack.c.bf16 %v1872, %v1871
    %v1906 = vpack.c.bf16 %v1874, %v1873
    %v1907 = vpack.c.bf16 %v1876, %v1875
    %v1908 = vpack.c.bf16 %v1878, %v1877
    %v1910 = vsel %vm377, %v1907, 0
    %v1913 = vsel %vm377, %v1908, 0
    %v1916 = vsel %vm377, %v1905, 0
    %v1919 = vsel %vm377, %v1906, 0
    %1921 = vmatprep.subr.bf16.mxu0 0
    %1922 = vmatpush1.bf16.xpose.msra.mxu0 %v1916
    %1923 = vmatprep.subr.bf16.mxu0 0
    %1924 = vmatpush1.bf16.xpose.msra.mxu0 %v1919
    %1925 = vmatprep.subr.bf16.mxu0 0
    %1926 = vmatpush1.bf16.xpose.msra.mxu0 0
    %1927 = vmatprep.subr.bf16.mxu0 0
    %1928 = vmatpush1.bf16.xpose.msra.mxu0 0
    %1929 = vmatprep.subr.bf16.mxu0 0
    %1930 = vmatpush1.bf16.xpose.msra.mxu0 0
    %1931 = vmatprep.subr.bf16.mxu0 0
    %1932 = vmatpush1.bf16.xpose.msra.mxu0 0
    %1933 = vmatprep.subr.bf16.mxu0 0
    %1934 = vmatpush1.bf16.xpose.msra.mxu0 0
    %1935 = vmatprep.subr.bf16.mxu0 0
    %1936 = vmatpush1.bf16.xpose.msra.mxu0 0
    %1937 = vmatprep.subr.bf16.mxu0 0
    %1938 = vmatpush1.bf16.xpose.msra.mxu0 0
    %1939 = vmatprep.subr.bf16.mxu0 0
    %1940 = vmatpush1.bf16.xpose.msra.mxu0 0
    %1941 = vmatprep.subr.bf16.mxu0 0
    %1942 = vmatpush1.bf16.xpose.msra.mxu0 0
    %1943 = vmatprep.subr.bf16.mxu0 0
    %1944 = vmatpush1.bf16.xpose.msra.mxu0 0
    %1945 = vmatprep.subr.bf16.mxu0 0
    %1946 = vmatpush1.bf16.xpose.msra.mxu0 0
    %1947 = vmatprep.subr.bf16.mxu0 0
    %1948 = vmatpush1.bf16.xpose.msra.mxu0 0
    %1949 = vmatprep.subr.bf16.mxu0 0
    %1950 = vmatpush1.bf16.xpose.msra.mxu0 0
    %1951 = vmatprep.subr.bf16.mxu0 0
    %1952 = vmatpush1.bf16.xpose.msra.mxu0 0
    %1953 = vmatprep.mubr.bf16.mxu0 0
    %1954 = vmatmul.mubr.bf16.gmra.mrb[0].mxu0 %v1910
    %v1955 = vpop.f32.mrb[0].mxu0
    %v1956 = vadd.f32 0.0, %v1955
    %v1957 = vpop.f32.mrb[0].mxu0
    %v1958 = vpop.f32.mrb[0].mxu0
    %v1959 = vadd.f32 0.0, %v1958
    %v1960 = vpop.f32.mrb[0].mxu0
    %1961 = vmatprep.mubr.bf16.mxu0 0
    %1962 = vmatmul.mubr.bf16.gmra.mrb[0].mxu0 %v1913
    %v1963 = vpop.f32.mrb[0].mxu0
    %v1964 = vadd.f32 0.0, %v1963
    %v1965 = vpop.f32.mrb[0].mxu0
    %v1966 = vpop.f32.mrb[0].mxu0
    %v1967 = vadd.f32 0.0, %v1966
    %v1968 = vpop.f32.mrb[0].mxu0
    %1969 = vdwg.mxu0
    %v1970 = vmul.f32 %v1956, %v57
    %v1971 = vmul.f32 %v1959, %v58
    %v1972 = vmul.f32 %v1964, %v59
    %v1973 = vmul.f32 %v1967, %v60
    %v1974 = vpack.c.bf16 %v1971, %v1970
    %v1975 = vpack.c.bf16 %v1973, %v1972
    %v1977 = vsel %vm125, %v1974, 0
    %v1980 = vsel %vm125, %v1975, 0
    %1982 = vmatprep.subr.bf16.mxu0 0
    %1983 = vmatpush1.bf16.msra.mxu0 %v1903
    %1984 = vmatprep.subr.bf16.mxu0 0
    %1985 = vmatpush1.bf16.msra.mxu0 %v1904
    %1986 = vmatprep.subr.bf16.mxu0 0
    %1987 = vmatpush1.bf16.msra.mxu0 0
    %1988 = vmatprep.subr.bf16.mxu0 0
    %1989 = vmatpush1.bf16.msra.mxu0 0
    %1990 = vmatprep.subr.bf16.mxu0 0
    %1991 = vmatpush1.bf16.msra.mxu0 0
    %1992 = vmatprep.subr.bf16.mxu0 0
    %1993 = vmatpush1.bf16.msra.mxu0 0
    %1994 = vmatprep.subr.bf16.mxu0 0
    %1995 = vmatpush1.bf16.msra.mxu0 0
    %1996 = vmatprep.subr.bf16.mxu0 0
    %1997 = vmatpush1.bf16.msra.mxu0 0
    %1998 = vmatprep.subr.bf16.mxu0 0
    %1999 = vmatpush1.bf16.msra.mxu0 0
    %2000 = vmatprep.subr.bf16.mxu0 0
    %2001 = vmatpush1.bf16.msra.mxu0 0
    %2002 = vmatprep.subr.bf16.mxu0 0
    %2003 = vmatpush1.bf16.msra.mxu0 0
    %2004 = vmatprep.subr.bf16.mxu0 0
    %2005 = vmatpush1.bf16.msra.mxu0 0
    %2006 = vmatprep.subr.bf16.mxu0 0
    %2007 = vmatpush1.bf16.msra.mxu0 0
    %2008 = vmatprep.subr.bf16.mxu0 0
    %2009 = vmatpush1.bf16.msra.mxu0 0
    %2010 = vmatprep.subr.bf16.mxu0 0
    %2011 = vmatpush1.bf16.msra.mxu0 0
    %2012 = vmatprep.subr.bf16.mxu0 0
    %2013 = vmatpush1.bf16.msra.mxu0 0
    %2014 = vmatprep.mubr.bf16.mxu0 0
    %2015 = vmatmul.mubr.bf16.gmra.mrb[0].mxu0 %v1977
    %v2016 = vpop.f32.mrb[0].mxu0
    %v2017 = vadd.f32 0.0, %v2016
    %v2018 = vpop.f32.mrb[0].mxu0
    %v2019 = vpop.f32.mrb[0].mxu0
    %v2020 = vadd.f32 0.0, %v2019
    %v2021 = vpop.f32.mrb[0].mxu0
    %2022 = vmatprep.mubr.bf16.mxu0 0
    %2023 = vmatmul.mubr.bf16.gmra.mrb[0].mxu0 %v1980
    %v2024 = vpop.f32.mrb[0].mxu0
    %v2025 = vadd.f32 0.0, %v2024
    %v2026 = vpop.f32.mrb[0].mxu0
    %v2027 = vpop.f32.mrb[0].mxu0
    %v2028 = vadd.f32 0.0, %v2027
    %v2029 = vpop.f32.mrb[0].mxu0
    %2030 = vdwg.mxu0
    %2033 = vrot.lane.b32.xlu0 %v1907, 64
    %v2034 = vpop.permute.xlu0 %2033
    %2035 = vrot.lane.b32.xlu0 %v1908, 64
    %v2036 = vpop.permute.xlu0 %2035
    %2039 = vrot.lane.b32.xlu0 %v1905, 64
    %v2040 = vpop.permute.xlu0 %2039
    %2041 = vrot.lane.b32.xlu0 %v1906, 64
    %v2042 = vpop.permute.xlu0 %2041
    %v2044 = vsel %vm377, %v2034, 0
    %v2047 = vsel %vm377, %v2036, 0
    %v2050 = vsel %vm377, %v2040, 0
    %v2053 = vsel %vm377, %v2042, 0
    %2055 = vmatprep.subr.bf16.mxu0 0
    %2056 = vmatpush1.bf16.xpose.msra.mxu0 %v2050
    %2057 = vmatprep.subr.bf16.mxu0 0
    %2058 = vmatpush1.bf16.xpose.msra.mxu0 %v2053
    %2059 = vmatprep.subr.bf16.mxu0 0
    %2060 = vmatpush1.bf16.xpose.msra.mxu0 0
    %2061 = vmatprep.subr.bf16.mxu0 0
    %2062 = vmatpush1.bf16.xpose.msra.mxu0 0
    %2063 = vmatprep.subr.bf16.mxu0 0
    %2064 = vmatpush1.bf16.xpose.msra.mxu0 0
    %2065 = vmatprep.subr.bf16.mxu0 0
    %2066 = vmatpush1.bf16.xpose.msra.mxu0 0
    %2067 = vmatprep.subr.bf16.mxu0 0
    %2068 = vmatpush1.bf16.xpose.msra.mxu0 0
    %2069 = vmatprep.subr.bf16.mxu0 0
    %2070 = vmatpush1.bf16.xpose.msra.mxu0 0
    %2071 = vmatprep.subr.bf16.mxu0 0
    %2072 = vmatpush1.bf16.xpose.msra.mxu0 0
    %2073 = vmatprep.subr.bf16.mxu0 0
    %2074 = vmatpush1.bf16.xpose.msra.mxu0 0
    %2075 = vmatprep.subr.bf16.mxu0 0
    %2076 = vmatpush1.bf16.xpose.msra.mxu0 0
    %2077 = vmatprep.subr.bf16.mxu0 0
    %2078 = vmatpush1.bf16.xpose.msra.mxu0 0
    %2079 = vmatprep.subr.bf16.mxu0 0
    %2080 = vmatpush1.bf16.xpose.msra.mxu0 0
    %2081 = vmatprep.subr.bf16.mxu0 0
    %2082 = vmatpush1.bf16.xpose.msra.mxu0 0
    %2083 = vmatprep.subr.bf16.mxu0 0
    %2084 = vmatpush1.bf16.xpose.msra.mxu0 0
    %2085 = vmatprep.subr.bf16.mxu0 0
    %2086 = vmatpush1.bf16.xpose.msra.mxu0 0
    %2087 = vmatprep.mubr.bf16.mxu0 0
    %2088 = vmatmul.mubr.bf16.gmra.mrb[0].mxu0 %v2044
    %v2089 = vpop.f32.mrb[0].mxu0
    %v2090 = vadd.f32 0.0, %v2089
    %v2091 = vpop.f32.mrb[0].mxu0
    %v2092 = vpop.f32.mrb[0].mxu0
    %v2093 = vadd.f32 0.0, %v2092
    %v2094 = vpop.f32.mrb[0].mxu0
    %2095 = vmatprep.mubr.bf16.mxu0 0
    %2096 = vmatmul.mubr.bf16.gmra.mrb[0].mxu0 %v2047
    %v2097 = vpop.f32.mrb[0].mxu0
    %v2098 = vadd.f32 0.0, %v2097
    %v2099 = vpop.f32.mrb[0].mxu0
    %v2100 = vpop.f32.mrb[0].mxu0
    %v2101 = vadd.f32 0.0, %v2100
    %v2102 = vpop.f32.mrb[0].mxu0
    %2103 = vdwg.mxu0
    %v2104 = vmul.f32 %v2090, %v57
    %v2105 = vmul.f32 %v2093, %v58
    %v2106 = vmul.f32 %v2098, %v59
    %v2107 = vmul.f32 %v2101, %v60
    %v2108 = vpack.c.bf16 %v2105, %v2104
    %v2109 = vpack.c.bf16 %v2107, %v2106
    %2112 = vrot.lane.b32.xlu0 %v1903, 64
    %v2113 = vpop.permute.xlu0 %2112
    %2114 = vrot.lane.b32.xlu0 %v1904, 64
    %v2115 = vpop.permute.xlu0 %2114
    %v2119 = vsel %vm125, %v2108, 0
    %v2122 = vsel %vm125, %v2109, 0
    %2124 = vmatprep.subr.bf16.mxu0 0
    %2125 = vmatpush1.bf16.msra.mxu0 %v2113
    %2126 = vmatprep.subr.bf16.mxu0 0
    %2127 = vmatpush1.bf16.msra.mxu0 %v2115
    %2128 = vmatprep.subr.bf16.mxu0 0
    %2129 = vmatpush1.bf16.msra.mxu0 0
    %2130 = vmatprep.subr.bf16.mxu0 0
    %2131 = vmatpush1.bf16.msra.mxu0 0
    %2132 = vmatprep.subr.bf16.mxu0 0
    %2133 = vmatpush1.bf16.msra.mxu0 0
    %2134 = vmatprep.subr.bf16.mxu0 0
    %2135 = vmatpush1.bf16.msra.mxu0 0
    %2136 = vmatprep.subr.bf16.mxu0 0
    %2137 = vmatpush1.bf16.msra.mxu0 0
    %2138 = vmatprep.subr.bf16.mxu0 0
    %2139 = vmatpush1.bf16.msra.mxu0 0
    %2140 = vmatprep.subr.bf16.mxu0 0
    %2141 = vmatpush1.bf16.msra.mxu0 0
    %2142 = vmatprep.subr.bf16.mxu0 0
    %2143 = vmatpush1.bf16.msra.mxu0 0
    %2144 = vmatprep.subr.bf16.mxu0 0
    %2145 = vmatpush1.bf16.msra.mxu0 0
    %2146 = vmatprep.subr.bf16.mxu0 0
    %2147 = vmatpush1.bf16.msra.mxu0 0
    %2148 = vmatprep.subr.bf16.mxu0 0
    %2149 = vmatpush1.bf16.msra.mxu0 0
    %2150 = vmatprep.subr.bf16.mxu0 0
    %2151 = vmatpush1.bf16.msra.mxu0 0
    %2152 = vmatprep.subr.bf16.mxu0 0
    %2153 = vmatpush1.bf16.msra.mxu0 0
    %2154 = vmatprep.subr.bf16.mxu0 0
    %2155 = vmatpush1.bf16.msra.mxu0 0
    %2156 = vmatprep.mubr.bf16.mxu0 0
    %2157 = vmatmul.mubr.bf16.gmra.mrb[0].mxu0 %v2119
    %v2158 = vpop.f32.mrb[0].mxu0
    %v2159 = vadd.f32 0.0, %v2158
    %v2160 = vpop.f32.mrb[0].mxu0
    %v2161 = vpop.f32.mrb[0].mxu0
    %v2162 = vadd.f32 0.0, %v2161
    %v2163 = vpop.f32.mrb[0].mxu0
    %2164 = vmatprep.mubr.bf16.mxu0 0
    %2165 = vmatmul.mubr.bf16.gmra.mrb[0].mxu0 %v2122
    %v2166 = vpop.f32.mrb[0].mxu0
    %v2167 = vadd.f32 0.0, %v2166
    %v2168 = vpop.f32.mrb[0].mxu0
    %v2169 = vpop.f32.mrb[0].mxu0
    %v2170 = vadd.f32 0.0, %v2169
    %v2171 = vpop.f32.mrb[0].mxu0
    %2172 = vdwg.mxu0
    %2177 = vrot.lane.b32.xlu0 %v2159, 64
    %v2178 = vpop.permute.xlu0 %2177
    %2179 = vrot.lane.b32.xlu0 %v2162, 64
    %v2180 = vpop.permute.xlu0 %2179
    %2181 = vrot.lane.b32.xlu0 %v2167, 64
    %v2182 = vpop.permute.xlu0 %2181
    %2183 = vrot.lane.b32.xlu0 %v2170, 64
    %v2184 = vpop.permute.xlu0 %2183
    %v2189 = vsel %vm377, %v2017, %v2178
    %v2190 = vsel %vm377, %v2020, %v2180
    %v2191 = vsel %vm377, %v2025, %v2182
    %v2192 = vsel %vm377, %v2028, %v2184
    %v2193 = vsub.f32 %v2189, %v1467
    %v2194 = vsub.f32 %v2190, %v1468
    %v2195 = vsub.f32 %v2191, %v1469
    %v2196 = vsub.f32 %v2192, %v1470
    %v2197 = vmul.f32 %v2193, 0.5
    %v2198 = vmul.f32 %v2194, 0.5
    %v2199 = vmul.f32 %v2195, 0.5
    %v2200 = vmul.f32 %v2196, 0.5
    %v2201 = vadd.f32 %v1467, %v2197
    %v2202 = vadd.f32 %v1468, %v2198
    %v2203 = vadd.f32 %v1469, %v2199
    %v2204 = vadd.f32 %v1470, %v2200
    %vm2205 = vcmp.ge.f32.partialorder %v2201, 1.0
    %vm2206 = vcmp.ge.f32.partialorder %v2202, 1.0
    %vm2207 = vcmp.ge.f32.partialorder %v2203, 1.0
    %vm2208 = vcmp.ge.f32.partialorder %v2204, 1.0
    %v2209 = vsel %vm2205, 1, 0
    %v2210 = vsel %vm2206, 1, 0
    %v2211 = vsel %vm2207, 1, 0
    %v2212 = vsel %vm2208, 1, 0
    %v2213 = vcvt.s32.f32 %v2209
    %v2214 = vcvt.s32.f32 %v2210
    %v2215 = vcvt.s32.f32 %v2211
    %v2216 = vcvt.s32.f32 %v2212
    %v2217 = vsub.f32 1.0, %v2213
    %v2218 = vsub.f32 1.0, %v2214
    %v2219 = vsub.f32 1.0, %v2215
    %v2220 = vsub.f32 1.0, %v2216
    %v2221 = vmul.f32 %v2201, %v2217
    %v2222 = vmul.f32 %v2202, %v2218
    %v2223 = vmul.f32 %v2203, %v2219
    %v2224 = vmul.f32 %v2204, %v2220
    %2225 = vmatprep.subr.mxu0 0.0
    %2226 = vmatpush1.msra.mxu0 %v2213
    %2227 = vmatprep.subr.mxu0 0.0
    %2228 = vmatpush1.msra.mxu0 %v2214
    %2229 = vmatprep.subr.mxu0 0.0
    %2230 = vmatpush1.msra.mxu0 %v2215
    %2231 = vmatprep.subr.mxu0 0.0
    %2232 = vmatpush1.msra.mxu0 %v2216
    %2233 = vmatprep.subr.mxu0 0.0
    %2234 = vmatpush1.msra.mxu0 0.0
    %2235 = vmatprep.subr.mxu0 0.0
    %2236 = vmatpush1.msra.mxu0 0.0
    %2237 = vmatprep.subr.mxu0 0.0
    %2238 = vmatpush1.msra.mxu0 0.0
    %2239 = vmatprep.subr.mxu0 0.0
    %2240 = vmatpush1.msra.mxu0 0.0
    %2241 = vmatprep.subr.mxu0 0.0
    %2242 = vmatpush1.msra.mxu0 0.0
    %2243 = vmatprep.subr.mxu0 0.0
    %2244 = vmatpush1.msra.mxu0 0.0
    %2245 = vmatprep.subr.mxu0 0.0
    %2246 = vmatpush1.msra.mxu0 0.0
    %2247 = vmatprep.subr.mxu0 0.0
    %2248 = vmatpush1.msra.mxu0 0.0
    %2249 = vmatprep.subr.mxu0 0.0
    %2250 = vmatpush1.msra.mxu0 0.0
    %2251 = vmatprep.subr.mxu0 0.0
    %2252 = vmatpush1.msra.mxu0 0.0
    %2253 = vmatprep.subr.mxu0 0.0
    %2254 = vmatpush1.msra.mxu0 0.0
    %2255 = vmatprep.subr.mxu0 0.0
    %2256 = vmatpush1.msra.mxu0 0.0
    %2257 = vmatprep.subr.mxu0 0.0
    %2258 = vmatpush1.msra.mxu0 0.0
    %2259 = vmatprep.subr.mxu0 0.0
    %2260 = vmatpush1.msra.mxu0 0.0
    %2261 = vmatprep.subr.mxu0 0.0
    %2262 = vmatpush1.msra.mxu0 0.0
    %2263 = vmatprep.subr.mxu0 0.0
    %2264 = vmatpush1.msra.mxu0 0.0
    %2265 = vmatprep.subr.mxu0 0.0
    %2266 = vmatpush1.msra.mxu0 0.0
    %2267 = vmatprep.subr.mxu0 0.0
    %2268 = vmatpush1.msra.mxu0 0.0
    %2269 = vmatprep.subr.mxu0 0.0
    %2270 = vmatpush1.msra.mxu0 0.0
    %2271 = vmatprep.subr.mxu0 0.0
    %2272 = vmatpush1.msra.mxu0 0.0
    %2273 = vmatprep.subr.mxu0 0.0
    %2274 = vmatpush1.msra.mxu0 0.0
    %2275 = vmatprep.subr.mxu0 0.0
    %2276 = vmatpush1.msra.mxu0 0.0
    %2277 = vmatprep.subr.mxu0 0.0
    %2278 = vmatpush1.msra.mxu0 0.0
    %2279 = vmatprep.subr.mxu0 0.0
    %2280 = vmatpush1.msra.mxu0 0.0
    %2281 = vmatprep.subr.mxu0 0.0
    %2282 = vmatpush1.msra.mxu0 0.0
    %2283 = vmatprep.subr.mxu0 0.0
    %2284 = vmatpush1.msra.mxu0 0.0
    %2285 = vmatprep.subr.mxu0 0.0
    %2286 = vmatpush1.msra.mxu0 0.0
    %2287 = vmatprep.subr.mxu0 0.0
    %2288 = vmatpush1.msra.mxu0 0.0
    %2289 = vmatprep.mubr.f32.mxu0 0.0
    %2290 = vmatmul.mubr.f32.gmra.mrb[0].mxu0 %v711
    %v2291 = vpop.f32.mrb[0].mxu0
    %v2292 = vadd.f32 %v693, %v2291
    %v2293 = vpop.f32.mrb[0].mxu0
    %2294 = vmatprep.mubr.f32.mxu0 0.0
    %2295 = vmatmul.mubr.f32.gmra.mrb[0].mxu0 %v714
    %v2296 = vpop.f32.mrb[0].mxu0
    %v2297 = vadd.f32 %v698, %v2296
    %v2298 = vpop.f32.mrb[0].mxu0
    %2299 = vmatprep.mubr.f32.mxu0 0.0
    %2300 = vmatmul.mubr.f32.gmra.mrb[0].mxu0 %v717
    %v2301 = vpop.f32.mrb[0].mxu0
    %v2302 = vadd.f32 %v703, %v2301
    %v2303 = vpop.f32.mrb[0].mxu0
    %2304 = vmatprep.mubr.f32.mxu0 0.0
    %2305 = vmatmul.mubr.f32.gmra.mrb[0].mxu0 %v720
    %v2306 = vpop.f32.mrb[0].mxu0
    %v2307 = vadd.f32 %v708, %v2306
    %v2308 = vpop.f32.mrb[0].mxu0
    %2309 = vdwg.mxu0
    %v2310 = vsub.f32 %v2292, %v1648
    %v2311 = vsub.f32 %v2297, %v1649
    %v2312 = vsub.f32 %v2302, %v1650
    %v2313 = vsub.f32 %v2307, %v1651
    %v2314 = vmul.f32 %v2310, 0.5
    %v2315 = vmul.f32 %v2311, 0.5
    %v2316 = vmul.f32 %v2312, 0.5
    %v2317 = vmul.f32 %v2313, 0.5
    %v2318 = vadd.f32 %v1648, %v2314
    %v2319 = vadd.f32 %v1649, %v2315
    %v2320 = vadd.f32 %v1650, %v2316
    %v2321 = vadd.f32 %v1651, %v2317
    %vm2322 = vcmp.ge.f32.partialorder %v2318, 1.0
    %vm2323 = vcmp.ge.f32.partialorder %v2319, 1.0
    %vm2324 = vcmp.ge.f32.partialorder %v2320, 1.0
    %vm2325 = vcmp.ge.f32.partialorder %v2321, 1.0
    %v2326 = vsel %vm2322, 1, 0
    %v2327 = vsel %vm2323, 1, 0
    %v2328 = vsel %vm2324, 1, 0
    %v2329 = vsel %vm2325, 1, 0
    %v2330 = vcvt.s32.f32 %v2326
    %v2331 = vcvt.s32.f32 %v2327
    %v2332 = vcvt.s32.f32 %v2328
    %v2333 = vcvt.s32.f32 %v2329
    %v2334 = vsub.f32 1.0, %v2330
    %v2335 = vsub.f32 1.0, %v2331
    %v2336 = vsub.f32 1.0, %v2332
    %v2337 = vsub.f32 1.0, %v2333
    %v2338 = vmul.f32 %v2318, %v2334
    %v2339 = vmul.f32 %v2319, %v2335
    %v2340 = vmul.f32 %v2320, %v2336
    %v2341 = vmul.f32 %v2321, %v2337
    %2346 = vrot.lane.b32.xlu0 %v2338, 64
    %v2347 = vpop.permute.xlu0 %2346
    %2348 = vrot.lane.b32.xlu0 %v2339, 64
    %v2349 = vpop.permute.xlu0 %2348
    %2350 = vrot.lane.b32.xlu0 %v2340, 64
    %v2351 = vpop.permute.xlu0 %2350
    %2352 = vrot.lane.b32.xlu0 %v2341, 64
    %v2353 = vpop.permute.xlu0 %2352
    %v2358 = vsub.f32 %v2292, %v2347
    %v2359 = vsub.f32 %v2297, %v2349
    %v2360 = vsub.f32 %v2302, %v2351
    %v2361 = vsub.f32 %v2307, %v2353
    %v2362 = vmul.f32 %v2358, 0.5
    %v2363 = vmul.f32 %v2359, 0.5
    %v2364 = vmul.f32 %v2360, 0.5
    %v2365 = vmul.f32 %v2361, 0.5
    %2370 = vrot.lane.b32.xlu0 %v2362, 64
    %v2371 = vpop.permute.xlu0 %2370
    %2372 = vrot.lane.b32.xlu0 %v2363, 64
    %v2373 = vpop.permute.xlu0 %2372
    %2374 = vrot.lane.b32.xlu0 %v2364, 64
    %v2375 = vpop.permute.xlu0 %2374
    %2376 = vrot.lane.b32.xlu0 %v2365, 64
    %v2377 = vpop.permute.xlu0 %2376
    %v2382 = vadd.f32 %v2338, %v2371
    %v2383 = vadd.f32 %v2339, %v2373
    %v2384 = vadd.f32 %v2340, %v2375
    %v2385 = vadd.f32 %v2341, %v2377
    %vm2386 = vcmp.ge.f32.partialorder %v2382, 1.0
    %vm2387 = vcmp.ge.f32.partialorder %v2383, 1.0
    %vm2388 = vcmp.ge.f32.partialorder %v2384, 1.0
    %vm2389 = vcmp.ge.f32.partialorder %v2385, 1.0
    %v2390 = vsel %vm2386, 1, 0
    %v2391 = vsel %vm2387, 1, 0
    %v2392 = vsel %vm2388, 1, 0
    %v2393 = vsel %vm2389, 1, 0
    %v2394 = vcvt.s32.f32 %v2390
    %v2395 = vcvt.s32.f32 %v2391
    %v2396 = vcvt.s32.f32 %v2392
    %v2397 = vcvt.s32.f32 %v2393
    %v2398 = vsub.f32 1.0, %v2394
    %v2399 = vsub.f32 1.0, %v2395
    %v2400 = vsub.f32 1.0, %v2396
    %v2401 = vsub.f32 1.0, %v2397
    %v2402 = vmul.f32 %v2382, %v2398
    %v2403 = vmul.f32 %v2383, %v2399
    %v2404 = vmul.f32 %v2384, %v2400
    %v2405 = vmul.f32 %v2385, %v2401
    %2410 = vrot.lane.b32.xlu0 %v2394, 64
    %v2411 = vpop.permute.xlu0 %2410
    %2412 = vrot.lane.b32.xlu0 %v2395, 64
    %v2413 = vpop.permute.xlu0 %2412
    %2414 = vrot.lane.b32.xlu0 %v2396, 64
    %v2415 = vpop.permute.xlu0 %2414
    %2416 = vrot.lane.b32.xlu0 %v2397, 64
    %v2417 = vpop.permute.xlu0 %2416
    %v2422 = vsel %vm377, %v2330, %v2411
    %v2423 = vsel %vm377, %v2331, %v2413
    %v2424 = vsel %vm377, %v2332, %v2415
    %v2425 = vsel %vm377, %v2333, %v2417
    %s2426 = scalar_lea.vmem [#allocation2], 64
    %2427 = vst [vmem:[%s2426] sm:$0xff] %v2422
    %2428 = vst [vmem:[%s2426 + $0x8] sm:$0xff] %v2423
    %2429 = vst [vmem:[%s2426 + $0x10] sm:$0xff] %v2424
    %2430 = vst [vmem:[%s2426 + $0x18] sm:$0xff] %v2425
    %s2431 = scalar_lea.vmem %s0, 96
    %v2432 = vld [vmem:[%s2431] sm:$0xff]
    %v2433 = vld [vmem:[%s2431 + $0x8] sm:$0xff]
    %v2434 = vld [vmem:[%s2431 + $0x10] sm:$0xff]
    %v2435 = vld [vmem:[%s2431 + $0x18] sm:$0xff]
    %2436 = vmatprep.subr.mxu0 0.0
    %2437 = vmatpush1.msra.mxu0 %v2432
    %2438 = vmatprep.subr.mxu0 0.0
    %2439 = vmatpush1.msra.mxu0 %v2433
    %2440 = vmatprep.subr.mxu0 0.0
    %2441 = vmatpush1.msra.mxu0 %v2434
    %2442 = vmatprep.subr.mxu0 0.0
    %2443 = vmatpush1.msra.mxu0 %v2435
    %2444 = vmatprep.subr.mxu0 0.0
    %2445 = vmatpush1.msra.mxu0 0.0
    %2446 = vmatprep.subr.mxu0 0.0
    %2447 = vmatpush1.msra.mxu0 0.0
    %2448 = vmatprep.subr.mxu0 0.0
    %2449 = vmatpush1.msra.mxu0 0.0
    %2450 = vmatprep.subr.mxu0 0.0
    %2451 = vmatpush1.msra.mxu0 0.0
    %2452 = vmatprep.subr.mxu0 0.0
    %2453 = vmatpush1.msra.mxu0 0.0
    %2454 = vmatprep.subr.mxu0 0.0
    %2455 = vmatpush1.msra.mxu0 0.0
    %2456 = vmatprep.subr.mxu0 0.0
    %2457 = vmatpush1.msra.mxu0 0.0
    %2458 = vmatprep.subr.mxu0 0.0
    %2459 = vmatpush1.msra.mxu0 0.0
    %2460 = vmatprep.subr.mxu0 0.0
    %2461 = vmatpush1.msra.mxu0 0.0
    %2462 = vmatprep.subr.mxu0 0.0
    %2463 = vmatpush1.msra.mxu0 0.0
    %2464 = vmatprep.subr.mxu0 0.0
    %2465 = vmatpush1.msra.mxu0 0.0
    %2466 = vmatprep.subr.mxu0 0.0
    %2467 = vmatpush1.msra.mxu0 0.0
    %2468 = vmatprep.subr.mxu0 0.0
    %2469 = vmatpush1.msra.mxu0 0.0
    %2470 = vmatprep.subr.mxu0 0.0
    %2471 = vmatpush1.msra.mxu0 0.0
    %2472 = vmatprep.subr.mxu0 0.0
    %2473 = vmatpush1.msra.mxu0 0.0
    %2474 = vmatprep.subr.mxu0 0.0
    %2475 = vmatpush1.msra.mxu0 0.0
    %2476 = vmatprep.subr.mxu0 0.0
    %2477 = vmatpush1.msra.mxu0 0.0
    %2478 = vmatprep.subr.mxu0 0.0
    %2479 = vmatpush1.msra.mxu0 0.0
    %2480 = vmatprep.subr.mxu0 0.0
    %2481 = vmatpush1.msra.mxu0 0.0
    %2482 = vmatprep.subr.mxu0 0.0
    %2483 = vmatpush1.msra.mxu0 0.0
    %2484 = vmatprep.subr.mxu0 0.0
    %2485 = vmatpush1.msra.mxu0 0.0
    %2486 = vmatprep.subr.mxu0 0.0
    %2487 = vmatpush1.msra.mxu0 0.0
    %2488 = vmatprep.subr.mxu0 0.0
    %2489 = vmatpush1.msra.mxu0 0.0
    %2490 = vmatprep.subr.mxu0 0.0
    %2491 = vmatpush1.msra.mxu0 0.0
    %2492 = vmatprep.subr.mxu0 0.0
    %2493 = vmatpush1.msra.mxu0 0.0
    %2494 = vmatprep.subr.mxu0 0.0
    %2495 = vmatpush1.msra.mxu0 0.0
    %2496 = vmatprep.subr.mxu0 0.0
    %2497 = vmatpush1.msra.mxu0 0.0
    %2498 = vmatprep.subr.mxu0 0.0
    %2499 = vmatpush1.msra.mxu0 0.0
    %2500 = vmatprep.mubr.f32.mxu0 0.0
    %2501 = vmatmul.mubr.f32.gmra.mrb[0].mxu0 %v127
    %v2502 = vpop.f32.mrb[0].mxu0
    %v2503 = vadd.f32 %v68, %v2502
    %v2504 = vpop.f32.mrb[0].mxu0
    %2505 = vmatprep.mubr.f32.mxu0 0.0
    %2506 = vmatmul.mubr.f32.gmra.mrb[0].mxu0 %v130
    %v2507 = vpop.f32.mrb[0].mxu0
    %v2508 = vadd.f32 %v73, %v2507
    %v2509 = vpop.f32.mrb[0].mxu0
    %2510 = vmatprep.mubr.f32.mxu0 0.0
    %2511 = vmatmul.mubr.f32.gmra.mrb[0].mxu0 %v133
    %v2512 = vpop.f32.mrb[0].mxu0
    %v2513 = vadd.f32 %v78, %v2512
    %v2514 = vpop.f32.mrb[0].mxu0
    %2515 = vmatprep.mubr.f32.mxu0 0.0
    %2516 = vmatmul.mubr.f32.gmra.mrb[0].mxu0 %v136
    %v2517 = vpop.f32.mrb[0].mxu0
    %v2518 = vadd.f32 %v83, %v2517
    %v2519 = vpop.f32.mrb[0].mxu0
    %2520 = vmatprep.mubr.f32.mxu0 0.0
    %2521 = vmatmul.mubr.f32.gmra.mrb[0].mxu0 %v139
    %v2522 = vpop.f32.mrb[0].mxu0
    %v2523 = vadd.f32 %v88, %v2522
    %v2524 = vpop.f32.mrb[0].mxu0
    %2525 = vmatprep.mubr.f32.mxu0 0.0
    %2526 = vmatmul.mubr.f32.gmra.mrb[0].mxu0 %v142
    %v2527 = vpop.f32.mrb[0].mxu0
    %v2528 = vadd.f32 %v93, %v2527
    %v2529 = vpop.f32.mrb[0].mxu0
    %2530 = vmatprep.mubr.f32.mxu0 0.0
    %2531 = vmatmul.mubr.f32.gmra.mrb[0].mxu0 %v145
    %v2532 = vpop.f32.mrb[0].mxu0
    %v2533 = vadd.f32 %v98, %v2532
    %v2534 = vpop.f32.mrb[0].mxu0
    %2535 = vmatprep.mubr.f32.mxu0 0.0
    %2536 = vmatmul.mubr.f32.gmra.mrb[0].mxu0 %v148
    %v2537 = vpop.f32.mrb[0].mxu0
    %v2538 = vadd.f32 %v103, %v2537
    %v2539 = vpop.f32.mrb[0].mxu0
    %2540 = vmatprep.mubr.f32.mxu0 0.0
    %2541 = vmatmul.mubr.f32.gmra.mrb[0].mxu0 %v151
    %v2542 = vpop.f32.mrb[0].mxu0
    %v2543 = vadd.f32 %v108, %v2542
    %v2544 = vpop.f32.mrb[0].mxu0
    %2545 = vmatprep.mubr.f32.mxu0 0.0
    %2546 = vmatmul.mubr.f32.gmra.mrb[0].mxu0 %v154
    %v2547 = vpop.f32.mrb[0].mxu0
    %v2548 = vadd.f32 %v113, %v2547
    %v2549 = vpop.f32.mrb[0].mxu0
    %2550 = vmatprep.mubr.f32.mxu0 0.0
    %2551 = vmatmul.mubr.f32.gmra.mrb[0].mxu0 %v157
    %v2552 = vpop.f32.mrb[0].mxu0
    %v2553 = vadd.f32 %v118, %v2552
    %v2554 = vpop.f32.mrb[0].mxu0
    %2555 = vmatprep.mubr.f32.mxu0 0.0
    %2556 = vmatmul.mubr.f32.gmra.mrb[0].mxu0 %v160
    %v2557 = vpop.f32.mrb[0].mxu0
    %v2558 = vadd.f32 %v123, %v2557
    %v2559 = vpop.f32.mrb[0].mxu0
    %2560 = vdwg.mxu0
    %v2561 = vsub.f32 %v2503, %v1891
    %v2562 = vsub.f32 %v2508, %v1892
    %v2563 = vsub.f32 %v2513, %v1893
    %v2564 = vsub.f32 %v2518, %v1894
    %v2565 = vsub.f32 %v2523, %v1895
    %v2566 = vsub.f32 %v2528, %v1896
    %v2567 = vsub.f32 %v2533, %v1897
    %v2568 = vsub.f32 %v2538, %v1898
    %v2569 = vsub.f32 %v2543, %v1899
    %v2570 = vsub.f32 %v2548, %v1900
    %v2571 = vsub.f32 %v2553, %v1901
    %v2572 = vsub.f32 %v2558, %v1902
    %v2573 = vmul.f32 %v2561, 0.5
    %v2574 = vmul.f32 %v2562, 0.5
    %v2575 = vmul.f32 %v2563, 0.5
    %v2576 = vmul.f32 %v2564, 0.5
    %v2577 = vmul.f32 %v2565, 0.5
    %v2578 = vmul.f32 %v2566, 0.5
    %v2579 = vmul.f32 %v2567, 0.5
    %v2580 = vmul.f32 %v2568, 0.5
    %v2581 = vmul.f32 %v2569, 0.5
    %v2582 = vmul.f32 %v2570, 0.5
    %v2583 = vmul.f32 %v2571, 0.5
    %v2584 = vmul.f32 %v2572, 0.5
    %v2585 = vadd.f32 %v1891, %v2573
    %v2586 = vadd.f32 %v1892, %v2574
    %v2587 = vadd.f32 %v1893, %v2575
    %v2588 = vadd.f32 %v1894, %v2576
    %v2589 = vadd.f32 %v1895, %v2577
    %v2590 = vadd.f32 %v1896, %v2578
    %v2591 = vadd.f32 %v1897, %v2579
    %v2592 = vadd.f32 %v1898, %v2580
    %v2593 = vadd.f32 %v1899, %v2581
    %v2594 = vadd.f32 %v1900, %v2582
    %v2595 = vadd.f32 %v1901, %v2583
    %v2596 = vadd.f32 %v1902, %v2584
    %vm2597 = vcmp.ge.f32.partialorder %v2585, 1.0
    %vm2598 = vcmp.ge.f32.partialorder %v2586, 1.0
    %vm2599 = vcmp.ge.f32.partialorder %v2587, 1.0
    %vm2600 = vcmp.ge.f32.partialorder %v2588, 1.0
    %vm2601 = vcmp.ge.f32.partialorder %v2589, 1.0
    %vm2602 = vcmp.ge.f32.partialorder %v2590, 1.0
    %vm2603 = vcmp.ge.f32.partialorder %v2591, 1.0
    %vm2604 = vcmp.ge.f32.partialorder %v2592, 1.0
    %vm2605 = vcmp.ge.f32.partialorder %v2593, 1.0
    %vm2606 = vcmp.ge.f32.partialorder %v2594, 1.0
    %vm2607 = vcmp.ge.f32.partialorder %v2595, 1.0
    %vm2608 = vcmp.ge.f32.partialorder %v2596, 1.0
    %v2609 = vsel %vm2597, 1, 0
    %v2610 = vsel %vm2598, 1, 0
    %v2611 = vsel %vm2599, 1, 0
    %v2612 = vsel %vm2600, 1, 0
    %v2613 = vsel %vm2601, 1, 0
    %v2614 = vsel %vm2602, 1, 0
    %v2615 = vsel %vm2603, 1, 0
    %v2616 = vsel %vm2604, 1, 0
    %v2617 = vsel %vm2605, 1, 0
    %v2618 = vsel %vm2606, 1, 0
    %v2619 = vsel %vm2607, 1, 0
    %v2620 = vsel %vm2608, 1, 0
    %v2621 = vcvt.s32.f32 %v2609
    %v2622 = vcvt.s32.f32 %v2610
    %v2623 = vcvt.s32.f32 %v2611
    %v2624 = vcvt.s32.f32 %v2612
    %v2625 = vcvt.s32.f32 %v2613
    %v2626 = vcvt.s32.f32 %v2614
    %v2627 = vcvt.s32.f32 %v2615
    %v2628 = vcvt.s32.f32 %v2616
    %v2629 = vcvt.s32.f32 %v2617
    %v2630 = vcvt.s32.f32 %v2618
    %v2631 = vcvt.s32.f32 %v2619
    %v2632 = vcvt.s32.f32 %v2620
    %v2633 = vpack.c.bf16 %v2622, %v2621
    %v2634 = vpack.c.bf16 %v2624, %v2623
    %v2635 = vpack.c.bf16 %v2626, %v2625
    %v2636 = vpack.c.bf16 %v2628, %v2627
    %v2637 = vpack.c.bf16 %v2630, %v2629
    %v2638 = vpack.c.bf16 %v2632, %v2631
    %v2640 = vsel %vm377, %v2637, 0
    %v2643 = vsel %vm377, %v2638, 0
    %v2646 = vsel %vm377, %v2635, 0
    %v2649 = vsel %vm377, %v2636, 0
    %2651 = vmatprep.subr.bf16.mxu0 0
    %2652 = vmatpush1.bf16.xpose.msra.mxu0 %v2646
    %2653 = vmatprep.subr.bf16.mxu0 0
    %2654 = vmatpush1.bf16.xpose.msra.mxu0 %v2649
    %2655 = vmatprep.subr.bf16.mxu0 0
    %2656 = vmatpush1.bf16.xpose.msra.mxu0 0
    %2657 = vmatprep.subr.bf16.mxu0 0
    %2658 = vmatpush1.bf16.xpose.msra.mxu0 0
    %2659 = vmatprep.subr.bf16.mxu0 0
    %2660 = vmatpush1.bf16.xpose.msra.mxu0 0
    %2661 = vmatprep.subr.bf16.mxu0 0
    %2662 = vmatpush1.bf16.xpose.msra.mxu0 0
    %2663 = vmatprep.subr.bf16.mxu0 0
    %2664 = vmatpush1.bf16.xpose.msra.mxu0 0
    %2665 = vmatprep.subr.bf16.mxu0 0
    %2666 = vmatpush1.bf16.xpose.msra.mxu0 0
    %2667 = vmatprep.subr.bf16.mxu0 0
    %2668 = vmatpush1.bf16.xpose.msra.mxu0 0
    %2669 = vmatprep.subr.bf16.mxu0 0
    %2670 = vmatpush1.bf16.xpose.msra.mxu0 0
    %2671 = vmatprep.subr.bf16.mxu0 0
    %2672 = vmatpush1.bf16.xpose.msra.mxu0 0
    %2673 = vmatprep.subr.bf16.mxu0 0
    %2674 = vmatpush1.bf16.xpose.msra.mxu0 0
    %2675 = vmatprep.subr.bf16.mxu0 0
    %2676 = vmatpush1.bf16.xpose.msra.mxu0 0
    %2677 = vmatprep.subr.bf16.mxu0 0
    %2678 = vmatpush1.bf16.xpose.msra.mxu0 0
    %2679 = vmatprep.subr.bf16.mxu0 0
    %2680 = vmatpush1.bf16.xpose.msra.mxu0 0
    %2681 = vmatprep.subr.bf16.mxu0 0
    %2682 = vmatpush1.bf16.xpose.msra.mxu0 0
    %2683 = vmatprep.mubr.bf16.mxu0 0
    %2684 = vmatmul.mubr.bf16.gmra.mrb[0].mxu0 %v2640
    %v2685 = vpop.f32.mrb[0].mxu0
    %v2686 = vadd.f32 0.0, %v2685
    %v2687 = vpop.f32.mrb[0].mxu0
    %v2688 = vpop.f32.mrb[0].mxu0
    %v2689 = vadd.f32 0.0, %v2688
    %v2690 = vpop.f32.mrb[0].mxu0
    %2691 = vmatprep.mubr.bf16.mxu0 0
    %2692 = vmatmul.mubr.bf16.gmra.mrb[0].mxu0 %v2643
    %v2693 = vpop.f32.mrb[0].mxu0
    %v2694 = vadd.f32 0.0, %v2693
    %v2695 = vpop.f32.mrb[0].mxu0
    %v2696 = vpop.f32.mrb[0].mxu0
    %v2697 = vadd.f32 0.0, %v2696
    %v2698 = vpop.f32.mrb[0].mxu0
    %2699 = vdwg.mxu0
    %v2700 = vmul.f32 %v2686, %v57
    %v2701 = vmul.f32 %v2689, %v58
    %v2702 = vmul.f32 %v2694, %v59
    %v2703 = vmul.f32 %v2697, %v60
    %v2704 = vpack.c.bf16 %v2701, %v2700
    %v2705 = vpack.c.bf16 %v2703, %v2702
    %v2707 = vsel %vm125, %v2704, 0
    %v2710 = vsel %vm125, %v2705, 0
    %2712 = vmatprep.subr.bf16.mxu0 0
    %2713 = vmatpush1.bf16.msra.mxu0 %v2633
    %2714 = vmatprep.subr.bf16.mxu0 0
    %2715 = vmatpush1.bf16.msra.mxu0 %v2634
    %2716 = vmatprep.subr.bf16.mxu0 0
    %2717 = vmatpush1.bf16.msra.mxu0 0
    %2718 = vmatprep.subr.bf16.mxu0 0
    %2719 = vmatpush1.bf16.msra.mxu0 0
    %2720 = vmatprep.subr.bf16.mxu0 0
    %2721 = vmatpush1.bf16.msra.mxu0 0
    %2722 = vmatprep.subr.bf16.mxu0 0
    %2723 = vmatpush1.bf16.msra.mxu0 0
    %2724 = vmatprep.subr.bf16.mxu0 0
    %2725 = vmatpush1.bf16.msra.mxu0 0
    %2726 = vmatprep.subr.bf16.mxu0 0
    %2727 = vmatpush1.bf16.msra.mxu0 0
    %2728 = vmatprep.subr.bf16.mxu0 0
    %2729 = vmatpush1.bf16.msra.mxu0 0
    %2730 = vmatprep.subr.bf16.mxu0 0
    %2731 = vmatpush1.bf16.msra.mxu0 0
    %2732 = vmatprep.subr.bf16.mxu0 0
    %2733 = vmatpush1.bf16.msra.mxu0 0
    %2734 = vmatprep.subr.bf16.mxu0 0
    %2735 = vmatpush1.bf16.msra.mxu0 0
    %2736 = vmatprep.subr.bf16.mxu0 0
    %2737 = vmatpush1.bf16.msra.mxu0 0
    %2738 = vmatprep.subr.bf16.mxu0 0
    %2739 = vmatpush1.bf16.msra.mxu0 0
    %2740 = vmatprep.subr.bf16.mxu0 0
    %2741 = vmatpush1.bf16.msra.mxu0 0
    %2742 = vmatprep.subr.bf16.mxu0 0
    %2743 = vmatpush1.bf16.msra.mxu0 0
    %2744 = vmatprep.mubr.bf16.mxu0 0
    %2745 = vmatmul.mubr.bf16.gmra.mrb[0].mxu0 %v2707
    %v2746 = vpop.f32.mrb[0].mxu0
    %v2747 = vadd.f32 0.0, %v2746
    %v2748 = vpop.f32.mrb[0].mxu0
    %v2749 = vpop.f32.mrb[0].mxu0
    %v2750 = vadd.f32 0.0, %v2749
    %v2751 = vpop.f32.mrb[0].mxu0
    %2752 = vmatprep.mubr.bf16.mxu0 0
    %2753 = vmatmul.mubr.bf16.gmra.mrb[0].mxu0 %v2710
    %v2754 = vpop.f32.mrb[0].mxu0
    %v2755 = vadd.f32 0.0, %v2754
    %v2756 = vpop.f32.mrb[0].mxu0
    %v2757 = vpop.f32.mrb[0].mxu0
    %v2758 = vadd.f32 0.0, %v2757
    %v2759 = vpop.f32.mrb[0].mxu0
    %2760 = vdwg.mxu0
    %2763 = vrot.lane.b32.xlu0 %v2637, 64
    %v2764 = vpop.permute.xlu0 %2763
    %2765 = vrot.lane.b32.xlu0 %v2638, 64
    %v2766 = vpop.permute.xlu0 %2765
    %2769 = vrot.lane.b32.xlu0 %v2635, 64
    %v2770 = vpop.permute.xlu0 %2769
    %2771 = vrot.lane.b32.xlu0 %v2636, 64
    %v2772 = vpop.permute.xlu0 %2771
    %v2774 = vsel %vm377, %v2764, 0
    %v2777 = vsel %vm377, %v2766, 0
    %v2780 = vsel %vm377, %v2770, 0
    %v2783 = vsel %vm377, %v2772, 0
    %2785 = vmatprep.subr.bf16.mxu0 0
    %2786 = vmatpush1.bf16.xpose.msra.mxu0 %v2780
    %2787 = vmatprep.subr.bf16.mxu0 0
    %2788 = vmatpush1.bf16.xpose.msra.mxu0 %v2783
    %2789 = vmatprep.subr.bf16.mxu0 0
    %2790 = vmatpush1.bf16.xpose.msra.mxu0 0
    %2791 = vmatprep.subr.bf16.mxu0 0
    %2792 = vmatpush1.bf16.xpose.msra.mxu0 0
    %2793 = vmatprep.subr.bf16.mxu0 0
    %2794 = vmatpush1.bf16.xpose.msra.mxu0 0
    %2795 = vmatprep.subr.bf16.mxu0 0
    %2796 = vmatpush1.bf16.xpose.msra.mxu0 0
    %2797 = vmatprep.subr.bf16.mxu0 0
    %2798 = vmatpush1.bf16.xpose.msra.mxu0 0
    %2799 = vmatprep.subr.bf16.mxu0 0
    %2800 = vmatpush1.bf16.xpose.msra.mxu0 0
    %2801 = vmatprep.subr.bf16.mxu0 0
    %2802 = vmatpush1.bf16.xpose.msra.mxu0 0
    %2803 = vmatprep.subr.bf16.mxu0 0
    %2804 = vmatpush1.bf16.xpose.msra.mxu0 0
    %2805 = vmatprep.subr.bf16.mxu0 0
    %2806 = vmatpush1.bf16.xpose.msra.mxu0 0
    %2807 = vmatprep.subr.bf16.mxu0 0
    %2808 = vmatpush1.bf16.xpose.msra.mxu0 0
    %2809 = vmatprep.subr.bf16.mxu0 0
    %2810 = vmatpush1.bf16.xpose.msra.mxu0 0
    %2811 = vmatprep.subr.bf16.mxu0 0
    %2812 = vmatpush1.bf16.xpose.msra.mxu0 0
    %2813 = vmatprep.subr.bf16.mxu0 0
    %2814 = vmatpush1.bf16.xpose.msra.mxu0 0
    %2815 = vmatprep.subr.bf16.mxu0 0
    %2816 = vmatpush1.bf16.xpose.msra.mxu0 0
    %2817 = vmatprep.mubr.bf16.mxu0 0
    %2818 = vmatmul.mubr.bf16.gmra.mrb[0].mxu0 %v2774
    %v2819 = vpop.f32.mrb[0].mxu0
    %v2820 = vadd.f32 0.0, %v2819
    %v2821 = vpop.f32.mrb[0].mxu0
    %v2822 = vpop.f32.mrb[0].mxu0
    %v2823 = vadd.f32 0.0, %v2822
    %v2824 = vpop.f32.mrb[0].mxu0
    %2825 = vmatprep.mubr.bf16.mxu0 0
    %2826 = vmatmul.mubr.bf16.gmra.mrb[0].mxu0 %v2777
    %v2827 = vpop.f32.mrb[0].mxu0
    %v2828 = vadd.f32 0.0, %v2827
    %v2829 = vpop.f32.mrb[0].mxu0
    %v2830 = vpop.f32.mrb[0].mxu0
    %v2831 = vadd.f32 0.0, %v2830
    %v2832 = vpop.f32.mrb[0].mxu0
    %2833 = vdwg.mxu0
    %v2834 = vmul.f32 %v2820, %v57
    %v2835 = vmul.f32 %v2823, %v58
    %v2836 = vmul.f32 %v2828, %v59
    %v2837 = vmul.f32 %v2831, %v60
    %v2838 = vpack.c.bf16 %v2835, %v2834
    %v2839 = vpack.c.bf16 %v2837, %v2836
    %2842 = vrot.lane.b32.xlu0 %v2633, 64
    %v2843 = vpop.permute.xlu0 %2842
    %2844 = vrot.lane.b32.xlu0 %v2634, 64
    %v2845 = vpop.permute.xlu0 %2844
    %v2849 = vsel %vm125, %v2838, 0
    %v2852 = vsel %vm125, %v2839, 0
    %2854 = vmatprep.subr.bf16.mxu0 0
    %2855 = vmatpush1.bf16.msra.mxu0 %v2843
    %2856 = vmatprep.subr.bf16.mxu0 0
    %2857 = vmatpush1.bf16.msra.mxu0 %v2845
    %2858 = vmatprep.subr.bf16.mxu0 0
    %2859 = vmatpush1.bf16.msra.mxu0 0
    %2860 = vmatprep.subr.bf16.mxu0 0
    %2861 = vmatpush1.bf16.msra.mxu0 0
    %2862 = vmatprep.subr.bf16.mxu0 0
    %2863 = vmatpush1.bf16.msra.mxu0 0
    %2864 = vmatprep.subr.bf16.mxu0 0
    %2865 = vmatpush1.bf16.msra.mxu0 0
    %2866 = vmatprep.subr.bf16.mxu0 0
    %2867 = vmatpush1.bf16.msra.mxu0 0
    %2868 = vmatprep.subr.bf16.mxu0 0
    %2869 = vmatpush1.bf16.msra.mxu0 0
    %2870 = vmatprep.subr.bf16.mxu0 0
    %2871 = vmatpush1.bf16.msra.mxu0 0
    %2872 = vmatprep.subr.bf16.mxu0 0
    %2873 = vmatpush1.bf16.msra.mxu0 0
    %2874 = vmatprep.subr.bf16.mxu0 0
    %2875 = vmatpush1.bf16.msra.mxu0 0
    %2876 = vmatprep.subr.bf16.mxu0 0
    %2877 = vmatpush1.bf16.msra.mxu0 0
    %2878 = vmatprep.subr.bf16.mxu0 0
    %2879 = vmatpush1.bf16.msra.mxu0 0
    %2880 = vmatprep.subr.bf16.mxu0 0
    %2881 = vmatpush1.bf16.msra.mxu0 0
    %2882 = vmatprep.subr.bf16.mxu0 0
    %2883 = vmatpush1.bf16.msra.mxu0 0
    %2884 = vmatprep.subr.bf16.mxu0 0
    %2885 = vmatpush1.bf16.msra.mxu0 0
    %2886 = vmatprep.mubr.bf16.mxu0 0
    %2887 = vmatmul.mubr.bf16.gmra.mrb[0].mxu0 %v2849
    %v2888 = vpop.f32.mrb[0].mxu0
    %v2889 = vadd.f32 0.0, %v2888
    %v2890 = vpop.f32.mrb[0].mxu0
    %v2891 = vpop.f32.mrb[0].mxu0
    %v2892 = vadd.f32 0.0, %v2891
    %v2893 = vpop.f32.mrb[0].mxu0
    %2894 = vmatprep.mubr.bf16.mxu0 0
    %2895 = vmatmul.mubr.bf16.gmra.mrb[0].mxu0 %v2852
    %v2896 = vpop.f32.mrb[0].mxu0
    %v2897 = vadd.f32 0.0, %v2896
    %v2898 = vpop.f32.mrb[0].mxu0
    %v2899 = vpop.f32.mrb[0].mxu0
    %v2900 = vadd.f32 0.0, %v2899
    %v2901 = vpop.f32.mrb[0].mxu0
    %2902 = vdwg.mxu0
    %2907 = vrot.lane.b32.xlu0 %v2889, 64
    %v2908 = vpop.permute.xlu0 %2907
    %2909 = vrot.lane.b32.xlu0 %v2892, 64
    %v2910 = vpop.permute.xlu0 %2909
    %2911 = vrot.lane.b32.xlu0 %v2897, 64
    %v2912 = vpop.permute.xlu0 %2911
    %2913 = vrot.lane.b32.xlu0 %v2900, 64
    %v2914 = vpop.permute.xlu0 %2913
    %v2919 = vsel %vm377, %v2747, %v2908
    %v2920 = vsel %vm377, %v2750, %v2910
    %v2921 = vsel %vm377, %v2755, %v2912
    %v2922 = vsel %vm377, %v2758, %v2914
    %v2923 = vsub.f32 %v2919, %v2221
    %v2924 = vsub.f32 %v2920, %v2222
    %v2925 = vsub.f32 %v2921, %v2223
    %v2926 = vsub.f32 %v2922, %v2224
    %v2927 = vmul.f32 %v2923, 0.5
    %v2928 = vmul.f32 %v2924, 0.5
    %v2929 = vmul.f32 %v2925, 0.5
    %v2930 = vmul.f32 %v2926, 0.5
    %v2931 = vadd.f32 %v2221, %v2927
    %v2932 = vadd.f32 %v2222, %v2928
    %v2933 = vadd.f32 %v2223, %v2929
    %v2934 = vadd.f32 %v2224, %v2930
    %vm2935 = vcmp.ge.f32.partialorder %v2931, 1.0
    %vm2936 = vcmp.ge.f32.partialorder %v2932, 1.0
    %vm2937 = vcmp.ge.f32.partialorder %v2933, 1.0
    %vm2938 = vcmp.ge.f32.partialorder %v2934, 1.0
    %v2939 = vsel %vm2935, 1, 0
    %v2940 = vsel %vm2936, 1, 0
    %v2941 = vsel %vm2937, 1, 0
    %v2942 = vsel %vm2938, 1, 0
    %v2943 = vcvt.s32.f32 %v2939
    %v2944 = vcvt.s32.f32 %v2940
    %v2945 = vcvt.s32.f32 %v2941
    %v2946 = vcvt.s32.f32 %v2942
    %2947 = vmatprep.subr.mxu0 0.0
    %2948 = vmatpush1.msra.mxu0 %v2943
    %2949 = vmatprep.subr.mxu0 0.0
    %2950 = vmatpush1.msra.mxu0 %v2944
    %2951 = vmatprep.subr.mxu0 0.0
    %2952 = vmatpush1.msra.mxu0 %v2945
    %2953 = vmatprep.subr.mxu0 0.0
    %2954 = vmatpush1.msra.mxu0 %v2946
    %2955 = vmatprep.subr.mxu0 0.0
    %2956 = vmatpush1.msra.mxu0 0.0
    %2957 = vmatprep.subr.mxu0 0.0
    %2958 = vmatpush1.msra.mxu0 0.0
    %2959 = vmatprep.subr.mxu0 0.0
    %2960 = vmatpush1.msra.mxu0 0.0
    %2961 = vmatprep.subr.mxu0 0.0
    %2962 = vmatpush1.msra.mxu0 0.0
    %2963 = vmatprep.subr.mxu0 0.0
    %2964 = vmatpush1.msra.mxu0 0.0
    %2965 = vmatprep.subr.mxu0 0.0
    %2966 = vmatpush1.msra.mxu0 0.0
    %2967 = vmatprep.subr.mxu0 0.0
    %2968 = vmatpush1.msra.mxu0 0.0
    %2969 = vmatprep.subr.mxu0 0.0
    %2970 = vmatpush1.msra.mxu0 0.0
    %2971 = vmatprep.subr.mxu0 0.0
    %2972 = vmatpush1.msra.mxu0 0.0
    %2973 = vmatprep.subr.mxu0 0.0
    %2974 = vmatpush1.msra.mxu0 0.0
    %2975 = vmatprep.subr.mxu0 0.0
    %2976 = vmatpush1.msra.mxu0 0.0
    %2977 = vmatprep.subr.mxu0 0.0
    %2978 = vmatpush1.msra.mxu0 0.0
    %2979 = vmatprep.subr.mxu0 0.0
    %2980 = vmatpush1.msra.mxu0 0.0
    %2981 = vmatprep.subr.mxu0 0.0
    %2982 = vmatpush1.msra.mxu0 0.0
    %2983 = vmatprep.subr.mxu0 0.0
    %2984 = vmatpush1.msra.mxu0 0.0
    %2985 = vmatprep.subr.mxu0 0.0
    %2986 = vmatpush1.msra.mxu0 0.0
    %2987 = vmatprep.subr.mxu0 0.0
    %2988 = vmatpush1.msra.mxu0 0.0
    %2989 = vmatprep.subr.mxu0 0.0
    %2990 = vmatpush1.msra.mxu0 0.0
    %2991 = vmatprep.subr.mxu0 0.0
    %2992 = vmatpush1.msra.mxu0 0.0
    %2993 = vmatprep.subr.mxu0 0.0
    %2994 = vmatpush1.msra.mxu0 0.0
    %2995 = vmatprep.subr.mxu0 0.0
    %2996 = vmatpush1.msra.mxu0 0.0
    %2997 = vmatprep.subr.mxu0 0.0
    %2998 = vmatpush1.msra.mxu0 0.0
    %2999 = vmatprep.subr.mxu0 0.0
    %3000 = vmatpush1.msra.mxu0 0.0
    %3001 = vmatprep.subr.mxu0 0.0
    %3002 = vmatpush1.msra.mxu0 0.0
    %3003 = vmatprep.subr.mxu0 0.0
    %3004 = vmatpush1.msra.mxu0 0.0
    %3005 = vmatprep.subr.mxu0 0.0
    %3006 = vmatpush1.msra.mxu0 0.0
    %3007 = vmatprep.subr.mxu0 0.0
    %3008 = vmatpush1.msra.mxu0 0.0
    %3009 = vmatprep.subr.mxu0 0.0
    %3010 = vmatpush1.msra.mxu0 0.0
    %3011 = vmatprep.mubr.f32.mxu0 0.0
    %3012 = vmatmul.mubr.f32.gmra.mrb[0].mxu0 %v711
    %v3013 = vpop.f32.mrb[0].mxu0
    %v3014 = vadd.f32 %v693, %v3013
    %v3015 = vpop.f32.mrb[0].mxu0
    %3016 = vmatprep.mubr.f32.mxu0 0.0
    %3017 = vmatmul.mubr.f32.gmra.mrb[0].mxu0 %v714
    %v3018 = vpop.f32.mrb[0].mxu0
    %v3019 = vadd.f32 %v698, %v3018
    %v3020 = vpop.f32.mrb[0].mxu0
    %3021 = vmatprep.mubr.f32.mxu0 0.0
    %3022 = vmatmul.mubr.f32.gmra.mrb[0].mxu0 %v717
    %v3023 = vpop.f32.mrb[0].mxu0
    %v3024 = vadd.f32 %v703, %v3023
    %v3025 = vpop.f32.mrb[0].mxu0
    %3026 = vmatprep.mubr.f32.mxu0 0.0
    %3027 = vmatmul.mubr.f32.gmra.mrb[0].mxu0 %v720
    %v3028 = vpop.f32.mrb[0].mxu0
    %v3029 = vadd.f32 %v708, %v3028
    %v3030 = vpop.f32.mrb[0].mxu0
    %3031 = vdwg.mxu0
    %v3032 = vsub.f32 %v3014, %v2402
    %v3033 = vsub.f32 %v3019, %v2403
    %v3034 = vsub.f32 %v3024, %v2404
    %v3035 = vsub.f32 %v3029, %v2405
    %v3036 = vmul.f32 %v3032, 0.5
    %v3037 = vmul.f32 %v3033, 0.5
    %v3038 = vmul.f32 %v3034, 0.5
    %v3039 = vmul.f32 %v3035, 0.5
    %v3040 = vadd.f32 %v2402, %v3036
    %v3041 = vadd.f32 %v2403, %v3037
    %v3042 = vadd.f32 %v2404, %v3038
    %v3043 = vadd.f32 %v2405, %v3039
    %vm3044 = vcmp.ge.f32.partialorder %v3040, 1.0
    %vm3045 = vcmp.ge.f32.partialorder %v3041, 1.0
    %vm3046 = vcmp.ge.f32.partialorder %v3042, 1.0
    %vm3047 = vcmp.ge.f32.partialorder %v3043, 1.0
    %v3048 = vsel %vm3044, 1, 0
    %v3049 = vsel %vm3045, 1, 0
    %v3050 = vsel %vm3046, 1, 0
    %v3051 = vsel %vm3047, 1, 0
    %v3052 = vcvt.s32.f32 %v3048
    %v3053 = vcvt.s32.f32 %v3049
    %v3054 = vcvt.s32.f32 %v3050
    %v3055 = vcvt.s32.f32 %v3051
    %v3056 = vsub.f32 1.0, %v3052
    %v3057 = vsub.f32 1.0, %v3053
    %v3058 = vsub.f32 1.0, %v3054
    %v3059 = vsub.f32 1.0, %v3055
    %v3060 = vmul.f32 %v3040, %v3056
    %v3061 = vmul.f32 %v3041, %v3057
    %v3062 = vmul.f32 %v3042, %v3058
    %v3063 = vmul.f32 %v3043, %v3059
    %3068 = vrot.lane.b32.xlu0 %v3060, 64
    %v3069 = vpop.permute.xlu0 %3068
    %3070 = vrot.lane.b32.xlu0 %v3061, 64
    %v3071 = vpop.permute.xlu0 %3070
    %3072 = vrot.lane.b32.xlu0 %v3062, 64
    %v3073 = vpop.permute.xlu0 %3072
    %3074 = vrot.lane.b32.xlu0 %v3063, 64
    %v3075 = vpop.permute.xlu0 %3074
    %v3080 = vsub.f32 %v3014, %v3069
    %v3081 = vsub.f32 %v3019, %v3071
    %v3082 = vsub.f32 %v3024, %v3073
    %v3083 = vsub.f32 %v3029, %v3075
    %v3084 = vmul.f32 %v3080, 0.5
    %v3085 = vmul.f32 %v3081, 0.5
    %v3086 = vmul.f32 %v3082, 0.5
    %v3087 = vmul.f32 %v3083, 0.5
    %3092 = vrot.lane.b32.xlu0 %v3084, 64
    %v3093 = vpop.permute.xlu0 %3092
    %3094 = vrot.lane.b32.xlu0 %v3085, 64
    %v3095 = vpop.permute.xlu0 %3094
    %3096 = vrot.lane.b32.xlu0 %v3086, 64
    %v3097 = vpop.permute.xlu0 %3096
    %3098 = vrot.lane.b32.xlu0 %v3087, 64
    %v3099 = vpop.permute.xlu0 %3098
    %v3104 = vadd.f32 %v3060, %v3093
    %v3105 = vadd.f32 %v3061, %v3095
    %v3106 = vadd.f32 %v3062, %v3097
    %v3107 = vadd.f32 %v3063, %v3099
    %vm3108 = vcmp.ge.f32.partialorder %v3104, 1.0
    %vm3109 = vcmp.ge.f32.partialorder %v3105, 1.0
    %vm3110 = vcmp.ge.f32.partialorder %v3106, 1.0
    %vm3111 = vcmp.ge.f32.partialorder %v3107, 1.0
    %v3112 = vsel %vm3108, 1, 0
    %v3113 = vsel %vm3109, 1, 0
    %v3114 = vsel %vm3110, 1, 0
    %v3115 = vsel %vm3111, 1, 0
    %v3116 = vcvt.s32.f32 %v3112
    %v3117 = vcvt.s32.f32 %v3113
    %v3118 = vcvt.s32.f32 %v3114
    %v3119 = vcvt.s32.f32 %v3115
    %3124 = vrot.lane.b32.xlu0 %v3116, 64
    %v3125 = vpop.permute.xlu0 %3124
    %3126 = vrot.lane.b32.xlu0 %v3117, 64
    %v3127 = vpop.permute.xlu0 %3126
    %3128 = vrot.lane.b32.xlu0 %v3118, 64
    %v3129 = vpop.permute.xlu0 %3128
    %3130 = vrot.lane.b32.xlu0 %v3119, 64
    %v3131 = vpop.permute.xlu0 %3130
    %v3136 = vsel %vm377, %v3052, %v3125
    %v3137 = vsel %vm377, %v3053, %v3127
    %v3138 = vsel %vm377, %v3054, %v3129
    %v3139 = vsel %vm377, %v3055, %v3131
    %s3140 = scalar_lea.vmem [#allocation2], 96
    %3141 = vst [vmem:[%s3140] sm:$0xff] %v3136
    %3142 = vst [vmem:[%s3140 + $0x8] sm:$0xff] %v3137
    %3143 = vst [vmem:[%s3140 + $0x10] sm:$0xff] %v3138
    %3144 = vst [vmem:[%s3140 + $0x18] sm:$0xff] %v3139
    // Predicated region
    $region26: #{tpu_custom_call.1} parent=1 // pred_check
      _
    $region27: #{tpu_custom_call.1} parent=1 // pred_check_branch
      %3146 = sbr.rel (0) target = $region29
    $region28: #{tpu_custom_call.1} parent=1 // pred_region
      %s3148 = ssub.s32 2048, 2048
      %3149 = vsyncadd [#allocation3], %s3148
      %s3150 = sshll.u32 [#allocation2], 4
      %s3151 = int_to_ptr.vmem [resolvable:$true] %s3150
      %3156 = dma.vmem_to_hbm [thread:$0]  %s3151, 2048, %s6, [#allocation3], 128, 128, 8
    $region29: #{tpu_custom_call.1} parent=1 // pred_fallthru
      _
    // Predicated region
    $region30: #{tpu_custom_call.1} parent=1 // pred_check
      _
    $region31: #{tpu_custom_call.1} parent=1 // pred_check_branch
      %3158 = sbr.rel (0) target = $region33
    $region32: #{tpu_custom_call.1} parent=1 // pred_region
      %3159 = dma.done [#allocation3], 2048
    $region33: #{tpu_custom_call.1} parent=1 // pred_fallthru
      _
    %3160 = vsyncpa [#allocation3], 1

</llo_original>
